<compile_context>
chip_gen: v5e
topology: v5e:2x2
jax: 0.10.0
libtpu: 0.0.40
codegen_flags: <defaults>
</compile_context>

<pallas_src>
import functools
import math

import jax
import jax.numpy as jnp
from jax import lax
from jax.experimental import pallas as pl
from jax.experimental.pallas import tpu as pltpu

_INV_SQRT2 = 1.0 / math.sqrt(2.0)


def _gelu_exact(x):
    # PyTorch nn.GELU() default: exact erf-based GELU.
    return 0.5 * x * (1.0 + lax.erf(x * _INV_SQRT2))


def _round_up(n, m=128):
    return ((n + m - 1) // m) * m


def mbconv_kernel(
    x_ref,       # (1, H*W, Cin_p)   raw input (residual source), channel-padded
    w1_ref,      # (Cin_p, hid_p)    PW1 with BN0/BN1 scales folded in
    b1_ref,      # (1, hid_p)        fused bias before GELU1
    wdw_ref,     # (3, 3, hid_p)     depthwise 3x3 with BN2 scale folded in
    b2_ref,      # (1, hid_p)        BN2 shift (bias before GELU2)
    wse1_ref,    # (hid_p, se_p)     SE fc1 (transposed)
    wse2_ref,    # (se_p, hid_p)     SE fc2 (transposed)
    w2_ref,      # (hid_p, Cout_p)   PW2 with BN3 scale folded in
    b3_ref,      # (1, Cout_p)       BN3 shift
    o_ref,       # (1, H*W, Cout_p)
    dw_ref,      # VMEM scratch (H+2, W+2, hid_p) — padded buffer for depthwise
    *,
    H, W, matmul_dtype,
):
    hid_p = w1_ref.shape[1]
    HW = H * W

    def mm(a, b):
        # bf16 cast is the v6e/v7x MXU fast path; f32 accumulation always.
        return jnp.dot(a.astype(matmul_dtype), b.astype(matmul_dtype),
                       preferred_element_type=jnp.float32)

    x = x_ref[0]                                                  # (HW, Cin_p) f32

    # --- PW1 (BN0 + BN1 folded into w1/b1) + GELU ---
    a = _gelu_exact(mm(x, w1_ref[...]) + b1_ref[...])             # (HW, hid_p)

    # --- depthwise 3x3, stride 1, pad 1: padded VMEM scratch + 9-tap FMA ---
    dw_ref[...] = jnp.zeros_like(dw_ref)                          # zero borders (and all)
    dw_ref[pl.ds(1, H), pl.ds(1, W), :] = a.reshape(H, W, hid_p)  # interior store
    wdw = wdw_ref[...]                                            # (3, 3, hid_p)
    acc = jnp.zeros((H, W, hid_p), jnp.float32)
    for di in range(3):
        for dj in range(3):
            tap = dw_ref[pl.ds(di, H), pl.ds(dj, W), :]
            acc = acc + tap * wdw[di, dj][None, None, :]

    # --- BN2 shift (scale already folded into wdw) + GELU ---
    a = _gelu_exact(acc.reshape(HW, hid_p) + b2_ref[...])         # (HW, hid_p)

    # --- SE: global average pool -> Linear -> GELU -> Linear -> Sigmoid -> scale ---
    pooled = jnp.sum(a, axis=0, keepdims=True) * (1.0 / HW)       # (1, hid_p)
    se = _gelu_exact(mm(pooled, wse1_ref[...]))                   # (1, se_p)
    se = jax.nn.sigmoid(mm(se, wse2_ref[...]))                    # (1, hid_p)
    a = a * se

    # --- PW2 (BN3 folded) + residual (oup == inp, stride 1) ---
    y = mm(a, w2_ref[...]) + b3_ref[...]                          # (HW, Cout_p)
    o_ref[0] = (x + y).astype(o_ref.dtype)                        # lane-dense store


def fold_and_pad_params(p):
    """Fold BN affines into conv weights and zero-pad all channel dims to 128."""
    s0, b0 = p["s0"][0], p["b0"][0]
    s1, b1 = p["s1"][0], p["b1"][0]
    s2, b2 = p["s2"][0], p["b2"][0]
    s3, b3 = p["s3"][0], p["b3"][0]

    w1f = (s0[:, None] * p["w1"]) * s1[None, :]        # BN0 rows, BN1 cols
    b1f = (b0 @ p["w1"]) * s1 + b1                     # fused bias before GELU1
    wdwf = p["wdw"] * s2[None, None, :]                # BN2 scale into depthwise
    b2f = b2                                           # BN2 shift stays as bias
    w2f = p["w2"] * s3[None, :]                        # BN3 scale into PW2
    b3f = b3

    Cin, hid = p["w1"].shape
    se_dim = p["wse1"].shape[1]
    Cout = p["w2"].shape[1]
    Cin_p, hid_p, se_p, Cout_p = (_round_up(c) for c in (Cin, hid, se_dim, Cout))

    pad_v = lambda v, n: jnp.pad(v, (0, n - v.shape[0]))
    pad_m = lambda m, r, c: jnp.pad(m, ((0, r - m.shape[0]), (0, c - m.shape[1])))

    kp = dict(
        w1=pad_m(w1f, Cin_p, hid_p),
        b1=pad_v(b1f, hid_p)[None, :],
        wdw=jnp.pad(wdwf, ((0, 0), (0, 0), (0, hid_p - hid))),
        b2=pad_v(b2f, hid_p)[None, :],
        wse1=pad_m(p["wse1"], hid_p, se_p),
        wse2=pad_m(p["wse2"], se_p, hid_p),
        w2=pad_m(w2f, hid_p, Cout_p),
        b3=pad_v(b3f, Cout_p)[None, :],
    )
    return kp, (Cin_p, hid_p, se_p, Cout_p)


def mbconv_forward(x_nchw, params, *, matmul_dtype=jnp.float32):
    """x_nchw: (B, Cin, H, W) float32.  Returns (B, Cout, H, W)."""
    B, Cin, H, W = x_nchw.shape
    Cout = params["w2"].shape[1]
    # Residual (downsample=False) branch requires oup == inp.
    assert Cout == Cin, "MBConv residual branch requires oup == inp"

    kp, (Cin_p, hid_p, se_p, Cout_p) = fold_and_pad_params(params)

    # NCHW -> NHWC -> zero-pad channels to 128 -> (B, H*W, C_pad) lane-dense layout.
    x_nhwc = jnp.transpose(x_nchw, (0, 2, 3, 1)).astype(jnp.float32)
    x_flat = jnp.pad(x_nhwc, ((0, 0), (0, 0), (0, 0), (0, Cin_p - Cin)))
    x_flat = x_flat.reshape(B, H * W, Cin_p)

    full = lambda shape: pl.BlockSpec(shape, lambda b: (0,) * len(shape))
    kernel = functools.partial(mbconv_kernel, H=H, W=W, matmul_dtype=matmul_dtype)

    out_flat = pl.pallas_call(
        kernel,
        out_shape=jax.ShapeDtypeStruct((B, H * W, Cout_p), jnp.float32),
        grid_spec=pltpu.PrefetchScalarGridSpec(
            num_scalar_prefetch=0,
            grid=(B,),
            in_specs=[
                pl.BlockSpec((1, H * W, Cin_p), lambda b: (b, 0, 0)),
                full((Cin_p, hid_p)),
                full((1, hid_p)),
                full((3, 3, hid_p)),
                full((1, hid_p)),
                full((hid_p, se_p)),
                full((se_p, hid_p)),
                full((hid_p, Cout_p)),
                full((1, Cout_p)),
            ],
            out_specs=pl.BlockSpec((1, H * W, Cout_p), lambda b: (b, 0, 0)),
            scratch_shapes=[pltpu.VMEM((H + 2, W + 2, hid_p), jnp.float32)],
        ),
        compiler_params=pltpu.CompilerParams(
            dimension_semantics=("parallel",),
            vmem_limit_bytes=32 * 1024 * 1024,
        ),
    )(
        x_flat,
        kp["w1"], kp["b1"], kp["wdw"], kp["b2"],
        kp["wse1"], kp["wse2"], kp["w2"], kp["b3"],
    )

    out = out_flat.reshape(B, H, W, Cout_p)[..., :Cout]
    return jnp.transpose(out, (0, 3, 1, 2))          # NHWC -> NCHW


def _fold_bn(gamma, beta, mean, var, eps=1e-5):
    scale = gamma / jnp.sqrt(var + eps)
    shift = beta - mean * scale
    return scale[None, :], shift[None, :]


def make_params(key, inp, oup, expansion=4):
    hid = int(inp * expansion)
    se_dim = int(inp * 0.25)
    ks = jax.random.split(key, 10)

    def bn(k, c):
        k1, k2, k3, k4 = jax.random.split(k, 4)
        gamma = 1.0 + 0.1 * jax.random.normal(k1, (c,), jnp.float32)
        beta = 0.1 * jax.random.normal(k2, (c,), jnp.float32)
        mean = 0.1 * jax.random.normal(k3, (c,), jnp.float32)
        var = 1.0 + 0.1 * jax.random.uniform(k4, (c,), jnp.float32)
        return _fold_bn(gamma, beta, mean, var)

    s0, b0 = bn(ks[0], inp)
    s1, b1 = bn(ks[1], hid)
    s2, b2 = bn(ks[2], hid)
    s3, b3 = bn(ks[3], oup)

    w1 = 0.2 * jax.random.normal(ks[4], (inp, hid), jnp.float32)       # 1x1 conv (in, out)
    wdw = 0.2 * jax.random.normal(ks[5], (3, 3, hid), jnp.float32)     # depthwise (kh, kw, c)
    wse1 = 0.2 * jax.random.normal(ks[6], (hid, se_dim), jnp.float32)  # Linear(hid->se).T
    wse2 = 0.2 * jax.random.normal(ks[7], (se_dim, hid), jnp.float32)  # Linear(se->hid).T
    w2 = 0.2 * jax.random.normal(ks[8], (hid, oup), jnp.float32)       # 1x1 conv (in, out)

    return dict(s0=s0, b0=b0, w1=w1, s1=s1, b1=b1, wdw=wdw, s2=s2, b2=b2,
                wse1=wse1, wse2=wse2, w2=w2, s3=s3, b3=b3)


def mbconv_reference(x_nchw, p):
    """Pure-JAX reference (unfused, unpadded) for validation."""
    B, Cin, H, W = x_nchw.shape
    x = jnp.transpose(x_nchw, (0, 2, 3, 1))                 # (B,H,W,Cin)
    xb = x * p["s0"][0] + p["b0"][0]
    a = jnp.einsum("bhwc,cd->bhwd", xb, p["w1"])
    a = _gelu_exact(a * p["s1"][0] + p["b1"][0])
    ap = jnp.pad(a, ((0, 0), (1, 1), (1, 1), (0, 0)))
    acc = jnp.zeros_like(a)
    for di in range(3):
        for dj in range(3):
            acc = acc + ap[:, di:di + H, dj:dj + W, :] * p["wdw"][di, dj, :]
    a = _gelu_exact(acc * p["s2"][0] + p["b2"][0])
    pooled = jnp.mean(a, axis=(1, 2))                        # (B, hid)
    se = _gelu_exact(pooled @ p["wse1"])
    se = jax.nn.sigmoid(se @ p["wse2"])                      # (B, hid)
    a = a * se[:, None, None, :]
    y = jnp.einsum("bhwc,cd->bhwd", a, p["w2"])
    y = y * p["s3"][0] + p["b3"][0]
    out = x + y
    return jnp.transpose(out, (0, 3, 1, 2))


if __name__ == "__main__":
    B, inp, H, W = 2, 8, 16, 16
    oup = inp                      # residual branch requires oup == inp
    key = jax.random.PRNGKey(0)
    kx, kp = jax.random.split(key)
    x = jax.random.normal(kx, (B, inp, H, W), jnp.float32)
    params = make_params(kp, inp, oup, expansion=4)

    out = jax.block_until_ready(mbconv_forward(x, params))
    ref = jax.block_until_ready(mbconv_reference(x, params))

    assert out.shape == (B, oup, H, W)
    err = float(jnp.max(jnp.abs(out - ref)))
    assert err < 1e-3, err
    print("KERNEL_OK")
</pallas_src>

<mosaic_0001>
module attributes {stable_mosaic.version = 11 : i64} {
  func.func @mbconv_kernel(%arg0: i32, %arg1: memref<1x256x128xf32, #tpu.memory_space<vmem>>, %arg2: memref<128x128xf32, #tpu.memory_space<vmem>>, %arg3: memref<1x128xf32, #tpu.memory_space<vmem>>, %arg4: memref<3x3x128xf32, #tpu.memory_space<vmem>>, %arg5: memref<1x128xf32, #tpu.memory_space<vmem>>, %arg6: memref<128x128xf32, #tpu.memory_space<vmem>>, %arg7: memref<128x128xf32, #tpu.memory_space<vmem>>, %arg8: memref<128x128xf32, #tpu.memory_space<vmem>>, %arg9: memref<1x128xf32, #tpu.memory_space<vmem>>, %arg10: memref<1x256x128xf32, #tpu.memory_space<vmem>>, %arg11: memref<18x18x128xf32, #tpu.memory_space<vmem>>) attributes {dimension_semantics = [#tpu.dimension_semantics<parallel>], iteration_bounds = array<i64: 2>, scalar_prefetch = 0 : i64, scratch_operands = 1 : i64, tpu.core_type = #tpu.core_type<tc>, window_params = [{transform_indices = @transform_0, window_bounds = array<i64: 1, 256, 128>}, {pipeline_mode = #tpu.pipeline_mode<synchronous>, transform_indices = @transform_1, window_bounds = array<i64: 128, 128>}, {pipeline_mode = #tpu.pipeline_mode<synchronous>, transform_indices = @transform_2, window_bounds = array<i64: 1, 128>}, {pipeline_mode = #tpu.pipeline_mode<synchronous>, transform_indices = @transform_3, window_bounds = array<i64: 3, 3, 128>}, {pipeline_mode = #tpu.pipeline_mode<synchronous>, transform_indices = @transform_4, window_bounds = array<i64: 1, 128>}, {pipeline_mode = #tpu.pipeline_mode<synchronous>, transform_indices = @transform_5, window_bounds = array<i64: 128, 128>}, {pipeline_mode = #tpu.pipeline_mode<synchronous>, transform_indices = @transform_6, window_bounds = array<i64: 128, 128>}, {pipeline_mode = #tpu.pipeline_mode<synchronous>, transform_indices = @transform_7, window_bounds = array<i64: 128, 128>}, {pipeline_mode = #tpu.pipeline_mode<synchronous>, transform_indices = @transform_8, window_bounds = array<i64: 1, 128>}, {transform_indices = @transform_9, window_bounds = array<i64: 1, 256, 128>}]} {
    %c0 = arith.constant 0 : index
    %c0_0 = arith.constant 0 : index
    %c0_1 = arith.constant 0 : index
    %0 = vector.load %arg1[%c0, %c0_0, %c0_1] : memref<1x256x128xf32, #tpu.memory_space<vmem>>, vector<1x256x128xf32>
    %1 = vector.shape_cast %0 : vector<1x256x128xf32> to vector<256x128xf32>
    %c0_2 = arith.constant 0 : index
    %c0_3 = arith.constant 0 : index
    %2 = vector.load %arg2[%c0_2, %c0_3] : memref<128x128xf32, #tpu.memory_space<vmem>>, vector<128x128xf32>
    %cst = arith.constant dense<0.000000e+00> : vector<256x128xf32>
    %3 = tpu.matmul %1, %2, %cst {dimension_numbers = #tpu.dot_dimension_numbers<[1], [0], [0], [1], [0, 0, 1, 1], [], []>} : vector<256x128xf32>, vector<128x128xf32>, vector<256x128xf32> -> vector<256x128xf32>
    %c0_4 = arith.constant 0 : index
    %c0_5 = arith.constant 0 : index
    %4 = vector.load %arg3[%c0_4, %c0_5] : memref<1x128xf32, #tpu.memory_space<vmem>>, vector<1x128xf32>
    %5 = vector.broadcast %4 : vector<1x128xf32> to vector<256x128xf32>
    %6 = arith.addf %3, %5 : vector<256x128xf32>
    %cst_6 = arith.constant 5.000000e-01 : f32
    %7 = vector.broadcast %cst_6 : f32 to vector<256x128xf32>
    %8 = arith.mulf %7, %6 : vector<256x128xf32>
    %cst_7 = arith.constant 0.707106769 : f32
    %9 = vector.broadcast %cst_7 : f32 to vector<256x128xf32>
    %10 = arith.mulf %6, %9 : vector<256x128xf32>
    %11 = math.erf %10 : vector<256x128xf32>
    %cst_8 = arith.constant 1.000000e+00 : f32
    %12 = vector.broadcast %cst_8 : f32 to vector<256x128xf32>
    %13 = arith.addf %12, %11 : vector<256x128xf32>
    %14 = arith.mulf %8, %13 : vector<256x128xf32>
    %cst_9 = arith.constant 0.000000e+00 : f32
    %15 = vector.broadcast %cst_9 : f32 to vector<18x18x128xf32>
    %c0_10 = arith.constant 0 : index
    %c0_11 = arith.constant 0 : index
    %c0_12 = arith.constant 0 : index
    %16 = vector.load %arg11[%c0_10, %c0_11, %c0_12] : memref<18x18x128xf32, #tpu.memory_space<vmem>>, vector<18x18x128xf32>
    tpu.vector_store %arg11[%c0_10, %c0_11, %c0_12], %15 {strides = array<i32>} : memref<18x18x128xf32, #tpu.memory_space<vmem>>, vector<18x18x128xf32>,
    %17 = vector.shape_cast %14 : vector<256x128xf32> to vector<16x16x128xf32>
    %c1 = arith.constant 1 : index
    %c1_13 = arith.constant 1 : index
    %c0_14 = arith.constant 0 : index
    %18 = vector.load %arg11[%c1, %c1_13, %c0_14] : memref<18x18x128xf32, #tpu.memory_space<vmem>>, vector<16x16x128xf32>
    tpu.vector_store %arg11[%c1, %c1_13, %c0_14], %17 {strides = array<i32>} : memref<18x18x128xf32, #tpu.memory_space<vmem>>, vector<16x16x128xf32>,
    %c0_15 = arith.constant 0 : index
    %c0_16 = arith.constant 0 : index
    %c0_17 = arith.constant 0 : index
    %19 = vector.load %arg4[%c0_15, %c0_16, %c0_17] : memref<3x3x128xf32, #tpu.memory_space<vmem>>, vector<3x3x128xf32>
    %cst_18 = arith.constant 0.000000e+00 : f32
    %20 = vector.broadcast %cst_18 : f32 to vector<16x16x128xf32>
    %c0_19 = arith.constant 0 : index
    %c0_20 = arith.constant 0 : index
    %c0_21 = arith.constant 0 : index
    %21 = vector.load %arg11[%c0_19, %c0_20, %c0_21] : memref<18x18x128xf32, #tpu.memory_space<vmem>>, vector<16x16x128xf32>
    %22 = vector.extract_strided_slice %19 {offsets = [0, 0, 0], sizes = [1, 1, 128], strides = [1, 1, 1]} : vector<3x3x128xf32> to vector<1x1x128xf32>
    %23 = vector.shape_cast %22 : vector<1x1x128xf32> to vector<128xf32>
    %24 = vector.shape_cast %23 : vector<128xf32> to vector<1x1x128xf32>
    %25 = vector.broadcast %24 : vector<1x1x128xf32> to vector<16x16x128xf32>
    %26 = arith.mulf %21, %25 : vector<16x16x128xf32>
    %27 = arith.addf %20, %26 : vector<16x16x128xf32>
    %c0_22 = arith.constant 0 : index
    %c1_23 = arith.constant 1 : index
    %c0_24 = arith.constant 0 : index
    %28 = vector.load %arg11[%c0_22, %c1_23, %c0_24] : memref<18x18x128xf32, #tpu.memory_space<vmem>>, vector<16x16x128xf32>
    %29 = vector.extract_strided_slice %19 {offsets = [0, 1, 0], sizes = [1, 1, 128], strides = [1, 1, 1]} : vector<3x3x128xf32> to vector<1x1x128xf32>
    %30 = vector.shape_cast %29 : vector<1x1x128xf32> to vector<128xf32>
    %31 = vector.shape_cast %30 : vector<128xf32> to vector<1x1x128xf32>
    %32 = vector.broadcast %31 : vector<1x1x128xf32> to vector<16x16x128xf32>
    %33 = arith.mulf %28, %32 : vector<16x16x128xf32>
    %34 = arith.addf %27, %33 : vector<16x16x128xf32>
    %c0_25 = arith.constant 0 : index
    %c2 = arith.constant 2 : index
    %c0_26 = arith.constant 0 : index
    %35 = vector.load %arg11[%c0_25, %c2, %c0_26] : memref<18x18x128xf32, #tpu.memory_space<vmem>>, vector<16x16x128xf32>
    %36 = vector.extract_strided_slice %19 {offsets = [0, 2, 0], sizes = [1, 1, 128], strides = [1, 1, 1]} : vector<3x3x128xf32> to vector<1x1x128xf32>
    %37 = vector.shape_cast %36 : vector<1x1x128xf32> to vector<128xf32>
    %38 = vector.shape_cast %37 : vector<128xf32> to vector<1x1x128xf32>
    %39 = vector.broadcast %38 : vector<1x1x128xf32> to vector<16x16x128xf32>
    %40 = arith.mulf %35, %39 : vector<16x16x128xf32>
    %41 = arith.addf %34, %40 : vector<16x16x128xf32>
    %c1_27 = arith.constant 1 : index
    %c0_28 = arith.constant 0 : index
    %c0_29 = arith.constant 0 : index
    %42 = vector.load %arg11[%c1_27, %c0_28, %c0_29] : memref<18x18x128xf32, #tpu.memory_space<vmem>>, vector<16x16x128xf32>
    %43 = vector.extract_strided_slice %19 {offsets = [1, 0, 0], sizes = [1, 1, 128], strides = [1, 1, 1]} : vector<3x3x128xf32> to vector<1x1x128xf32>
    %44 = vector.shape_cast %43 : vector<1x1x128xf32> to vector<128xf32>
    %45 = vector.shape_cast %44 : vector<128xf32> to vector<1x1x128xf32>
    %46 = vector.broadcast %45 : vector<1x1x128xf32> to vector<16x16x128xf32>
    %47 = arith.mulf %42, %46 : vector<16x16x128xf32>
    %48 = arith.addf %41, %47 : vector<16x16x128xf32>
    %c1_30 = arith.constant 1 : index
    %c1_31 = arith.constant 1 : index
    %c0_32 = arith.constant 0 : index
    %49 = vector.load %arg11[%c1_30, %c1_31, %c0_32] : memref<18x18x128xf32, #tpu.memory_space<vmem>>, vector<16x16x128xf32>
    %50 = vector.extract_strided_slice %19 {offsets = [1, 1, 0], sizes = [1, 1, 128], strides = [1, 1, 1]} : vector<3x3x128xf32> to vector<1x1x128xf32>
    %51 = vector.shape_cast %50 : vector<1x1x128xf32> to vector<128xf32>
    %52 = vector.shape_cast %51 : vector<128xf32> to vector<1x1x128xf32>
    %53 = vector.broadcast %52 : vector<1x1x128xf32> to vector<16x16x128xf32>
    %54 = arith.mulf %49, %53 : vector<16x16x128xf32>
    %55 = arith.addf %48, %54 : vector<16x16x128xf32>
    %c1_33 = arith.constant 1 : index
    %c2_34 = arith.constant 2 : index
    %c0_35 = arith.constant 0 : index
    %56 = vector.load %arg11[%c1_33, %c2_34, %c0_35] : memref<18x18x128xf32, #tpu.memory_space<vmem>>, vector<16x16x128xf32>
    %57 = vector.extract_strided_slice %19 {offsets = [1, 2, 0], sizes = [1, 1, 128], strides = [1, 1, 1]} : vector<3x3x128xf32> to vector<1x1x128xf32>
    %58 = vector.shape_cast %57 : vector<1x1x128xf32> to vector<128xf32>
    %59 = vector.shape_cast %58 : vector<128xf32> to vector<1x1x128xf32>
    %60 = vector.broadcast %59 : vector<1x1x128xf32> to vector<16x16x128xf32>
    %61 = arith.mulf %56, %60 : vector<16x16x128xf32>
    %62 = arith.addf %55, %61 : vector<16x16x128xf32>
    %c2_36 = arith.constant 2 : index
    %c0_37 = arith.constant 0 : index
    %c0_38 = arith.constant 0 : index
    %63 = vector.load %arg11[%c2_36, %c0_37, %c0_38] : memref<18x18x128xf32, #tpu.memory_space<vmem>>, vector<16x16x128xf32>
    %64 = vector.extract_strided_slice %19 {offsets = [2, 0, 0], sizes = [1, 1, 128], strides = [1, 1, 1]} : vector<3x3x128xf32> to vector<1x1x128xf32>
    %65 = vector.shape_cast %64 : vector<1x1x128xf32> to vector<128xf32>
    %66 = vector.shape_cast %65 : vector<128xf32> to vector<1x1x128xf32>
    %67 = vector.broadcast %66 : vector<1x1x128xf32> to vector<16x16x128xf32>
    %68 = arith.mulf %63, %67 : vector<16x16x128xf32>
    %69 = arith.addf %62, %68 : vector<16x16x128xf32>
    %c2_39 = arith.constant 2 : index
    %c1_40 = arith.constant 1 : index
    %c0_41 = arith.constant 0 : index
    %70 = vector.load %arg11[%c2_39, %c1_40, %c0_41] : memref<18x18x128xf32, #tpu.memory_space<vmem>>, vector<16x16x128xf32>
    %71 = vector.extract_strided_slice %19 {offsets = [2, 1, 0], sizes = [1, 1, 128], strides = [1, 1, 1]} : vector<3x3x128xf32> to vector<1x1x128xf32>
    %72 = vector.shape_cast %71 : vector<1x1x128xf32> to vector<128xf32>
    %73 = vector.shape_cast %72 : vector<128xf32> to vector<1x1x128xf32>
    %74 = vector.broadcast %73 : vector<1x1x128xf32> to vector<16x16x128xf32>
    %75 = arith.mulf %70, %74 : vector<16x16x128xf32>
    %76 = arith.addf %69, %75 : vector<16x16x128xf32>
    %c2_42 = arith.constant 2 : index
    %c2_43 = arith.constant 2 : index
    %c0_44 = arith.constant 0 : index
    %77 = vector.load %arg11[%c2_42, %c2_43, %c0_44] : memref<18x18x128xf32, #tpu.memory_space<vmem>>, vector<16x16x128xf32>
    %78 = vector.extract_strided_slice %19 {offsets = [2, 2, 0], sizes = [1, 1, 128], strides = [1, 1, 1]} : vector<3x3x128xf32> to vector<1x1x128xf32>
    %79 = vector.shape_cast %78 : vector<1x1x128xf32> to vector<128xf32>
    %80 = vector.shape_cast %79 : vector<128xf32> to vector<1x1x128xf32>
    %81 = vector.broadcast %80 : vector<1x1x128xf32> to vector<16x16x128xf32>
    %82 = arith.mulf %77, %81 : vector<16x16x128xf32>
    %83 = arith.addf %76, %82 : vector<16x16x128xf32>
    %84 = vector.shape_cast %83 : vector<16x16x128xf32> to vector<256x128xf32>
    %c0_45 = arith.constant 0 : index
    %c0_46 = arith.constant 0 : index
    %85 = vector.load %arg5[%c0_45, %c0_46] : memref<1x128xf32, #tpu.memory_space<vmem>>, vector<1x128xf32>
    %86 = vector.broadcast %85 : vector<1x128xf32> to vector<256x128xf32>
    %87 = arith.addf %84, %86 : vector<256x128xf32>
    %cst_47 = arith.constant 5.000000e-01 : f32
    %88 = vector.broadcast %cst_47 : f32 to vector<256x128xf32>
    %89 = arith.mulf %88, %87 : vector<256x128xf32>
    %cst_48 = arith.constant 0.707106769 : f32
    %90 = vector.broadcast %cst_48 : f32 to vector<256x128xf32>
    %91 = arith.mulf %87, %90 : vector<256x128xf32>
    %92 = math.erf %91 : vector<256x128xf32>
    %cst_49 = arith.constant 1.000000e+00 : f32
    %93 = vector.broadcast %cst_49 : f32 to vector<256x128xf32>
    %94 = arith.addf %93, %92 : vector<256x128xf32>
    %95 = arith.mulf %89, %94 : vector<256x128xf32>
    %cst_50 = arith.constant dense<0.000000e+00> : vector<128xf32>
    %96 = vector.multi_reduction <add>, %95, %cst_50 [0] : vector<256x128xf32> to vector<128xf32>
    %97 = vector.shape_cast %96 : vector<128xf32> to vector<1x128xf32>
    %cst_51 = arith.constant 3.906250e-03 : f32
    %98 = vector.broadcast %cst_51 : f32 to vector<1x128xf32>
    %99 = arith.mulf %97, %98 : vector<1x128xf32>
    %c0_52 = arith.constant 0 : index
    %c0_53 = arith.constant 0 : index
    %100 = vector.load %arg6[%c0_52, %c0_53] : memref<128x128xf32, #tpu.memory_space<vmem>>, vector<128x128xf32>
    %cst_54 = arith.constant dense<0.000000e+00> : vector<1x128xf32>
    %101 = tpu.matmul %99, %100, %cst_54 {dimension_numbers = #tpu.dot_dimension_numbers<[1], [0], [0], [1], [0, 0, 1, 1], [], []>} : vector<1x128xf32>, vector<128x128xf32>, vector<1x128xf32> -> vector<1x128xf32>
    %cst_55 = arith.constant 5.000000e-01 : f32
    %102 = vector.broadcast %cst_55 : f32 to vector<1x128xf32>
    %103 = arith.mulf %102, %101 : vector<1x128xf32>
    %cst_56 = arith.constant 0.707106769 : f32
    %104 = vector.broadcast %cst_56 : f32 to vector<1x128xf32>
    %105 = arith.mulf %101, %104 : vector<1x128xf32>
    %106 = math.erf %105 : vector<1x128xf32>
    %cst_57 = arith.constant 1.000000e+00 : f32
    %107 = vector.broadcast %cst_57 : f32 to vector<1x128xf32>
    %108 = arith.addf %107, %106 : vector<1x128xf32>
    %109 = arith.mulf %103, %108 : vector<1x128xf32>
    %c0_58 = arith.constant 0 : index
    %c0_59 = arith.constant 0 : index
    %110 = vector.load %arg7[%c0_58, %c0_59] : memref<128x128xf32, #tpu.memory_space<vmem>>, vector<128x128xf32>
    %cst_60 = arith.constant dense<0.000000e+00> : vector<1x128xf32>
    %111 = tpu.matmul %109, %110, %cst_60 {dimension_numbers = #tpu.dot_dimension_numbers<[1], [0], [0], [1], [0, 0, 1, 1], [], []>} : vector<1x128xf32>, vector<128x128xf32>, vector<1x128xf32> -> vector<1x128xf32>
    %112 = arith.negf %111 : vector<1x128xf32>
    %113 = math.exp %112 : vector<1x128xf32>
    %cst_61 = arith.constant 1.000000e+00 : f32
    %114 = vector.broadcast %cst_61 : f32 to vector<1x128xf32>
    %115 = arith.addf %114, %113 : vector<1x128xf32>
    %116 = arith.divf %114, %115 : vector<1x128xf32>
    %117 = vector.broadcast %116 : vector<1x128xf32> to vector<256x128xf32>
    %118 = arith.mulf %95, %117 : vector<256x128xf32>
    %c0_62 = arith.constant 0 : index
    %c0_63 = arith.constant 0 : index
    %119 = vector.load %arg8[%c0_62, %c0_63] : memref<128x128xf32, #tpu.memory_space<vmem>>, vector<128x128xf32>
    %cst_64 = arith.constant dense<0.000000e+00> : vector<256x128xf32>
    %120 = tpu.matmul %118, %119, %cst_64 {dimension_numbers = #tpu.dot_dimension_numbers<[1], [0], [0], [1], [0, 0, 1, 1], [], []>} : vector<256x128xf32>, vector<128x128xf32>, vector<256x128xf32> -> vector<256x128xf32>
    %c0_65 = arith.constant 0 : index
    %c0_66 = arith.constant 0 : index
    %121 = vector.load %arg9[%c0_65, %c0_66] : memref<1x128xf32, #tpu.memory_space<vmem>>, vector<1x128xf32>
    %122 = vector.broadcast %121 : vector<1x128xf32> to vector<256x128xf32>
    %123 = arith.addf %120, %122 : vector<256x128xf32>
    %124 = arith.addf %1, %123 : vector<256x128xf32>
    %c0_67 = arith.constant 0 : index
    %c0_68 = arith.constant 0 : index
    %c0_69 = arith.constant 0 : index
    %125 = vector.load %arg10[%c0_67, %c0_68, %c0_69] : memref<1x256x128xf32, #tpu.memory_space<vmem>>, vector<1x256x128xf32>
    %126 = vector.shape_cast %125 : vector<1x256x128xf32> to vector<256x128xf32>
    %127 = vector.shape_cast %124 : vector<256x128xf32> to vector<1x256x128xf32>
    tpu.vector_store %arg10[%c0_67, %c0_68, %c0_69], %127 {strides = array<i32>} : memref<1x256x128xf32, #tpu.memory_space<vmem>>, vector<1x256x128xf32>,
    return
  }
  func.func @transform_0(%arg0: i32) -> (i32, i32, i32) {
    %c0_i32 = arith.constant 0 : i32
    %c0_i32_0 = arith.constant 0 : i32
    %c0_i32_1 = arith.constant 0 : i32
    return %arg0, %c0_i32, %c0_i32_0 : i32, i32, i32
  }
  func.func @transform_1(%arg0: i32) -> (i32, i32) {
    %c0_i32 = arith.constant 0 : i32
    %c0_i32_0 = arith.constant 0 : i32
    %c0_i32_1 = arith.constant 0 : i32
    return %c0_i32, %c0_i32_0 : i32, i32
  }
  func.func @transform_2(%arg0: i32) -> (i32, i32) {
    %c0_i32 = arith.constant 0 : i32
    %c0_i32_0 = arith.constant 0 : i32
    %c0_i32_1 = arith.constant 0 : i32
    return %c0_i32, %c0_i32_0 : i32, i32
  }
  func.func @transform_3(%arg0: i32) -> (i32, i32, i32) {
    %c0_i32 = arith.constant 0 : i32
    %c0_i32_0 = arith.constant 0 : i32
    %c0_i32_1 = arith.constant 0 : i32
    %c0_i32_2 = arith.constant 0 : i32
    return %c0_i32, %c0_i32_0, %c0_i32_1 : i32, i32, i32
  }
  func.func @transform_4(%arg0: i32) -> (i32, i32) {
    %c0_i32 = arith.constant 0 : i32
    %c0_i32_0 = arith.constant 0 : i32
    %c0_i32_1 = arith.constant 0 : i32
    return %c0_i32, %c0_i32_0 : i32, i32
  }
  func.func @transform_5(%arg0: i32) -> (i32, i32) {
    %c0_i32 = arith.constant 0 : i32
    %c0_i32_0 = arith.constant 0 : i32
    %c0_i32_1 = arith.constant 0 : i32
    return %c0_i32, %c0_i32_0 : i32, i32
  }
  func.func @transform_6(%arg0: i32) -> (i32, i32) {
    %c0_i32 = arith.constant 0 : i32
    %c0_i32_0 = arith.constant 0 : i32
    %c0_i32_1 = arith.constant 0 : i32
    return %c0_i32, %c0_i32_0 : i32, i32
  }
  func.func @transform_7(%arg0: i32) -> (i32, i32) {
    %c0_i32 = arith.constant 0 : i32
    %c0_i32_0 = arith.constant 0 : i32
    %c0_i32_1 = arith.constant 0 : i32
    return %c0_i32, %c0_i32_0 : i32, i32
  }
  func.func @transform_8(%arg0: i32) -> (i32, i32) {
    %c0_i32 = arith.constant 0 : i32
    %c0_i32_0 = arith.constant 0 : i32
    %c0_i32_1 = arith.constant 0 : i32
    return %c0_i32, %c0_i32_0 : i32, i32
  }
  func.func @transform_9(%arg0: i32) -> (i32, i32, i32) {
    %c0_i32 = arith.constant 0 : i32
    %c0_i32_0 = arith.constant 0 : i32
    %c0_i32_1 = arith.constant 0 : i32
    return %arg0, %c0_i32, %c0_i32_0 : i32, i32, i32
  }
}

</mosaic_0001>

<llo_original>
// kernel: tpu_custom_call.1
$region0: #{tpu_custom_call.1}
  #allocation0 [shape = 'u32[]', space=smem, size = 0x4, offset = 0x4, fixed_abs, tag = 'smem constant byte address 0x4 - core index']
  #allocation1 [shape = 'u32[72,128]{1,0:T(1,128)}', space=vmem, size = 0x9000, scoped, tag = 'internal scratch']
  #allocation2 [shape = 'f32[18,18,128]{2,1,0:T(8,128)}', space=vmem, size = 0x36000, scoped, tag = 'scratch operand']
  %s0 = inlined_call_operand.hbm [shape: f32[2,256,128], index: 0, kind: input, shape index: {}]
  %s1 = inlined_call_operand.hbm [shape: f32[128,128], index: 1, kind: input, shape index: {}]
  %s2 = inlined_call_operand.vmem [shape: f32[1,128], index: 2, kind: input, shape index: {}]
  %s3 = inlined_call_operand.hbm [shape: f32[3,3,128], index: 3, kind: input, shape index: {}]
  %s4 = inlined_call_operand.vmem [shape: f32[1,128], index: 4, kind: input, shape index: {}]
  %s5 = inlined_call_operand.hbm [shape: f32[128,128], index: 5, kind: input, shape index: {}]
  %s6 = inlined_call_operand.hbm [shape: f32[128,128], index: 6, kind: input, shape index: {}]
  %s7 = inlined_call_operand.hbm [shape: f32[128,128], index: 7, kind: input, shape index: {}]
  %s8 = inlined_call_operand.vmem [shape: f32[1,128], index: 8, kind: input, shape index: {}]
  %s9 = inlined_call_operand.hbm [shape: f32[2,256,128], index: 9, kind: output, shape index: {}]
  %s10 = sld [smem:[#allocation0]]
  $region93: #{tpu_custom_call.1} parent=0
    _
  %s12 = ssub.s32 1, %s10
  %s13 = scalar_select 0, %s12, %s10
  $region1: #{tpu_custom_call.1} parent=0
    #allocation3 [shape = 'u8[262144]{0}', space=vmem, size = 0x40000, scoped, tag = 'input window, operand 0']
    #allocation4 [shape = 's32[2]{0}', space=sflag, size = 0x8, scoped, tag = 'scoped memory for tpu_custom_call.1']
    #allocation5 [shape = 's32[2]{0}', space=sflag, size = 0x8, scoped, tag = 'scoped memory for tpu_custom_call.1']
    #allocation6 [shape = 'u8[65536]{0}', space=vmem, size = 0x10000, scoped, tag = 'input window, operand 1, single buffered']
    #allocation7 [shape = 's32[1]{0}', space=sflag, size = 0x4, scoped, tag = 'scoped memory for tpu_custom_call.1']
    #allocation8 [shape = 'u8[6144]{0}', space=vmem, size = 0x1800, scoped, tag = 'input window, operand 3, single buffered']
    #allocation9 [shape = 'u8[65536]{0}', space=vmem, size = 0x10000, scoped, tag = 'input window, operand 5, single buffered']
    #allocation10 [shape = 's32[1]{0}', space=sflag, size = 0x4, scoped, tag = 'scoped memory for tpu_custom_call.1']
    #allocation11 [shape = 'u8[65536]{0}', space=vmem, size = 0x10000, scoped, tag = 'input window, operand 6, single buffered']
    #allocation12 [shape = 'u8[65536]{0}', space=vmem, size = 0x10000, scoped, tag = 'input window, operand 7, single buffered']
    #allocation13 [shape = 's32[1]{0}', space=sflag, size = 0x4, scoped, tag = 'scoped memory for tpu_custom_call.1']
    #allocation14 [shape = 'u8[262144]{0}', space=vmem, size = 0x40000, scoped, tag = 'output window, operand 0']
    %14 = vsyncpa [#allocation4], 0
    %s15 = scalar_lea.sflag [#allocation4], 1
    %16 = vsyncpa %s15, 0
    %17 = vsyncpa [#allocation7], 0
    %18 = vsyncpa [#allocation10], 0
    %19 = vsyncpa [#allocation13], 0
    %20 = vsyncpa [#allocation5], 0
    %s21 = scalar_lea.sflag [#allocation5], 1
    %22 = vsyncpa %s21, 0
    loop: start=0, step=1, limit=4
    $region2: #{tpu_custom_call.1} parent=1 // loop_pre_header
      _
    $region3: #{tpu_custom_call.1} parent=1 // loop_header
      %s24 = sphi 0, %s28
      %p25 = scmp.ge.s32.totalorder %s24, 4
      %s34 = sphi 0, %s36
      %s37 = sphi 0, %s34
      %s38 = sphi 0, %s37
      %s54 = sphi 0, %s38
      %s58 = sphi 0, %s58
      %s60 = sphi 0, %s58
      %s61 = sphi 0, %s60
      %s75 = sphi 0, %s61
      %s79 = sphi 0, %s79
      %s81 = sphi 0, %s79
      %s82 = sphi 0, %s81
      %s96 = sphi 0, %s82
      %s100 = sphi 0, %s100
      %s102 = sphi 0, %s100
      %s103 = sphi 0, %s102
      %s117 = sphi 0, %s103
      %s121 = sphi 0, %s121
      %s123 = sphi 0, %s121
      %s124 = sphi 0, %s123
      %s138 = sphi 0, %s124
      %s142 = sphi 0, %s142
      %s144 = sphi 0, %s142
      %s145 = sphi 0, %s144
      %s159 = sphi 0, %s145
      %s163 = sphi 0, %s163
      %s165 = sphi 0, %s163
      %s166 = sphi 0, %s165
      %s180 = sphi 0, %s166
      %s184 = sphi 0, %s184
      %s186 = sphi 0, %s184
      %s187 = sphi 0, %s186
      %s201 = sphi 0, %s187
      %s205 = sphi 0, %s205
      %s207 = sphi 0, %s205
      %s208 = sphi 0, %s207
      %s222 = sphi 0, %s208
      %s228 = sphi 0, %s230
      %s231 = sphi 0, %s228
      %s232 = sphi 0, %s231
      %s248 = sphi 0, %s232
    $region4: #{tpu_custom_call.1} parent=1 // loop_header_branch
      %27 = sbr.rel (%p25) target = $region8
    $region5: #{tpu_custom_call.1} parent=1 // loop_body
      %s29 = ssub.s32 %s24, 1
      %s30 = ssub.s32 %s24, 2
      %s31 = sadd.s32 %s24, 1
      %s32 = ssub.s32 %s24, %s31
      %p33 = scmp.eq.s32.totalorder %s32, 0
      %s35 = sadd.s32 %s34, 1
      %s36 = scalar_select %p33, %s34, %s35
      %p39 = pneg %p33
      %p40 = scmp.eq.s32.totalorder %s24, 1
      %p41 = por %p39, %p40
      %p42 = scmp.ne.s32.totalorder %s34, %s37
      %p43 = scmp.eq.s32.totalorder %s24, 0
      %p44 = por %p42, %p43
      %p45 = scmp.ne.s32.totalorder %s34, %s37
      %p46 = scmp.eq.s32.totalorder %s29, 1
      %p47 = por %p45, %p46
      %p48 = scmp.ne.s32.totalorder %s37, %s38
      %p49 = scmp.eq.s32.totalorder %s29, 0
      %p50 = por %p48, %p49
      %p51 = scmp.ne.s32.totalorder %s37, %s38
      %p52 = scmp.eq.s32.totalorder %s30, 1
      %p53 = por %p51, %p52
      %p55 = scmp.ne.s32.totalorder %s38, %s54
      %p56 = scmp.eq.s32.totalorder %s30, 0
      %p57 = por %p55, %p56
      %s59 = sadd.s32 %s58, 1
      %p62 = scmp.eq.s32.totalorder %s24, 1
      %p63 = scmp.ne.s32.totalorder %s58, %s60
      %p64 = scmp.eq.s32.totalorder %s24, 0
      %p65 = por %p63, %p64
      %p66 = scmp.ne.s32.totalorder %s58, %s60
      %p67 = scmp.eq.s32.totalorder %s29, 1
      %p68 = por %p66, %p67
      %p69 = scmp.ne.s32.totalorder %s60, %s61
      %p70 = scmp.eq.s32.totalorder %s29, 0
      %p71 = por %p69, %p70
      %p72 = scmp.ne.s32.totalorder %s60, %s61
      %p73 = scmp.eq.s32.totalorder %s30, 1
      %p74 = por %p72, %p73
      %p76 = scmp.ne.s32.totalorder %s61, %s75
      %p77 = scmp.eq.s32.totalorder %s30, 0
      %p78 = por %p76, %p77
      %s80 = sadd.s32 %s79, 1
      %p83 = scmp.eq.s32.totalorder %s24, 1
      %p84 = scmp.ne.s32.totalorder %s79, %s81
      %p85 = scmp.eq.s32.totalorder %s24, 0
      %p86 = por %p84, %p85
      %p87 = scmp.ne.s32.totalorder %s79, %s81
      %p88 = scmp.eq.s32.totalorder %s29, 1
      %p89 = por %p87, %p88
      %p90 = scmp.ne.s32.totalorder %s81, %s82
      %p91 = scmp.eq.s32.totalorder %s29, 0
      %p92 = por %p90, %p91
      %p93 = scmp.ne.s32.totalorder %s81, %s82
      %p94 = scmp.eq.s32.totalorder %s30, 1
      %p95 = por %p93, %p94
      %p97 = scmp.ne.s32.totalorder %s82, %s96
      %p98 = scmp.eq.s32.totalorder %s30, 0
      %p99 = por %p97, %p98
      %s101 = sadd.s32 %s100, 1
      %p104 = scmp.eq.s32.totalorder %s24, 1
      %p105 = scmp.ne.s32.totalorder %s100, %s102
      %p106 = scmp.eq.s32.totalorder %s24, 0
      %p107 = por %p105, %p106
      %p108 = scmp.ne.s32.totalorder %s100, %s102
      %p109 = scmp.eq.s32.totalorder %s29, 1
      %p110 = por %p108, %p109
      %p111 = scmp.ne.s32.totalorder %s102, %s103
      %p112 = scmp.eq.s32.totalorder %s29, 0
      %p113 = por %p111, %p112
      %p114 = scmp.ne.s32.totalorder %s102, %s103
      %p115 = scmp.eq.s32.totalorder %s30, 1
      %p116 = por %p114, %p115
      %p118 = scmp.ne.s32.totalorder %s103, %s117
      %p119 = scmp.eq.s32.totalorder %s30, 0
      %p120 = por %p118, %p119
      %s122 = sadd.s32 %s121, 1
      %p125 = scmp.eq.s32.totalorder %s24, 1
      %p126 = scmp.ne.s32.totalorder %s121, %s123
      %p127 = scmp.eq.s32.totalorder %s24, 0
      %p128 = por %p126, %p127
      %p129 = scmp.ne.s32.totalorder %s121, %s123
      %p130 = scmp.eq.s32.totalorder %s29, 1
      %p131 = por %p129, %p130
      %p132 = scmp.ne.s32.totalorder %s123, %s124
      %p133 = scmp.eq.s32.totalorder %s29, 0
      %p134 = por %p132, %p133
      %p135 = scmp.ne.s32.totalorder %s123, %s124
      %p136 = scmp.eq.s32.totalorder %s30, 1
      %p137 = por %p135, %p136
      %p139 = scmp.ne.s32.totalorder %s124, %s138
      %p140 = scmp.eq.s32.totalorder %s30, 0
      %p141 = por %p139, %p140
      %s143 = sadd.s32 %s142, 1
      %p146 = scmp.eq.s32.totalorder %s24, 1
      %p147 = scmp.ne.s32.totalorder %s142, %s144
      %p148 = scmp.eq.s32.totalorder %s24, 0
      %p149 = por %p147, %p148
      %p150 = scmp.ne.s32.totalorder %s142, %s144
      %p151 = scmp.eq.s32.totalorder %s29, 1
      %p152 = por %p150, %p151
      %p153 = scmp.ne.s32.totalorder %s144, %s145
      %p154 = scmp.eq.s32.totalorder %s29, 0
      %p155 = por %p153, %p154
      %p156 = scmp.ne.s32.totalorder %s144, %s145
      %p157 = scmp.eq.s32.totalorder %s30, 1
      %p158 = por %p156, %p157
      %p160 = scmp.ne.s32.totalorder %s145, %s159
      %p161 = scmp.eq.s32.totalorder %s30, 0
      %p162 = por %p160, %p161
      %s164 = sadd.s32 %s163, 1
      %p167 = scmp.eq.s32.totalorder %s24, 1
      %p168 = scmp.ne.s32.totalorder %s163, %s165
      %p169 = scmp.eq.s32.totalorder %s24, 0
      %p170 = por %p168, %p169
      %p171 = scmp.ne.s32.totalorder %s163, %s165
      %p172 = scmp.eq.s32.totalorder %s29, 1
      %p173 = por %p171, %p172
      %p174 = scmp.ne.s32.totalorder %s165, %s166
      %p175 = scmp.eq.s32.totalorder %s29, 0
      %p176 = por %p174, %p175
      %p177 = scmp.ne.s32.totalorder %s165, %s166
      %p178 = scmp.eq.s32.totalorder %s30, 1
      %p179 = por %p177, %p178
      %p181 = scmp.ne.s32.totalorder %s166, %s180
      %p182 = scmp.eq.s32.totalorder %s30, 0
      %p183 = por %p181, %p182
      %s185 = sadd.s32 %s184, 1
      %p188 = scmp.eq.s32.totalorder %s24, 1
      %p189 = scmp.ne.s32.totalorder %s184, %s186
      %p190 = scmp.eq.s32.totalorder %s24, 0
      %p191 = por %p189, %p190
      %p192 = scmp.ne.s32.totalorder %s184, %s186
      %p193 = scmp.eq.s32.totalorder %s29, 1
      %p194 = por %p192, %p193
      %p195 = scmp.ne.s32.totalorder %s186, %s187
      %p196 = scmp.eq.s32.totalorder %s29, 0
      %p197 = por %p195, %p196
      %p198 = scmp.ne.s32.totalorder %s186, %s187
      %p199 = scmp.eq.s32.totalorder %s30, 1
      %p200 = por %p198, %p199
      %p202 = scmp.ne.s32.totalorder %s187, %s201
      %p203 = scmp.eq.s32.totalorder %s30, 0
      %p204 = por %p202, %p203
      %s206 = sadd.s32 %s205, 1
      %p209 = scmp.eq.s32.totalorder %s24, 1
      %p210 = scmp.ne.s32.totalorder %s205, %s207
      %p211 = scmp.eq.s32.totalorder %s24, 0
      %p212 = por %p210, %p211
      %p213 = scmp.ne.s32.totalorder %s205, %s207
      %p214 = scmp.eq.s32.totalorder %s29, 1
      %p215 = por %p213, %p214
      %p216 = scmp.ne.s32.totalorder %s207, %s208
      %p217 = scmp.eq.s32.totalorder %s29, 0
      %p218 = por %p216, %p217
      %p219 = scmp.ne.s32.totalorder %s207, %s208
      %p220 = scmp.eq.s32.totalorder %s30, 1
      %p221 = por %p219, %p220
      %p223 = scmp.ne.s32.totalorder %s208, %s222
      %p224 = scmp.eq.s32.totalorder %s30, 0
      %p225 = por %p223, %p224
      %s226 = ssub.s32 %s24, %s31
      %p227 = scmp.eq.s32.totalorder %s226, 0
      %s229 = sadd.s32 %s228, 1
      %s230 = scalar_select %p227, %s228, %s229
      %p233 = pneg %p227
      %p234 = scmp.eq.s32.totalorder %s24, 1
      %p235 = por %p233, %p234
      %p236 = scmp.ne.s32.totalorder %s228, %s231
      %p237 = scmp.eq.s32.totalorder %s24, 0
      %p238 = por %p236, %p237
      %p239 = scmp.ne.s32.totalorder %s228, %s231
      %p240 = scmp.eq.s32.totalorder %s29, 1
      %p241 = por %p239, %p240
      %p242 = scmp.ne.s32.totalorder %s231, %s232
      %p243 = scmp.eq.s32.totalorder %s29, 0
      %p244 = por %p242, %p243
      %p245 = scmp.ne.s32.totalorder %s231, %s232
      %p246 = scmp.eq.s32.totalorder %s30, 1
      %p247 = por %p245, %p246
      %p249 = scmp.ne.s32.totalorder %s232, %s248
      %p250 = scmp.eq.s32.totalorder %s30, 0
      %p251 = por %p249, %p250
      %p252 = scmp.le.s32.totalorder 1, %s24
      %p253 = scmp.lt.s32.totalorder %s24, 3
      %p254 = pnand %p252, %p253
      %p255 = pneg %p254
      // Predicated region
      $region9: #{tpu_custom_call.1} parent=5 // pred_check
        _
      $region10: #{tpu_custom_call.1} parent=5 // pred_check_branch
        %257 = sbr.rel (%p254) target = $region12
      $region11: #{tpu_custom_call.1} parent=5 // pred_region
        %s258 = ssub.s32 %s24, 1
        // Predicated region
        $region13: #{tpu_custom_call.1} parent=11 // pred_check
          %p259 = pneg %p71
        $region14: #{tpu_custom_call.1} parent=11 // pred_check_branch
          %261 = sbr.rel (%p259) target = $region16
        $region15: #{tpu_custom_call.1} parent=11 // pred_region
          %263 = vsyncadd [#allocation7], 0
          %s264 = sshll.u32 %s1, 4
          %s265 = int_to_ptr.hbm [resolvable:$true] %s264
          %s266 = sshll.u32 [#allocation6], 4
          %s267 = int_to_ptr.vmem [resolvable:$true] %s266
          %272 = dma.hbm_to_vmem [thread:$0]  %s265, 2048, %s267, [#allocation7], 128, 128, 8
        $region16: #{tpu_custom_call.1} parent=11 // pred_fallthru
          _
        // Predicated region
        $region17: #{tpu_custom_call.1} parent=11 // pred_check
          %p273 = pneg %p92
        $region18: #{tpu_custom_call.1} parent=11 // pred_check_branch
          %275 = sbr.rel (%p273) target = $region20
        $region19: #{tpu_custom_call.1} parent=11 // pred_region
          _
        $region20: #{tpu_custom_call.1} parent=11 // pred_fallthru
          _
        // Predicated region
        $region21: #{tpu_custom_call.1} parent=11 // pred_check
          %p276 = pneg %p113
        $region22: #{tpu_custom_call.1} parent=11 // pred_check_branch
          %278 = sbr.rel (%p276) target = $region24
        $region23: #{tpu_custom_call.1} parent=11 // pred_region
          %280 = vsyncadd [#allocation7], 0
          %s281 = sshll.u32 %s3, 4
          %s282 = int_to_ptr.hbm [resolvable:$true] %s281
          %s283 = sshll.u32 [#allocation8], 4
          %s284 = int_to_ptr.vmem [resolvable:$true] %s283
          %289 = dma.hbm_to_vmem [thread:$0]  %s282, 192, %s284, [#allocation7], 64, 64, 4
        $region24: #{tpu_custom_call.1} parent=11 // pred_fallthru
          _
        // Predicated region
        $region25: #{tpu_custom_call.1} parent=11 // pred_check
          %p290 = pneg %p134
        $region26: #{tpu_custom_call.1} parent=11 // pred_check_branch
          %292 = sbr.rel (%p290) target = $region28
        $region27: #{tpu_custom_call.1} parent=11 // pred_region
          _
        $region28: #{tpu_custom_call.1} parent=11 // pred_fallthru
          _
        // Predicated region
        $region29: #{tpu_custom_call.1} parent=11 // pred_check
          %p293 = pneg %p155
        $region30: #{tpu_custom_call.1} parent=11 // pred_check_branch
          %295 = sbr.rel (%p293) target = $region32
        $region31: #{tpu_custom_call.1} parent=11 // pred_region
          %297 = vsyncadd [#allocation10], 0
          %s298 = sshll.u32 %s5, 4
          %s299 = int_to_ptr.hbm [resolvable:$true] %s298
          %s300 = sshll.u32 [#allocation9], 4
          %s301 = int_to_ptr.vmem [resolvable:$true] %s300
          %306 = dma.hbm_to_vmem [thread:$0]  %s299, 2048, %s301, [#allocation10], 128, 128, 8
        $region32: #{tpu_custom_call.1} parent=11 // pred_fallthru
          _
        // Predicated region
        $region33: #{tpu_custom_call.1} parent=11 // pred_check
          %p307 = pneg %p176
        $region34: #{tpu_custom_call.1} parent=11 // pred_check_branch
          %309 = sbr.rel (%p307) target = $region36
        $region35: #{tpu_custom_call.1} parent=11 // pred_region
          %311 = vsyncadd [#allocation10], 0
          %s312 = sshll.u32 %s6, 4
          %s313 = int_to_ptr.hbm [resolvable:$true] %s312
          %s314 = sshll.u32 [#allocation11], 4
          %s315 = int_to_ptr.vmem [resolvable:$true] %s314
          %320 = dma.hbm_to_vmem [thread:$0]  %s313, 2048, %s315, [#allocation10], 128, 128, 8
        $region36: #{tpu_custom_call.1} parent=11 // pred_fallthru
          _
        // Predicated region
        $region37: #{tpu_custom_call.1} parent=11 // pred_check
          %p321 = pneg %p197
        $region38: #{tpu_custom_call.1} parent=11 // pred_check_branch
          %323 = sbr.rel (%p321) target = $region40
        $region39: #{tpu_custom_call.1} parent=11 // pred_region
          %325 = vsyncadd [#allocation13], 0
          %s326 = sshll.u32 %s7, 4
          %s327 = int_to_ptr.hbm [resolvable:$true] %s326
          %s328 = sshll.u32 [#allocation12], 4
          %s329 = int_to_ptr.vmem [resolvable:$true] %s328
          %334 = dma.hbm_to_vmem [thread:$0]  %s327, 2048, %s329, [#allocation13], 128, 128, 8
        $region40: #{tpu_custom_call.1} parent=11 // pred_fallthru
          _
        // Predicated region
        $region41: #{tpu_custom_call.1} parent=11 // pred_check
          %p335 = pneg %p218
        $region42: #{tpu_custom_call.1} parent=11 // pred_check_branch
          %337 = sbr.rel (%p335) target = $region44
        $region43: #{tpu_custom_call.1} parent=11 // pred_region
          _
        $region44: #{tpu_custom_call.1} parent=11 // pred_fallthru
          _
      $region12: #{tpu_custom_call.1} parent=5 // pred_fallthru
        _
      %p338 = scmp.lt.s32.totalorder %s24, 2
      // Predicated region
      $region45: #{tpu_custom_call.1} parent=5 // pred_check
        %p339 = pneg %p338
      $region46: #{tpu_custom_call.1} parent=5 // pred_check_branch
        %341 = sbr.rel (%p339) target = $region48
      $region47: #{tpu_custom_call.1} parent=5 // pred_region
        // Predicated region
        $region49: #{tpu_custom_call.1} parent=47 // pred_check
          %p342 = pneg %p44
        $region50: #{tpu_custom_call.1} parent=47 // pred_check_branch
          %344 = sbr.rel (%p342) target = $region52
        $region51: #{tpu_custom_call.1} parent=47 // pred_region
          %s345 = sand.u32 %s34, 1
          %s346 = scalar_lea.sflag [#allocation4], %s345
          %s347 = sand.u32 %s34, 1
          %s348 = smul.addr %s347, 256
          %s349 = scalar_lea.vmem [#allocation3], %s348
          %351 = vsyncadd %s346, 0
          %s352 = smul.addr %s24, 32
          %s353 = smul.addr %s352, 8
          %s354 = scalar_lea.hbm %s0, %s353
          %s355 = sshll.u32 %s354, 4
          %s356 = int_to_ptr.hbm [resolvable:$true] %s355
          %s357 = sshll.u32 %s349, 4
          %s358 = int_to_ptr.vmem [resolvable:$true] %s357
          %363 = dma.hbm_to_vmem [thread:$0]  %s356, 4096, %s358, %s346, 128, 128, 8
        $region52: #{tpu_custom_call.1} parent=47 // pred_fallthru
          _
      $region48: #{tpu_custom_call.1} parent=5 // pred_fallthru
        _
      %p364 = scmp.le.s32.totalorder 1, %s24
      %p365 = scmp.lt.s32.totalorder %s24, 3
      %p366 = pnand %p364, %p365
      %p367 = pneg %p366
      // Predicated region
      $region53: #{tpu_custom_call.1} parent=5 // pred_check
        _
      $region54: #{tpu_custom_call.1} parent=5 // pred_check_branch
        %369 = sbr.rel (%p366) target = $region56
      $region55: #{tpu_custom_call.1} parent=5 // pred_region
        %s370 = ssub.s32 %s24, 1
        %s371 = sand.u32 %s37, 1
        %s372 = scalar_lea.sflag [#allocation4], %s371
        %s373 = sand.u32 %s37, 1
        %s374 = smul.addr %s373, 256
        %s375 = scalar_lea.vmem [#allocation3], %s374
        // Predicated region
        $region57: #{tpu_custom_call.1} parent=55 // pred_check
          %p376 = pneg %p50
        $region58: #{tpu_custom_call.1} parent=55 // pred_check_branch
          %378 = sbr.rel (%p376) target = $region60
        $region59: #{tpu_custom_call.1} parent=55 // pred_region
          %380 = dma.done %s372, 4096
        $region60: #{tpu_custom_call.1} parent=55 // pred_fallthru
          _
        // Predicated region
        $region61: #{tpu_custom_call.1} parent=55 // pred_check
          %p381 = pneg %p71
        $region62: #{tpu_custom_call.1} parent=55 // pred_check_branch
          %383 = sbr.rel (%p381) target = $region64
        $region63: #{tpu_custom_call.1} parent=55 // pred_region
          %385 = dma.done [#allocation7], 2048
        $region64: #{tpu_custom_call.1} parent=55 // pred_fallthru
          _
        // Predicated region
        $region65: #{tpu_custom_call.1} parent=55 // pred_check
          %p386 = pneg %p113
        $region66: #{tpu_custom_call.1} parent=55 // pred_check_branch
          %388 = sbr.rel (%p386) target = $region68
        $region67: #{tpu_custom_call.1} parent=55 // pred_region
          %390 = dma.done [#allocation7], 192
        $region68: #{tpu_custom_call.1} parent=55 // pred_fallthru
          _
        // Predicated region
        $region69: #{tpu_custom_call.1} parent=55 // pred_check
          %p391 = pneg %p155
        $region70: #{tpu_custom_call.1} parent=55 // pred_check_branch
          %393 = sbr.rel (%p391) target = $region72
        $region71: #{tpu_custom_call.1} parent=55 // pred_region
          %395 = dma.done [#allocation10], 2048
        $region72: #{tpu_custom_call.1} parent=55 // pred_fallthru
          _
        // Predicated region
        $region73: #{tpu_custom_call.1} parent=55 // pred_check
          %p396 = pneg %p176
        $region74: #{tpu_custom_call.1} parent=55 // pred_check_branch
          %398 = sbr.rel (%p396) target = $region76
        $region75: #{tpu_custom_call.1} parent=55 // pred_region
          %400 = dma.done [#allocation10], 2048
        $region76: #{tpu_custom_call.1} parent=55 // pred_fallthru
          _
        // Predicated region
        $region77: #{tpu_custom_call.1} parent=55 // pred_check
          %p401 = pneg %p197
        $region78: #{tpu_custom_call.1} parent=55 // pred_check_branch
          %403 = sbr.rel (%p401) target = $region80
        $region79: #{tpu_custom_call.1} parent=55 // pred_region
          %405 = dma.done [#allocation13], 2048
        $region80: #{tpu_custom_call.1} parent=55 // pred_fallthru
          _
        %s406 = sand.u32 %s37, 1
        %s407 = scalar_lea.sflag [#allocation4], %s406
        %s408 = sand.u32 %s37, 1
        %s409 = smul.addr %s408, 256
        %s410 = scalar_lea.vmem [#allocation3], %s409
        %p411 = pneg %p50
        %p412 = pneg %p47
        %p413 = pneg %p71
        %p414 = pneg %p68
        %p415 = pneg %p92
        %p416 = pneg %p89
        %p417 = pneg %p113
        %p418 = pneg %p110
        %p419 = pneg %p134
        %p420 = pneg %p131
        %p421 = pneg %p155
        %p422 = pneg %p152
        %p423 = pneg %p176
        %p424 = pneg %p173
        %p425 = pneg %p197
        %p426 = pneg %p194
        %p427 = pneg %p218
        %p428 = pneg %p215
        %p429 = pneg %p244
        %p430 = pneg %p241
        %s431 = sand.u32 %s231, 1
        %s432 = scalar_lea.sflag [#allocation5], %s431
        %s433 = sand.u32 %s231, 1
        %s434 = smul.addr %s433, 256
        %s435 = scalar_lea.vmem [#allocation14], %s434
        %v436 = vld [vmem:[%s375] sm:$0xff]
        %v437 = vld [vmem:[%s375 + $0x8] sm:$0xff]
        %v438 = vld [vmem:[%s375 + $0x10] sm:$0xff]
        %v439 = vld [vmem:[%s375 + $0x18] sm:$0xff]
        %v440 = vld [vmem:[%s375 + $0x20] sm:$0xff]
        %v441 = vld [vmem:[%s375 + $0x28] sm:$0xff]
        %v442 = vld [vmem:[%s375 + $0x30] sm:$0xff]
        %v443 = vld [vmem:[%s375 + $0x38] sm:$0xff]
        %v444 = vld [vmem:[%s375 + $0x40] sm:$0xff]
        %v445 = vld [vmem:[%s375 + $0x48] sm:$0xff]
        %v446 = vld [vmem:[%s375 + $0x50] sm:$0xff]
        %v447 = vld [vmem:[%s375 + $0x58] sm:$0xff]
        %v448 = vld [vmem:[%s375 + $0x60] sm:$0xff]
        %v449 = vld [vmem:[%s375 + $0x68] sm:$0xff]
        %v450 = vld [vmem:[%s375 + $0x70] sm:$0xff]
        %v451 = vld [vmem:[%s375 + $0x78] sm:$0xff]
        %v452 = vld [vmem:[%s375 + $0x80] sm:$0xff]
        %v453 = vld [vmem:[%s375 + $0x88] sm:$0xff]
        %v454 = vld [vmem:[%s375 + $0x90] sm:$0xff]
        %v455 = vld [vmem:[%s375 + $0x98] sm:$0xff]
        %v456 = vld [vmem:[%s375 + $0xa0] sm:$0xff]
        %v457 = vld [vmem:[%s375 + $0xa8] sm:$0xff]
        %v458 = vld [vmem:[%s375 + $0xb0] sm:$0xff]
        %v459 = vld [vmem:[%s375 + $0xb8] sm:$0xff]
        %v460 = vld [vmem:[%s375 + $0xc0] sm:$0xff]
        %v461 = vld [vmem:[%s375 + $0xc8] sm:$0xff]
        %v462 = vld [vmem:[%s375 + $0xd0] sm:$0xff]
        %v463 = vld [vmem:[%s375 + $0xd8] sm:$0xff]
        %v464 = vld [vmem:[%s375 + $0xe0] sm:$0xff]
        %v465 = vld [vmem:[%s375 + $0xe8] sm:$0xff]
        %v466 = vld [vmem:[%s375 + $0xf0] sm:$0xff]
        %v467 = vld [vmem:[%s375 + $0xf8] sm:$0xff]
        %v468 = vld [vmem:[#allocation6] sm:$0xff]
        %v469 = vld [vmem:[#allocation6 + $0x8] sm:$0xff]
        %v470 = vld [vmem:[#allocation6 + $0x10] sm:$0xff]
        %v471 = vld [vmem:[#allocation6 + $0x18] sm:$0xff]
        %v472 = vld [vmem:[#allocation6 + $0x20] sm:$0xff]
        %v473 = vld [vmem:[#allocation6 + $0x28] sm:$0xff]
        %v474 = vld [vmem:[#allocation6 + $0x30] sm:$0xff]
        %v475 = vld [vmem:[#allocation6 + $0x38] sm:$0xff]
        %v476 = vld [vmem:[#allocation6 + $0x40] sm:$0xff]
        %v477 = vld [vmem:[#allocation6 + $0x48] sm:$0xff]
        %v478 = vld [vmem:[#allocation6 + $0x50] sm:$0xff]
        %v479 = vld [vmem:[#allocation6 + $0x58] sm:$0xff]
        %v480 = vld [vmem:[#allocation6 + $0x60] sm:$0xff]
        %v481 = vld [vmem:[#allocation6 + $0x68] sm:$0xff]
        %v482 = vld [vmem:[#allocation6 + $0x70] sm:$0xff]
        %v483 = vld [vmem:[#allocation6 + $0x78] sm:$0xff]
        %v484 = vld [vmem:[%s2] sm:$0x1]
        %v486 = vperm.slane %v484, 0
        %488 = vmatpush.msra.mxu0 %v483
        %489 = vmatpush.msra.mxu0 %v482
        %490 = vmatpush.msra.mxu0 %v481
        %491 = vmatpush.msra.mxu0 %v480
        %492 = vmatpush.msra.mxu0 %v479
        %493 = vmatpush.msra.mxu0 %v478
        %494 = vmatpush.msra.mxu0 %v477
        %495 = vmatpush.msra.mxu0 %v476
        %496 = vmatpush.msra.mxu0 %v475
        %497 = vmatpush.msra.mxu0 %v474
        %498 = vmatpush.msra.mxu0 %v473
        %499 = vmatpush.msra.mxu0 %v472
        %500 = vmatpush.msra.mxu0 %v471
        %501 = vmatpush.msra.mxu0 %v470
        %502 = vmatpush.msra.mxu0 %v469
        %503 = vmatpush.msra.mxu0 %v468
        %504 = vmatmul.f32.gmra.mxu0 %v436
        %v505 = vpop.f32.mrf.mxu0
        %v506 = vadd.f32 %v486, %v505
        %507 = vmatmul.f32.gmra.mxu0 %v437
        %v508 = vpop.f32.mrf.mxu0
        %v509 = vadd.f32 %v486, %v508
        %510 = vmatmul.f32.gmra.mxu0 %v438
        %v511 = vpop.f32.mrf.mxu0
        %v512 = vadd.f32 %v486, %v511
        %513 = vmatmul.f32.gmra.mxu0 %v439
        %v514 = vpop.f32.mrf.mxu0
        %v515 = vadd.f32 %v486, %v514
        %516 = vmatmul.f32.gmra.mxu0 %v440
        %v517 = vpop.f32.mrf.mxu0
        %v518 = vadd.f32 %v486, %v517
        %519 = vmatmul.f32.gmra.mxu0 %v441
        %v520 = vpop.f32.mrf.mxu0
        %v521 = vadd.f32 %v486, %v520
        %522 = vmatmul.f32.gmra.mxu0 %v442
        %v523 = vpop.f32.mrf.mxu0
        %v524 = vadd.f32 %v486, %v523
        %525 = vmatmul.f32.gmra.mxu0 %v443
        %v526 = vpop.f32.mrf.mxu0
        %v527 = vadd.f32 %v486, %v526
        %528 = vmatmul.f32.gmra.mxu0 %v444
        %v529 = vpop.f32.mrf.mxu0
        %v530 = vadd.f32 %v486, %v529
        %531 = vmatmul.f32.gmra.mxu0 %v445
        %v532 = vpop.f32.mrf.mxu0
        %v533 = vadd.f32 %v486, %v532
        %534 = vmatmul.f32.gmra.mxu0 %v446
        %v535 = vpop.f32.mrf.mxu0
        %v536 = vadd.f32 %v486, %v535
        %537 = vmatmul.f32.gmra.mxu0 %v447
        %v538 = vpop.f32.mrf.mxu0
        %v539 = vadd.f32 %v486, %v538
        %540 = vmatmul.f32.gmra.mxu0 %v448
        %v541 = vpop.f32.mrf.mxu0
        %v542 = vadd.f32 %v486, %v541
        %543 = vmatmul.f32.gmra.mxu0 %v449
        %v544 = vpop.f32.mrf.mxu0
        %v545 = vadd.f32 %v486, %v544
        %546 = vmatmul.f32.gmra.mxu0 %v450
        %v547 = vpop.f32.mrf.mxu0
        %v548 = vadd.f32 %v486, %v547
        %549 = vmatmul.f32.gmra.mxu0 %v451
        %v550 = vpop.f32.mrf.mxu0
        %v551 = vadd.f32 %v486, %v550
        %552 = vmatmul.f32.gmra.mxu0 %v452
        %v553 = vpop.f32.mrf.mxu0
        %v554 = vadd.f32 %v486, %v553
        %555 = vmatmul.f32.gmra.mxu0 %v453
        %v556 = vpop.f32.mrf.mxu0
        %v557 = vadd.f32 %v486, %v556
        %558 = vmatmul.f32.gmra.mxu0 %v454
        %v559 = vpop.f32.mrf.mxu0
        %v560 = vadd.f32 %v486, %v559
        %561 = vmatmul.f32.gmra.mxu0 %v455
        %v562 = vpop.f32.mrf.mxu0
        %v563 = vadd.f32 %v486, %v562
        %564 = vmatmul.f32.gmra.mxu0 %v456
        %v565 = vpop.f32.mrf.mxu0
        %v566 = vadd.f32 %v486, %v565
        %567 = vmatmul.f32.gmra.mxu0 %v457
        %v568 = vpop.f32.mrf.mxu0
        %v569 = vadd.f32 %v486, %v568
        %570 = vmatmul.f32.gmra.mxu0 %v458
        %v571 = vpop.f32.mrf.mxu0
        %v572 = vadd.f32 %v486, %v571
        %573 = vmatmul.f32.gmra.mxu0 %v459
        %v574 = vpop.f32.mrf.mxu0
        %v575 = vadd.f32 %v486, %v574
        %576 = vmatmul.f32.gmra.mxu0 %v460
        %v577 = vpop.f32.mrf.mxu0
        %v578 = vadd.f32 %v486, %v577
        %579 = vmatmul.f32.gmra.mxu0 %v461
        %v580 = vpop.f32.mrf.mxu0
        %v581 = vadd.f32 %v486, %v580
        %582 = vmatmul.f32.gmra.mxu0 %v462
        %v583 = vpop.f32.mrf.mxu0
        %v584 = vadd.f32 %v486, %v583
        %585 = vmatmul.f32.gmra.mxu0 %v463
        %v586 = vpop.f32.mrf.mxu0
        %v587 = vadd.f32 %v486, %v586
        %588 = vmatmul.f32.gmra.mxu0 %v464
        %v589 = vpop.f32.mrf.mxu0
        %v590 = vadd.f32 %v486, %v589
        %591 = vmatmul.f32.gmra.mxu0 %v465
        %v592 = vpop.f32.mrf.mxu0
        %v593 = vadd.f32 %v486, %v592
        %594 = vmatmul.f32.gmra.mxu0 %v466
        %v595 = vpop.f32.mrf.mxu0
        %v596 = vadd.f32 %v486, %v595
        %597 = vmatmul.f32.gmra.mxu0 %v467
        %v598 = vpop.f32.mrf.mxu0
        %v599 = vadd.f32 %v486, %v598
        %600 = vdwg.mxu0
        %v601 = vmul.f32 %v506, 0.5
        %v602 = vmul.f32 %v509, 0.5
        %v603 = vmul.f32 %v512, 0.5
        %v604 = vmul.f32 %v515, 0.5
        %v605 = vmul.f32 %v518, 0.5
        %v606 = vmul.f32 %v521, 0.5
        %v607 = vmul.f32 %v524, 0.5
        %v608 = vmul.f32 %v527, 0.5
        %v609 = vmul.f32 %v530, 0.5
        %v610 = vmul.f32 %v533, 0.5
        %v611 = vmul.f32 %v536, 0.5
        %v612 = vmul.f32 %v539, 0.5
        %v613 = vmul.f32 %v542, 0.5
        %v614 = vmul.f32 %v545, 0.5
        %v615 = vmul.f32 %v548, 0.5
        %v616 = vmul.f32 %v551, 0.5
        %v617 = vmul.f32 %v554, 0.5
        %v618 = vmul.f32 %v557, 0.5
        %v619 = vmul.f32 %v560, 0.5
        %v620 = vmul.f32 %v563, 0.5
        %v621 = vmul.f32 %v566, 0.5
        %v622 = vmul.f32 %v569, 0.5
        %v623 = vmul.f32 %v572, 0.5
        %v624 = vmul.f32 %v575, 0.5
        %v625 = vmul.f32 %v578, 0.5
        %v626 = vmul.f32 %v581, 0.5
        %v627 = vmul.f32 %v584, 0.5
        %v628 = vmul.f32 %v587, 0.5
        %v629 = vmul.f32 %v590, 0.5
        %v630 = vmul.f32 %v593, 0.5
        %v631 = vmul.f32 %v596, 0.5
        %v632 = vmul.f32 %v599, 0.5
        %v633 = vmul.f32 %v506, 0.70710677
        %v634 = vmul.f32 %v509, 0.70710677
        %v635 = vmul.f32 %v512, 0.70710677
        %v636 = vmul.f32 %v515, 0.70710677
        %v637 = vmul.f32 %v518, 0.70710677
        %v638 = vmul.f32 %v521, 0.70710677
        %v639 = vmul.f32 %v524, 0.70710677
        %v640 = vmul.f32 %v527, 0.70710677
        %v641 = vmul.f32 %v530, 0.70710677
        %v642 = vmul.f32 %v533, 0.70710677
        %v643 = vmul.f32 %v536, 0.70710677
        %v644 = vmul.f32 %v539, 0.70710677
        %v645 = vmul.f32 %v542, 0.70710677
        %v646 = vmul.f32 %v545, 0.70710677
        %v647 = vmul.f32 %v548, 0.70710677
        %v648 = vmul.f32 %v551, 0.70710677
        %v649 = vmul.f32 %v554, 0.70710677
        %v650 = vmul.f32 %v557, 0.70710677
        %v651 = vmul.f32 %v560, 0.70710677
        %v652 = vmul.f32 %v563, 0.70710677
        %v653 = vmul.f32 %v566, 0.70710677
        %v654 = vmul.f32 %v569, 0.70710677
        %v655 = vmul.f32 %v572, 0.70710677
        %v656 = vmul.f32 %v575, 0.70710677
        %v657 = vmul.f32 %v578, 0.70710677
        %v658 = vmul.f32 %v581, 0.70710677
        %v659 = vmul.f32 %v584, 0.70710677
        %v660 = vmul.f32 %v587, 0.70710677
        %v661 = vmul.f32 %v590, 0.70710677
        %v662 = vmul.f32 %v593, 0.70710677
        %v663 = vmul.f32 %v596, 0.70710677
        %v664 = vmul.f32 %v599, 0.70710677
        %v665 = vmul.f32 %v633, %v633
        %v666 = vmin.f32 16.0, %v665
        %v667 = vmul.f32 %v666, 2.1237322e-06
        %v668 = vadd.f32 %v667, 0.00028619796
        %v669 = vmul.f32 %v666, %v668
        %v670 = vadd.f32 %v669, 0.0036580483
        %v671 = vmul.f32 %v666, %v670
        %v672 = vadd.f32 %v671, 0.05243302
        %v673 = vmul.f32 %v666, %v672
        %v674 = vadd.f32 %v673, 0.18741608
        %v675 = vmul.f32 %v666, %v674
        %v676 = vadd.f32 %v675, 1.1283791
        %v677 = vmul.f32 %v633, %v676
        %v678 = vmul.f32 %v666, 3.8918573e-05
        %v679 = vadd.f32 %v678, 0.001143296
        %v680 = vmul.f32 %v666, %v679
        %v681 = vadd.f32 %v680, 0.014752088
        %v682 = vmul.f32 %v666, %v681
        %v683 = vadd.f32 %v682, 0.112945676
        %v684 = vmul.f32 %v666, %v683
        %v685 = vadd.f32 %v684, 0.4994258
        %v686 = vmul.f32 %v666, %v685
        %v687 = vadd.f32 %v686, 1.0
        %v688 = vrcp.pop %v687
        %v689 = vmul.f32 %v687, %v688
        %v690 = vsub.f32 1.0, %v689
        %v691 = vmul.f32 %v688, %v690
        %v692 = vadd.f32 %v688, %v691
        %vm693 = vweird.f32 %v687
        %vm694 = vweird.f32 %v688
        %vm695 = vmor %vm693, %vm694
        %v696 = vsel %vm695, %v688, %v692
        %v697 = vand.u32 2147483647, %v687
        %vm698 = vcmp.eq.f32.partialorder %v697, 8.507059e+37
        %v699 = vand.u32 %v687, 2147483648
        %v700 = vor.u32 1.1754944e-38, %v699
        %v701 = vsel %vm698, %v700, %v696
        %v702 = vmul.f32 %v677, %v701
        %v703 = vmin.f32 %v702, 1.0
        %v704 = vmax.f32 %v703, -1.0
        %v705 = vmul.f32 %v634, %v634
        %v706 = vmin.f32 16.0, %v705
        %v707 = vmul.f32 %v706, 2.1237322e-06
        %v708 = vadd.f32 %v707, 0.00028619796
        %v709 = vmul.f32 %v706, %v708
        %v710 = vadd.f32 %v709, 0.0036580483
        %v711 = vmul.f32 %v706, %v710
        %v712 = vadd.f32 %v711, 0.05243302
        %v713 = vmul.f32 %v706, %v712
        %v714 = vadd.f32 %v713, 0.18741608
        %v715 = vmul.f32 %v706, %v714
        %v716 = vadd.f32 %v715, 1.1283791
        %v717 = vmul.f32 %v634, %v716
        %v718 = vmul.f32 %v706, 3.8918573e-05
        %v719 = vadd.f32 %v718, 0.001143296
        %v720 = vmul.f32 %v706, %v719
        %v721 = vadd.f32 %v720, 0.014752088
        %v722 = vmul.f32 %v706, %v721
        %v723 = vadd.f32 %v722, 0.112945676
        %v724 = vmul.f32 %v706, %v723
        %v725 = vadd.f32 %v724, 0.4994258
        %v726 = vmul.f32 %v706, %v725
        %v727 = vadd.f32 %v726, 1.0
        %v728 = vrcp.pop %v727
        %v729 = vmul.f32 %v727, %v728
        %v730 = vsub.f32 1.0, %v729
        %v731 = vmul.f32 %v728, %v730
        %v732 = vadd.f32 %v728, %v731
        %vm733 = vweird.f32 %v727
        %vm734 = vweird.f32 %v728
        %vm735 = vmor %vm733, %vm734
        %v736 = vsel %vm735, %v728, %v732
        %v737 = vand.u32 2147483647, %v727
        %vm738 = vcmp.eq.f32.partialorder %v737, 8.507059e+37
        %v739 = vand.u32 %v727, 2147483648
        %v740 = vor.u32 1.1754944e-38, %v739
        %v741 = vsel %vm738, %v740, %v736
        %v742 = vmul.f32 %v717, %v741
        %v743 = vmin.f32 %v742, 1.0
        %v744 = vmax.f32 %v743, -1.0
        %v745 = vmul.f32 %v635, %v635
        %v746 = vmin.f32 16.0, %v745
        %v747 = vmul.f32 %v746, 2.1237322e-06
        %v748 = vadd.f32 %v747, 0.00028619796
        %v749 = vmul.f32 %v746, %v748
        %v750 = vadd.f32 %v749, 0.0036580483
        %v751 = vmul.f32 %v746, %v750
        %v752 = vadd.f32 %v751, 0.05243302
        %v753 = vmul.f32 %v746, %v752
        %v754 = vadd.f32 %v753, 0.18741608
        %v755 = vmul.f32 %v746, %v754
        %v756 = vadd.f32 %v755, 1.1283791
        %v757 = vmul.f32 %v635, %v756
        %v758 = vmul.f32 %v746, 3.8918573e-05
        %v759 = vadd.f32 %v758, 0.001143296
        %v760 = vmul.f32 %v746, %v759
        %v761 = vadd.f32 %v760, 0.014752088
        %v762 = vmul.f32 %v746, %v761
        %v763 = vadd.f32 %v762, 0.112945676
        %v764 = vmul.f32 %v746, %v763
        %v765 = vadd.f32 %v764, 0.4994258
        %v766 = vmul.f32 %v746, %v765
        %v767 = vadd.f32 %v766, 1.0
        %v768 = vrcp.pop %v767
        %v769 = vmul.f32 %v767, %v768
        %v770 = vsub.f32 1.0, %v769
        %v771 = vmul.f32 %v768, %v770
        %v772 = vadd.f32 %v768, %v771
        %vm773 = vweird.f32 %v767
        %vm774 = vweird.f32 %v768
        %vm775 = vmor %vm773, %vm774
        %v776 = vsel %vm775, %v768, %v772
        %v777 = vand.u32 2147483647, %v767
        %vm778 = vcmp.eq.f32.partialorder %v777, 8.507059e+37
        %v779 = vand.u32 %v767, 2147483648
        %v780 = vor.u32 1.1754944e-38, %v779
        %v781 = vsel %vm778, %v780, %v776
        %v782 = vmul.f32 %v757, %v781
        %v783 = vmin.f32 %v782, 1.0
        %v784 = vmax.f32 %v783, -1.0
        %v785 = vmul.f32 %v636, %v636
        %v786 = vmin.f32 16.0, %v785
        %v787 = vmul.f32 %v786, 2.1237322e-06
        %v788 = vadd.f32 %v787, 0.00028619796
        %v789 = vmul.f32 %v786, %v788
        %v790 = vadd.f32 %v789, 0.0036580483
        %v791 = vmul.f32 %v786, %v790
        %v792 = vadd.f32 %v791, 0.05243302
        %v793 = vmul.f32 %v786, %v792
        %v794 = vadd.f32 %v793, 0.18741608
        %v795 = vmul.f32 %v786, %v794
        %v796 = vadd.f32 %v795, 1.1283791
        %v797 = vmul.f32 %v636, %v796
        %v798 = vmul.f32 %v786, 3.8918573e-05
        %v799 = vadd.f32 %v798, 0.001143296
        %v800 = vmul.f32 %v786, %v799
        %v801 = vadd.f32 %v800, 0.014752088
        %v802 = vmul.f32 %v786, %v801
        %v803 = vadd.f32 %v802, 0.112945676
        %v804 = vmul.f32 %v786, %v803
        %v805 = vadd.f32 %v804, 0.4994258
        %v806 = vmul.f32 %v786, %v805
        %v807 = vadd.f32 %v806, 1.0
        %v808 = vrcp.pop %v807
        %v809 = vmul.f32 %v807, %v808
        %v810 = vsub.f32 1.0, %v809
        %v811 = vmul.f32 %v808, %v810
        %v812 = vadd.f32 %v808, %v811
        %vm813 = vweird.f32 %v807
        %vm814 = vweird.f32 %v808
        %vm815 = vmor %vm813, %vm814
        %v816 = vsel %vm815, %v808, %v812
        %v817 = vand.u32 2147483647, %v807
        %vm818 = vcmp.eq.f32.partialorder %v817, 8.507059e+37
        %v819 = vand.u32 %v807, 2147483648
        %v820 = vor.u32 1.1754944e-38, %v819
        %v821 = vsel %vm818, %v820, %v816
        %v822 = vmul.f32 %v797, %v821
        %v823 = vmin.f32 %v822, 1.0
        %v824 = vmax.f32 %v823, -1.0
        %v825 = vmul.f32 %v637, %v637
        %v826 = vmin.f32 16.0, %v825
        %v827 = vmul.f32 %v826, 2.1237322e-06
        %v828 = vadd.f32 %v827, 0.00028619796
        %v829 = vmul.f32 %v826, %v828
        %v830 = vadd.f32 %v829, 0.0036580483
        %v831 = vmul.f32 %v826, %v830
        %v832 = vadd.f32 %v831, 0.05243302
        %v833 = vmul.f32 %v826, %v832
        %v834 = vadd.f32 %v833, 0.18741608
        %v835 = vmul.f32 %v826, %v834
        %v836 = vadd.f32 %v835, 1.1283791
        %v837 = vmul.f32 %v637, %v836
        %v838 = vmul.f32 %v826, 3.8918573e-05
        %v839 = vadd.f32 %v838, 0.001143296
        %v840 = vmul.f32 %v826, %v839
        %v841 = vadd.f32 %v840, 0.014752088
        %v842 = vmul.f32 %v826, %v841
        %v843 = vadd.f32 %v842, 0.112945676
        %v844 = vmul.f32 %v826, %v843
        %v845 = vadd.f32 %v844, 0.4994258
        %v846 = vmul.f32 %v826, %v845
        %v847 = vadd.f32 %v846, 1.0
        %v848 = vrcp.pop %v847
        %v849 = vmul.f32 %v847, %v848
        %v850 = vsub.f32 1.0, %v849
        %v851 = vmul.f32 %v848, %v850
        %v852 = vadd.f32 %v848, %v851
        %vm853 = vweird.f32 %v847
        %vm854 = vweird.f32 %v848
        %vm855 = vmor %vm853, %vm854
        %v856 = vsel %vm855, %v848, %v852
        %v857 = vand.u32 2147483647, %v847
        %vm858 = vcmp.eq.f32.partialorder %v857, 8.507059e+37
        %v859 = vand.u32 %v847, 2147483648
        %v860 = vor.u32 1.1754944e-38, %v859
        %v861 = vsel %vm858, %v860, %v856
        %v862 = vmul.f32 %v837, %v861
        %v863 = vmin.f32 %v862, 1.0
        %v864 = vmax.f32 %v863, -1.0
        %v865 = vmul.f32 %v638, %v638
        %v866 = vmin.f32 16.0, %v865
        %v867 = vmul.f32 %v866, 2.1237322e-06
        %v868 = vadd.f32 %v867, 0.00028619796
        %v869 = vmul.f32 %v866, %v868
        %v870 = vadd.f32 %v869, 0.0036580483
        %v871 = vmul.f32 %v866, %v870
        %v872 = vadd.f32 %v871, 0.05243302
        %v873 = vmul.f32 %v866, %v872
        %v874 = vadd.f32 %v873, 0.18741608
        %v875 = vmul.f32 %v866, %v874
        %v876 = vadd.f32 %v875, 1.1283791
        %v877 = vmul.f32 %v638, %v876
        %v878 = vmul.f32 %v866, 3.8918573e-05
        %v879 = vadd.f32 %v878, 0.001143296
        %v880 = vmul.f32 %v866, %v879
        %v881 = vadd.f32 %v880, 0.014752088
        %v882 = vmul.f32 %v866, %v881
        %v883 = vadd.f32 %v882, 0.112945676
        %v884 = vmul.f32 %v866, %v883
        %v885 = vadd.f32 %v884, 0.4994258
        %v886 = vmul.f32 %v866, %v885
        %v887 = vadd.f32 %v886, 1.0
        %v888 = vrcp.pop %v887
        %v889 = vmul.f32 %v887, %v888
        %v890 = vsub.f32 1.0, %v889
        %v891 = vmul.f32 %v888, %v890
        %v892 = vadd.f32 %v888, %v891
        %vm893 = vweird.f32 %v887
        %vm894 = vweird.f32 %v888
        %vm895 = vmor %vm893, %vm894
        %v896 = vsel %vm895, %v888, %v892
        %v897 = vand.u32 2147483647, %v887
        %vm898 = vcmp.eq.f32.partialorder %v897, 8.507059e+37
        %v899 = vand.u32 %v887, 2147483648
        %v900 = vor.u32 1.1754944e-38, %v899
        %v901 = vsel %vm898, %v900, %v896
        %v902 = vmul.f32 %v877, %v901
        %v903 = vmin.f32 %v902, 1.0
        %v904 = vmax.f32 %v903, -1.0
        %v905 = vmul.f32 %v639, %v639
        %v906 = vmin.f32 16.0, %v905
        %v907 = vmul.f32 %v906, 2.1237322e-06
        %v908 = vadd.f32 %v907, 0.00028619796
        %v909 = vmul.f32 %v906, %v908
        %v910 = vadd.f32 %v909, 0.0036580483
        %v911 = vmul.f32 %v906, %v910
        %v912 = vadd.f32 %v911, 0.05243302
        %v913 = vmul.f32 %v906, %v912
        %v914 = vadd.f32 %v913, 0.18741608
        %v915 = vmul.f32 %v906, %v914
        %v916 = vadd.f32 %v915, 1.1283791
        %v917 = vmul.f32 %v639, %v916
        %v918 = vmul.f32 %v906, 3.8918573e-05
        %v919 = vadd.f32 %v918, 0.001143296
        %v920 = vmul.f32 %v906, %v919
        %v921 = vadd.f32 %v920, 0.014752088
        %v922 = vmul.f32 %v906, %v921
        %v923 = vadd.f32 %v922, 0.112945676
        %v924 = vmul.f32 %v906, %v923
        %v925 = vadd.f32 %v924, 0.4994258
        %v926 = vmul.f32 %v906, %v925
        %v927 = vadd.f32 %v926, 1.0
        %v928 = vrcp.pop %v927
        %v929 = vmul.f32 %v927, %v928
        %v930 = vsub.f32 1.0, %v929
        %v931 = vmul.f32 %v928, %v930
        %v932 = vadd.f32 %v928, %v931
        %vm933 = vweird.f32 %v927
        %vm934 = vweird.f32 %v928
        %vm935 = vmor %vm933, %vm934
        %v936 = vsel %vm935, %v928, %v932
        %v937 = vand.u32 2147483647, %v927
        %vm938 = vcmp.eq.f32.partialorder %v937, 8.507059e+37
        %v939 = vand.u32 %v927, 2147483648
        %v940 = vor.u32 1.1754944e-38, %v939
        %v941 = vsel %vm938, %v940, %v936
        %v942 = vmul.f32 %v917, %v941
        %v943 = vmin.f32 %v942, 1.0
        %v944 = vmax.f32 %v943, -1.0
        %v945 = vmul.f32 %v640, %v640
        %v946 = vmin.f32 16.0, %v945
        %v947 = vmul.f32 %v946, 2.1237322e-06
        %v948 = vadd.f32 %v947, 0.00028619796
        %v949 = vmul.f32 %v946, %v948
        %v950 = vadd.f32 %v949, 0.0036580483
        %v951 = vmul.f32 %v946, %v950
        %v952 = vadd.f32 %v951, 0.05243302
        %v953 = vmul.f32 %v946, %v952
        %v954 = vadd.f32 %v953, 0.18741608
        %v955 = vmul.f32 %v946, %v954
        %v956 = vadd.f32 %v955, 1.1283791
        %v957 = vmul.f32 %v640, %v956
        %v958 = vmul.f32 %v946, 3.8918573e-05
        %v959 = vadd.f32 %v958, 0.001143296
        %v960 = vmul.f32 %v946, %v959
        %v961 = vadd.f32 %v960, 0.014752088
        %v962 = vmul.f32 %v946, %v961
        %v963 = vadd.f32 %v962, 0.112945676
        %v964 = vmul.f32 %v946, %v963
        %v965 = vadd.f32 %v964, 0.4994258
        %v966 = vmul.f32 %v946, %v965
        %v967 = vadd.f32 %v966, 1.0
        %v968 = vrcp.pop %v967
        %v969 = vmul.f32 %v967, %v968
        %v970 = vsub.f32 1.0, %v969
        %v971 = vmul.f32 %v968, %v970
        %v972 = vadd.f32 %v968, %v971
        %vm973 = vweird.f32 %v967
        %vm974 = vweird.f32 %v968
        %vm975 = vmor %vm973, %vm974
        %v976 = vsel %vm975, %v968, %v972
        %v977 = vand.u32 2147483647, %v967
        %vm978 = vcmp.eq.f32.partialorder %v977, 8.507059e+37
        %v979 = vand.u32 %v967, 2147483648
        %v980 = vor.u32 1.1754944e-38, %v979
        %v981 = vsel %vm978, %v980, %v976
        %v982 = vmul.f32 %v957, %v981
        %v983 = vmin.f32 %v982, 1.0
        %v984 = vmax.f32 %v983, -1.0
        %v985 = vmul.f32 %v641, %v641
        %v986 = vmin.f32 16.0, %v985
        %v987 = vmul.f32 %v986, 2.1237322e-06
        %v988 = vadd.f32 %v987, 0.00028619796
        %v989 = vmul.f32 %v986, %v988
        %v990 = vadd.f32 %v989, 0.0036580483
        %v991 = vmul.f32 %v986, %v990
        %v992 = vadd.f32 %v991, 0.05243302
        %v993 = vmul.f32 %v986, %v992
        %v994 = vadd.f32 %v993, 0.18741608
        %v995 = vmul.f32 %v986, %v994
        %v996 = vadd.f32 %v995, 1.1283791
        %v997 = vmul.f32 %v641, %v996
        %v998 = vmul.f32 %v986, 3.8918573e-05
        %v999 = vadd.f32 %v998, 0.001143296
        %v1000 = vmul.f32 %v986, %v999
        %v1001 = vadd.f32 %v1000, 0.014752088
        %v1002 = vmul.f32 %v986, %v1001
        %v1003 = vadd.f32 %v1002, 0.112945676
        %v1004 = vmul.f32 %v986, %v1003
        %v1005 = vadd.f32 %v1004, 0.4994258
        %v1006 = vmul.f32 %v986, %v1005
        %v1007 = vadd.f32 %v1006, 1.0
        %v1008 = vrcp.pop %v1007
        %v1009 = vmul.f32 %v1007, %v1008
        %v1010 = vsub.f32 1.0, %v1009
        %v1011 = vmul.f32 %v1008, %v1010
        %v1012 = vadd.f32 %v1008, %v1011
        %vm1013 = vweird.f32 %v1007
        %vm1014 = vweird.f32 %v1008
        %vm1015 = vmor %vm1013, %vm1014
        %v1016 = vsel %vm1015, %v1008, %v1012
        %v1017 = vand.u32 2147483647, %v1007
        %vm1018 = vcmp.eq.f32.partialorder %v1017, 8.507059e+37
        %v1019 = vand.u32 %v1007, 2147483648
        %v1020 = vor.u32 1.1754944e-38, %v1019
        %v1021 = vsel %vm1018, %v1020, %v1016
        %v1022 = vmul.f32 %v997, %v1021
        %v1023 = vmin.f32 %v1022, 1.0
        %v1024 = vmax.f32 %v1023, -1.0
        %v1025 = vmul.f32 %v642, %v642
        %v1026 = vmin.f32 16.0, %v1025
        %v1027 = vmul.f32 %v1026, 2.1237322e-06
        %v1028 = vadd.f32 %v1027, 0.00028619796
        %v1029 = vmul.f32 %v1026, %v1028
        %v1030 = vadd.f32 %v1029, 0.0036580483
        %v1031 = vmul.f32 %v1026, %v1030
        %v1032 = vadd.f32 %v1031, 0.05243302
        %v1033 = vmul.f32 %v1026, %v1032
        %v1034 = vadd.f32 %v1033, 0.18741608
        %v1035 = vmul.f32 %v1026, %v1034
        %v1036 = vadd.f32 %v1035, 1.1283791
        %v1037 = vmul.f32 %v642, %v1036
        %v1038 = vmul.f32 %v1026, 3.8918573e-05
        %v1039 = vadd.f32 %v1038, 0.001143296
        %v1040 = vmul.f32 %v1026, %v1039
        %v1041 = vadd.f32 %v1040, 0.014752088
        %v1042 = vmul.f32 %v1026, %v1041
        %v1043 = vadd.f32 %v1042, 0.112945676
        %v1044 = vmul.f32 %v1026, %v1043
        %v1045 = vadd.f32 %v1044, 0.4994258
        %v1046 = vmul.f32 %v1026, %v1045
        %v1047 = vadd.f32 %v1046, 1.0
        %v1048 = vrcp.pop %v1047
        %v1049 = vmul.f32 %v1047, %v1048
        %v1050 = vsub.f32 1.0, %v1049
        %v1051 = vmul.f32 %v1048, %v1050
        %v1052 = vadd.f32 %v1048, %v1051
        %vm1053 = vweird.f32 %v1047
        %vm1054 = vweird.f32 %v1048
        %vm1055 = vmor %vm1053, %vm1054
        %v1056 = vsel %vm1055, %v1048, %v1052
        %v1057 = vand.u32 2147483647, %v1047
        %vm1058 = vcmp.eq.f32.partialorder %v1057, 8.507059e+37
        %v1059 = vand.u32 %v1047, 2147483648
        %v1060 = vor.u32 1.1754944e-38, %v1059
        %v1061 = vsel %vm1058, %v1060, %v1056
        %v1062 = vmul.f32 %v1037, %v1061
        %v1063 = vmin.f32 %v1062, 1.0
        %v1064 = vmax.f32 %v1063, -1.0
        %v1065 = vmul.f32 %v643, %v643
        %v1066 = vmin.f32 16.0, %v1065
        %v1067 = vmul.f32 %v1066, 2.1237322e-06
        %v1068 = vadd.f32 %v1067, 0.00028619796
        %v1069 = vmul.f32 %v1066, %v1068
        %v1070 = vadd.f32 %v1069, 0.0036580483
        %v1071 = vmul.f32 %v1066, %v1070
        %v1072 = vadd.f32 %v1071, 0.05243302
        %v1073 = vmul.f32 %v1066, %v1072
        %v1074 = vadd.f32 %v1073, 0.18741608
        %v1075 = vmul.f32 %v1066, %v1074
        %v1076 = vadd.f32 %v1075, 1.1283791
        %v1077 = vmul.f32 %v643, %v1076
        %v1078 = vmul.f32 %v1066, 3.8918573e-05
        %v1079 = vadd.f32 %v1078, 0.001143296
        %v1080 = vmul.f32 %v1066, %v1079
        %v1081 = vadd.f32 %v1080, 0.014752088
        %v1082 = vmul.f32 %v1066, %v1081
        %v1083 = vadd.f32 %v1082, 0.112945676
        %v1084 = vmul.f32 %v1066, %v1083
        %v1085 = vadd.f32 %v1084, 0.4994258
        %v1086 = vmul.f32 %v1066, %v1085
        %v1087 = vadd.f32 %v1086, 1.0
        %v1088 = vrcp.pop %v1087
        %v1089 = vmul.f32 %v1087, %v1088
        %v1090 = vsub.f32 1.0, %v1089
        %v1091 = vmul.f32 %v1088, %v1090
        %v1092 = vadd.f32 %v1088, %v1091
        %vm1093 = vweird.f32 %v1087
        %vm1094 = vweird.f32 %v1088
        %vm1095 = vmor %vm1093, %vm1094
        %v1096 = vsel %vm1095, %v1088, %v1092
        %v1097 = vand.u32 2147483647, %v1087
        %vm1098 = vcmp.eq.f32.partialorder %v1097, 8.507059e+37
        %v1099 = vand.u32 %v1087, 2147483648
        %v1100 = vor.u32 1.1754944e-38, %v1099
        %v1101 = vsel %vm1098, %v1100, %v1096
        %v1102 = vmul.f32 %v1077, %v1101
        %v1103 = vmin.f32 %v1102, 1.0
        %v1104 = vmax.f32 %v1103, -1.0
        %v1105 = vmul.f32 %v644, %v644
        %v1106 = vmin.f32 16.0, %v1105
        %v1107 = vmul.f32 %v1106, 2.1237322e-06
        %v1108 = vadd.f32 %v1107, 0.00028619796
        %v1109 = vmul.f32 %v1106, %v1108
        %v1110 = vadd.f32 %v1109, 0.0036580483
        %v1111 = vmul.f32 %v1106, %v1110
        %v1112 = vadd.f32 %v1111, 0.05243302
        %v1113 = vmul.f32 %v1106, %v1112
        %v1114 = vadd.f32 %v1113, 0.18741608
        %v1115 = vmul.f32 %v1106, %v1114
        %v1116 = vadd.f32 %v1115, 1.1283791
        %v1117 = vmul.f32 %v644, %v1116
        %v1118 = vmul.f32 %v1106, 3.8918573e-05
        %v1119 = vadd.f32 %v1118, 0.001143296
        %v1120 = vmul.f32 %v1106, %v1119
        %v1121 = vadd.f32 %v1120, 0.014752088
        %v1122 = vmul.f32 %v1106, %v1121
        %v1123 = vadd.f32 %v1122, 0.112945676
        %v1124 = vmul.f32 %v1106, %v1123
        %v1125 = vadd.f32 %v1124, 0.4994258
        %v1126 = vmul.f32 %v1106, %v1125
        %v1127 = vadd.f32 %v1126, 1.0
        %v1128 = vrcp.pop %v1127
        %v1129 = vmul.f32 %v1127, %v1128
        %v1130 = vsub.f32 1.0, %v1129
        %v1131 = vmul.f32 %v1128, %v1130
        %v1132 = vadd.f32 %v1128, %v1131
        %vm1133 = vweird.f32 %v1127
        %vm1134 = vweird.f32 %v1128
        %vm1135 = vmor %vm1133, %vm1134
        %v1136 = vsel %vm1135, %v1128, %v1132
        %v1137 = vand.u32 2147483647, %v1127
        %vm1138 = vcmp.eq.f32.partialorder %v1137, 8.507059e+37
        %v1139 = vand.u32 %v1127, 2147483648
        %v1140 = vor.u32 1.1754944e-38, %v1139
        %v1141 = vsel %vm1138, %v1140, %v1136
        %v1142 = vmul.f32 %v1117, %v1141
        %v1143 = vmin.f32 %v1142, 1.0
        %v1144 = vmax.f32 %v1143, -1.0
        %v1145 = vmul.f32 %v645, %v645
        %v1146 = vmin.f32 16.0, %v1145
        %v1147 = vmul.f32 %v1146, 2.1237322e-06
        %v1148 = vadd.f32 %v1147, 0.00028619796
        %v1149 = vmul.f32 %v1146, %v1148
        %v1150 = vadd.f32 %v1149, 0.0036580483
        %v1151 = vmul.f32 %v1146, %v1150
        %v1152 = vadd.f32 %v1151, 0.05243302
        %v1153 = vmul.f32 %v1146, %v1152
        %v1154 = vadd.f32 %v1153, 0.18741608
        %v1155 = vmul.f32 %v1146, %v1154
        %v1156 = vadd.f32 %v1155, 1.1283791
        %v1157 = vmul.f32 %v645, %v1156
        %v1158 = vmul.f32 %v1146, 3.8918573e-05
        %v1159 = vadd.f32 %v1158, 0.001143296
        %v1160 = vmul.f32 %v1146, %v1159
        %v1161 = vadd.f32 %v1160, 0.014752088
        %v1162 = vmul.f32 %v1146, %v1161
        %v1163 = vadd.f32 %v1162, 0.112945676
        %v1164 = vmul.f32 %v1146, %v1163
        %v1165 = vadd.f32 %v1164, 0.4994258
        %v1166 = vmul.f32 %v1146, %v1165
        %v1167 = vadd.f32 %v1166, 1.0
        %v1168 = vrcp.pop %v1167
        %v1169 = vmul.f32 %v1167, %v1168
        %v1170 = vsub.f32 1.0, %v1169
        %v1171 = vmul.f32 %v1168, %v1170
        %v1172 = vadd.f32 %v1168, %v1171
        %vm1173 = vweird.f32 %v1167
        %vm1174 = vweird.f32 %v1168
        %vm1175 = vmor %vm1173, %vm1174
        %v1176 = vsel %vm1175, %v1168, %v1172
        %v1177 = vand.u32 2147483647, %v1167
        %vm1178 = vcmp.eq.f32.partialorder %v1177, 8.507059e+37
        %v1179 = vand.u32 %v1167, 2147483648
        %v1180 = vor.u32 1.1754944e-38, %v1179
        %v1181 = vsel %vm1178, %v1180, %v1176
        %v1182 = vmul.f32 %v1157, %v1181
        %v1183 = vmin.f32 %v1182, 1.0
        %v1184 = vmax.f32 %v1183, -1.0
        %v1185 = vmul.f32 %v646, %v646
        %v1186 = vmin.f32 16.0, %v1185
        %v1187 = vmul.f32 %v1186, 2.1237322e-06
        %v1188 = vadd.f32 %v1187, 0.00028619796
        %v1189 = vmul.f32 %v1186, %v1188
        %v1190 = vadd.f32 %v1189, 0.0036580483
        %v1191 = vmul.f32 %v1186, %v1190
        %v1192 = vadd.f32 %v1191, 0.05243302
        %v1193 = vmul.f32 %v1186, %v1192
        %v1194 = vadd.f32 %v1193, 0.18741608
        %v1195 = vmul.f32 %v1186, %v1194
        %v1196 = vadd.f32 %v1195, 1.1283791
        %v1197 = vmul.f32 %v646, %v1196
        %v1198 = vmul.f32 %v1186, 3.8918573e-05
        %v1199 = vadd.f32 %v1198, 0.001143296
        %v1200 = vmul.f32 %v1186, %v1199
        %v1201 = vadd.f32 %v1200, 0.014752088
        %v1202 = vmul.f32 %v1186, %v1201
        %v1203 = vadd.f32 %v1202, 0.112945676
        %v1204 = vmul.f32 %v1186, %v1203
        %v1205 = vadd.f32 %v1204, 0.4994258
        %v1206 = vmul.f32 %v1186, %v1205
        %v1207 = vadd.f32 %v1206, 1.0
        %v1208 = vrcp.pop %v1207
        %v1209 = vmul.f32 %v1207, %v1208
        %v1210 = vsub.f32 1.0, %v1209
        %v1211 = vmul.f32 %v1208, %v1210
        %v1212 = vadd.f32 %v1208, %v1211
        %vm1213 = vweird.f32 %v1207
        %vm1214 = vweird.f32 %v1208
        %vm1215 = vmor %vm1213, %vm1214
        %v1216 = vsel %vm1215, %v1208, %v1212
        %v1217 = vand.u32 2147483647, %v1207
        %vm1218 = vcmp.eq.f32.partialorder %v1217, 8.507059e+37
        %v1219 = vand.u32 %v1207, 2147483648
        %v1220 = vor.u32 1.1754944e-38, %v1219
        %v1221 = vsel %vm1218, %v1220, %v1216
        %v1222 = vmul.f32 %v1197, %v1221
        %v1223 = vmin.f32 %v1222, 1.0
        %v1224 = vmax.f32 %v1223, -1.0
        %v1225 = vmul.f32 %v647, %v647
        %v1226 = vmin.f32 16.0, %v1225
        %v1227 = vmul.f32 %v1226, 2.1237322e-06
        %v1228 = vadd.f32 %v1227, 0.00028619796
        %v1229 = vmul.f32 %v1226, %v1228
        %v1230 = vadd.f32 %v1229, 0.0036580483
        %v1231 = vmul.f32 %v1226, %v1230
        %v1232 = vadd.f32 %v1231, 0.05243302
        %v1233 = vmul.f32 %v1226, %v1232
        %v1234 = vadd.f32 %v1233, 0.18741608
        %v1235 = vmul.f32 %v1226, %v1234
        %v1236 = vadd.f32 %v1235, 1.1283791
        %v1237 = vmul.f32 %v647, %v1236
        %v1238 = vmul.f32 %v1226, 3.8918573e-05
        %v1239 = vadd.f32 %v1238, 0.001143296
        %v1240 = vmul.f32 %v1226, %v1239
        %v1241 = vadd.f32 %v1240, 0.014752088
        %v1242 = vmul.f32 %v1226, %v1241
        %v1243 = vadd.f32 %v1242, 0.112945676
        %v1244 = vmul.f32 %v1226, %v1243
        %v1245 = vadd.f32 %v1244, 0.4994258
        %v1246 = vmul.f32 %v1226, %v1245
        %v1247 = vadd.f32 %v1246, 1.0
        %v1248 = vrcp.pop %v1247
        %v1249 = vmul.f32 %v1247, %v1248
        %v1250 = vsub.f32 1.0, %v1249
        %v1251 = vmul.f32 %v1248, %v1250
        %v1252 = vadd.f32 %v1248, %v1251
        %vm1253 = vweird.f32 %v1247
        %vm1254 = vweird.f32 %v1248
        %vm1255 = vmor %vm1253, %vm1254
        %v1256 = vsel %vm1255, %v1248, %v1252
        %v1257 = vand.u32 2147483647, %v1247
        %vm1258 = vcmp.eq.f32.partialorder %v1257, 8.507059e+37
        %v1259 = vand.u32 %v1247, 2147483648
        %v1260 = vor.u32 1.1754944e-38, %v1259
        %v1261 = vsel %vm1258, %v1260, %v1256
        %v1262 = vmul.f32 %v1237, %v1261
        %v1263 = vmin.f32 %v1262, 1.0
        %v1264 = vmax.f32 %v1263, -1.0
        %v1265 = vmul.f32 %v648, %v648
        %v1266 = vmin.f32 16.0, %v1265
        %v1267 = vmul.f32 %v1266, 2.1237322e-06
        %v1268 = vadd.f32 %v1267, 0.00028619796
        %v1269 = vmul.f32 %v1266, %v1268
        %v1270 = vadd.f32 %v1269, 0.0036580483
        %v1271 = vmul.f32 %v1266, %v1270
        %v1272 = vadd.f32 %v1271, 0.05243302
        %v1273 = vmul.f32 %v1266, %v1272
        %v1274 = vadd.f32 %v1273, 0.18741608
        %v1275 = vmul.f32 %v1266, %v1274
        %v1276 = vadd.f32 %v1275, 1.1283791
        %v1277 = vmul.f32 %v648, %v1276
        %v1278 = vmul.f32 %v1266, 3.8918573e-05
        %v1279 = vadd.f32 %v1278, 0.001143296
        %v1280 = vmul.f32 %v1266, %v1279
        %v1281 = vadd.f32 %v1280, 0.014752088
        %v1282 = vmul.f32 %v1266, %v1281
        %v1283 = vadd.f32 %v1282, 0.112945676
        %v1284 = vmul.f32 %v1266, %v1283
        %v1285 = vadd.f32 %v1284, 0.4994258
        %v1286 = vmul.f32 %v1266, %v1285
        %v1287 = vadd.f32 %v1286, 1.0
        %v1288 = vrcp.pop %v1287
        %v1289 = vmul.f32 %v1287, %v1288
        %v1290 = vsub.f32 1.0, %v1289
        %v1291 = vmul.f32 %v1288, %v1290
        %v1292 = vadd.f32 %v1288, %v1291
        %vm1293 = vweird.f32 %v1287
        %vm1294 = vweird.f32 %v1288
        %vm1295 = vmor %vm1293, %vm1294
        %v1296 = vsel %vm1295, %v1288, %v1292
        %v1297 = vand.u32 2147483647, %v1287
        %vm1298 = vcmp.eq.f32.partialorder %v1297, 8.507059e+37
        %v1299 = vand.u32 %v1287, 2147483648
        %v1300 = vor.u32 1.1754944e-38, %v1299
        %v1301 = vsel %vm1298, %v1300, %v1296
        %v1302 = vmul.f32 %v1277, %v1301
        %v1303 = vmin.f32 %v1302, 1.0
        %v1304 = vmax.f32 %v1303, -1.0
        %v1305 = vmul.f32 %v649, %v649
        %v1306 = vmin.f32 16.0, %v1305
        %v1307 = vmul.f32 %v1306, 2.1237322e-06
        %v1308 = vadd.f32 %v1307, 0.00028619796
        %v1309 = vmul.f32 %v1306, %v1308
        %v1310 = vadd.f32 %v1309, 0.0036580483
        %v1311 = vmul.f32 %v1306, %v1310
        %v1312 = vadd.f32 %v1311, 0.05243302
        %v1313 = vmul.f32 %v1306, %v1312
        %v1314 = vadd.f32 %v1313, 0.18741608
        %v1315 = vmul.f32 %v1306, %v1314
        %v1316 = vadd.f32 %v1315, 1.1283791
        %v1317 = vmul.f32 %v649, %v1316
        %v1318 = vmul.f32 %v1306, 3.8918573e-05
        %v1319 = vadd.f32 %v1318, 0.001143296
        %v1320 = vmul.f32 %v1306, %v1319
        %v1321 = vadd.f32 %v1320, 0.014752088
        %v1322 = vmul.f32 %v1306, %v1321
        %v1323 = vadd.f32 %v1322, 0.112945676
        %v1324 = vmul.f32 %v1306, %v1323
        %v1325 = vadd.f32 %v1324, 0.4994258
        %v1326 = vmul.f32 %v1306, %v1325
        %v1327 = vadd.f32 %v1326, 1.0
        %v1328 = vrcp.pop %v1327
        %v1329 = vmul.f32 %v1327, %v1328
        %v1330 = vsub.f32 1.0, %v1329
        %v1331 = vmul.f32 %v1328, %v1330
        %v1332 = vadd.f32 %v1328, %v1331
        %vm1333 = vweird.f32 %v1327
        %vm1334 = vweird.f32 %v1328
        %vm1335 = vmor %vm1333, %vm1334
        %v1336 = vsel %vm1335, %v1328, %v1332
        %v1337 = vand.u32 2147483647, %v1327
        %vm1338 = vcmp.eq.f32.partialorder %v1337, 8.507059e+37
        %v1339 = vand.u32 %v1327, 2147483648
        %v1340 = vor.u32 1.1754944e-38, %v1339
        %v1341 = vsel %vm1338, %v1340, %v1336
        %v1342 = vmul.f32 %v1317, %v1341
        %v1343 = vmin.f32 %v1342, 1.0
        %v1344 = vmax.f32 %v1343, -1.0
        %v1345 = vmul.f32 %v650, %v650
        %v1346 = vmin.f32 16.0, %v1345
        %v1347 = vmul.f32 %v1346, 2.1237322e-06
        %v1348 = vadd.f32 %v1347, 0.00028619796
        %v1349 = vmul.f32 %v1346, %v1348
        %v1350 = vadd.f32 %v1349, 0.0036580483
        %v1351 = vmul.f32 %v1346, %v1350
        %v1352 = vadd.f32 %v1351, 0.05243302
        %v1353 = vmul.f32 %v1346, %v1352
        %v1354 = vadd.f32 %v1353, 0.18741608
        %v1355 = vmul.f32 %v1346, %v1354
        %v1356 = vadd.f32 %v1355, 1.1283791
        %v1357 = vmul.f32 %v650, %v1356
        %v1358 = vmul.f32 %v1346, 3.8918573e-05
        %v1359 = vadd.f32 %v1358, 0.001143296
        %v1360 = vmul.f32 %v1346, %v1359
        %v1361 = vadd.f32 %v1360, 0.014752088
        %v1362 = vmul.f32 %v1346, %v1361
        %v1363 = vadd.f32 %v1362, 0.112945676
        %v1364 = vmul.f32 %v1346, %v1363
        %v1365 = vadd.f32 %v1364, 0.4994258
        %v1366 = vmul.f32 %v1346, %v1365
        %v1367 = vadd.f32 %v1366, 1.0
        %v1368 = vrcp.pop %v1367
        %v1369 = vmul.f32 %v1367, %v1368
        %v1370 = vsub.f32 1.0, %v1369
        %v1371 = vmul.f32 %v1368, %v1370
        %v1372 = vadd.f32 %v1368, %v1371
        %vm1373 = vweird.f32 %v1367
        %vm1374 = vweird.f32 %v1368
        %vm1375 = vmor %vm1373, %vm1374
        %v1376 = vsel %vm1375, %v1368, %v1372
        %v1377 = vand.u32 2147483647, %v1367
        %vm1378 = vcmp.eq.f32.partialorder %v1377, 8.507059e+37
        %v1379 = vand.u32 %v1367, 2147483648
        %v1380 = vor.u32 1.1754944e-38, %v1379
        %v1381 = vsel %vm1378, %v1380, %v1376
        %v1382 = vmul.f32 %v1357, %v1381
        %v1383 = vmin.f32 %v1382, 1.0
        %v1384 = vmax.f32 %v1383, -1.0
        %v1385 = vmul.f32 %v651, %v651
        %v1386 = vmin.f32 16.0, %v1385
        %v1387 = vmul.f32 %v1386, 2.1237322e-06
        %v1388 = vadd.f32 %v1387, 0.00028619796
        %v1389 = vmul.f32 %v1386, %v1388
        %v1390 = vadd.f32 %v1389, 0.0036580483
        %v1391 = vmul.f32 %v1386, %v1390
        %v1392 = vadd.f32 %v1391, 0.05243302
        %v1393 = vmul.f32 %v1386, %v1392
        %v1394 = vadd.f32 %v1393, 0.18741608
        %v1395 = vmul.f32 %v1386, %v1394
        %v1396 = vadd.f32 %v1395, 1.1283791
        %v1397 = vmul.f32 %v651, %v1396
        %v1398 = vmul.f32 %v1386, 3.8918573e-05
        %v1399 = vadd.f32 %v1398, 0.001143296
        %v1400 = vmul.f32 %v1386, %v1399
        %v1401 = vadd.f32 %v1400, 0.014752088
        %v1402 = vmul.f32 %v1386, %v1401
        %v1403 = vadd.f32 %v1402, 0.112945676
        %v1404 = vmul.f32 %v1386, %v1403
        %v1405 = vadd.f32 %v1404, 0.4994258
        %v1406 = vmul.f32 %v1386, %v1405
        %v1407 = vadd.f32 %v1406, 1.0
        %v1408 = vrcp.pop %v1407
        %v1409 = vmul.f32 %v1407, %v1408
        %v1410 = vsub.f32 1.0, %v1409
        %v1411 = vmul.f32 %v1408, %v1410
        %v1412 = vadd.f32 %v1408, %v1411
        %vm1413 = vweird.f32 %v1407
        %vm1414 = vweird.f32 %v1408
        %vm1415 = vmor %vm1413, %vm1414
        %v1416 = vsel %vm1415, %v1408, %v1412
        %v1417 = vand.u32 2147483647, %v1407
        %vm1418 = vcmp.eq.f32.partialorder %v1417, 8.507059e+37
        %v1419 = vand.u32 %v1407, 2147483648
        %v1420 = vor.u32 1.1754944e-38, %v1419
        %v1421 = vsel %vm1418, %v1420, %v1416
        %v1422 = vmul.f32 %v1397, %v1421
        %v1423 = vmin.f32 %v1422, 1.0
        %v1424 = vmax.f32 %v1423, -1.0
        %v1425 = vmul.f32 %v652, %v652
        %v1426 = vmin.f32 16.0, %v1425
        %v1427 = vmul.f32 %v1426, 2.1237322e-06
        %v1428 = vadd.f32 %v1427, 0.00028619796
        %v1429 = vmul.f32 %v1426, %v1428
        %v1430 = vadd.f32 %v1429, 0.0036580483
        %v1431 = vmul.f32 %v1426, %v1430
        %v1432 = vadd.f32 %v1431, 0.05243302
        %v1433 = vmul.f32 %v1426, %v1432
        %v1434 = vadd.f32 %v1433, 0.18741608
        %v1435 = vmul.f32 %v1426, %v1434
        %v1436 = vadd.f32 %v1435, 1.1283791
        %v1437 = vmul.f32 %v652, %v1436
        %v1438 = vmul.f32 %v1426, 3.8918573e-05
        %v1439 = vadd.f32 %v1438, 0.001143296
        %v1440 = vmul.f32 %v1426, %v1439
        %v1441 = vadd.f32 %v1440, 0.014752088
        %v1442 = vmul.f32 %v1426, %v1441
        %v1443 = vadd.f32 %v1442, 0.112945676
        %v1444 = vmul.f32 %v1426, %v1443
        %v1445 = vadd.f32 %v1444, 0.4994258
        %v1446 = vmul.f32 %v1426, %v1445
        %v1447 = vadd.f32 %v1446, 1.0
        %v1448 = vrcp.pop %v1447
        %v1449 = vmul.f32 %v1447, %v1448
        %v1450 = vsub.f32 1.0, %v1449
        %v1451 = vmul.f32 %v1448, %v1450
        %v1452 = vadd.f32 %v1448, %v1451
        %vm1453 = vweird.f32 %v1447
        %vm1454 = vweird.f32 %v1448
        %vm1455 = vmor %vm1453, %vm1454
        %v1456 = vsel %vm1455, %v1448, %v1452
        %v1457 = vand.u32 2147483647, %v1447
        %vm1458 = vcmp.eq.f32.partialorder %v1457, 8.507059e+37
        %v1459 = vand.u32 %v1447, 2147483648
        %v1460 = vor.u32 1.1754944e-38, %v1459
        %v1461 = vsel %vm1458, %v1460, %v1456
        %v1462 = vmul.f32 %v1437, %v1461
        %v1463 = vmin.f32 %v1462, 1.0
        %v1464 = vmax.f32 %v1463, -1.0
        %v1465 = vmul.f32 %v653, %v653
        %v1466 = vmin.f32 16.0, %v1465
        %v1467 = vmul.f32 %v1466, 2.1237322e-06
        %v1468 = vadd.f32 %v1467, 0.00028619796
        %v1469 = vmul.f32 %v1466, %v1468
        %v1470 = vadd.f32 %v1469, 0.0036580483
        %v1471 = vmul.f32 %v1466, %v1470
        %v1472 = vadd.f32 %v1471, 0.05243302
        %v1473 = vmul.f32 %v1466, %v1472
        %v1474 = vadd.f32 %v1473, 0.18741608
        %v1475 = vmul.f32 %v1466, %v1474
        %v1476 = vadd.f32 %v1475, 1.1283791
        %v1477 = vmul.f32 %v653, %v1476
        %v1478 = vmul.f32 %v1466, 3.8918573e-05
        %v1479 = vadd.f32 %v1478, 0.001143296
        %v1480 = vmul.f32 %v1466, %v1479
        %v1481 = vadd.f32 %v1480, 0.014752088
        %v1482 = vmul.f32 %v1466, %v1481
        %v1483 = vadd.f32 %v1482, 0.112945676
        %v1484 = vmul.f32 %v1466, %v1483
        %v1485 = vadd.f32 %v1484, 0.4994258
        %v1486 = vmul.f32 %v1466, %v1485
        %v1487 = vadd.f32 %v1486, 1.0
        %v1488 = vrcp.pop %v1487
        %v1489 = vmul.f32 %v1487, %v1488
        %v1490 = vsub.f32 1.0, %v1489
        %v1491 = vmul.f32 %v1488, %v1490
        %v1492 = vadd.f32 %v1488, %v1491
        %vm1493 = vweird.f32 %v1487
        %vm1494 = vweird.f32 %v1488
        %vm1495 = vmor %vm1493, %vm1494
        %v1496 = vsel %vm1495, %v1488, %v1492
        %v1497 = vand.u32 2147483647, %v1487
        %vm1498 = vcmp.eq.f32.partialorder %v1497, 8.507059e+37
        %v1499 = vand.u32 %v1487, 2147483648
        %v1500 = vor.u32 1.1754944e-38, %v1499
        %v1501 = vsel %vm1498, %v1500, %v1496
        %v1502 = vmul.f32 %v1477, %v1501
        %v1503 = vmin.f32 %v1502, 1.0
        %v1504 = vmax.f32 %v1503, -1.0
        %v1505 = vmul.f32 %v654, %v654
        %v1506 = vmin.f32 16.0, %v1505
        %v1507 = vmul.f32 %v1506, 2.1237322e-06
        %v1508 = vadd.f32 %v1507, 0.00028619796
        %v1509 = vmul.f32 %v1506, %v1508
        %v1510 = vadd.f32 %v1509, 0.0036580483
        %v1511 = vmul.f32 %v1506, %v1510
        %v1512 = vadd.f32 %v1511, 0.05243302
        %v1513 = vmul.f32 %v1506, %v1512
        %v1514 = vadd.f32 %v1513, 0.18741608
        %v1515 = vmul.f32 %v1506, %v1514
        %v1516 = vadd.f32 %v1515, 1.1283791
        %v1517 = vmul.f32 %v654, %v1516
        %v1518 = vmul.f32 %v1506, 3.8918573e-05
        %v1519 = vadd.f32 %v1518, 0.001143296
        %v1520 = vmul.f32 %v1506, %v1519
        %v1521 = vadd.f32 %v1520, 0.014752088
        %v1522 = vmul.f32 %v1506, %v1521
        %v1523 = vadd.f32 %v1522, 0.112945676
        %v1524 = vmul.f32 %v1506, %v1523
        %v1525 = vadd.f32 %v1524, 0.4994258
        %v1526 = vmul.f32 %v1506, %v1525
        %v1527 = vadd.f32 %v1526, 1.0
        %v1528 = vrcp.pop %v1527
        %v1529 = vmul.f32 %v1527, %v1528
        %v1530 = vsub.f32 1.0, %v1529
        %v1531 = vmul.f32 %v1528, %v1530
        %v1532 = vadd.f32 %v1528, %v1531
        %vm1533 = vweird.f32 %v1527
        %vm1534 = vweird.f32 %v1528
        %vm1535 = vmor %vm1533, %vm1534
        %v1536 = vsel %vm1535, %v1528, %v1532
        %v1537 = vand.u32 2147483647, %v1527
        %vm1538 = vcmp.eq.f32.partialorder %v1537, 8.507059e+37
        %v1539 = vand.u32 %v1527, 2147483648
        %v1540 = vor.u32 1.1754944e-38, %v1539
        %v1541 = vsel %vm1538, %v1540, %v1536
        %v1542 = vmul.f32 %v1517, %v1541
        %v1543 = vmin.f32 %v1542, 1.0
        %v1544 = vmax.f32 %v1543, -1.0
        %v1545 = vmul.f32 %v655, %v655
        %v1546 = vmin.f32 16.0, %v1545
        %v1547 = vmul.f32 %v1546, 2.1237322e-06
        %v1548 = vadd.f32 %v1547, 0.00028619796
        %v1549 = vmul.f32 %v1546, %v1548
        %v1550 = vadd.f32 %v1549, 0.0036580483
        %v1551 = vmul.f32 %v1546, %v1550
        %v1552 = vadd.f32 %v1551, 0.05243302
        %v1553 = vmul.f32 %v1546, %v1552
        %v1554 = vadd.f32 %v1553, 0.18741608
        %v1555 = vmul.f32 %v1546, %v1554
        %v1556 = vadd.f32 %v1555, 1.1283791
        %v1557 = vmul.f32 %v655, %v1556
        %v1558 = vmul.f32 %v1546, 3.8918573e-05
        %v1559 = vadd.f32 %v1558, 0.001143296
        %v1560 = vmul.f32 %v1546, %v1559
        %v1561 = vadd.f32 %v1560, 0.014752088
        %v1562 = vmul.f32 %v1546, %v1561
        %v1563 = vadd.f32 %v1562, 0.112945676
        %v1564 = vmul.f32 %v1546, %v1563
        %v1565 = vadd.f32 %v1564, 0.4994258
        %v1566 = vmul.f32 %v1546, %v1565
        %v1567 = vadd.f32 %v1566, 1.0
        %v1568 = vrcp.pop %v1567
        %v1569 = vmul.f32 %v1567, %v1568
        %v1570 = vsub.f32 1.0, %v1569
        %v1571 = vmul.f32 %v1568, %v1570
        %v1572 = vadd.f32 %v1568, %v1571
        %vm1573 = vweird.f32 %v1567
        %vm1574 = vweird.f32 %v1568
        %vm1575 = vmor %vm1573, %vm1574
        %v1576 = vsel %vm1575, %v1568, %v1572
        %v1577 = vand.u32 2147483647, %v1567
        %vm1578 = vcmp.eq.f32.partialorder %v1577, 8.507059e+37
        %v1579 = vand.u32 %v1567, 2147483648
        %v1580 = vor.u32 1.1754944e-38, %v1579
        %v1581 = vsel %vm1578, %v1580, %v1576
        %v1582 = vmul.f32 %v1557, %v1581
        %v1583 = vmin.f32 %v1582, 1.0
        %v1584 = vmax.f32 %v1583, -1.0
        %v1585 = vmul.f32 %v656, %v656
        %v1586 = vmin.f32 16.0, %v1585
        %v1587 = vmul.f32 %v1586, 2.1237322e-06
        %v1588 = vadd.f32 %v1587, 0.00028619796
        %v1589 = vmul.f32 %v1586, %v1588
        %v1590 = vadd.f32 %v1589, 0.0036580483
        %v1591 = vmul.f32 %v1586, %v1590
        %v1592 = vadd.f32 %v1591, 0.05243302
        %v1593 = vmul.f32 %v1586, %v1592
        %v1594 = vadd.f32 %v1593, 0.18741608
        %v1595 = vmul.f32 %v1586, %v1594
        %v1596 = vadd.f32 %v1595, 1.1283791
        %v1597 = vmul.f32 %v656, %v1596
        %v1598 = vmul.f32 %v1586, 3.8918573e-05
        %v1599 = vadd.f32 %v1598, 0.001143296
        %v1600 = vmul.f32 %v1586, %v1599
        %v1601 = vadd.f32 %v1600, 0.014752088
        %v1602 = vmul.f32 %v1586, %v1601
        %v1603 = vadd.f32 %v1602, 0.112945676
        %v1604 = vmul.f32 %v1586, %v1603
        %v1605 = vadd.f32 %v1604, 0.4994258
        %v1606 = vmul.f32 %v1586, %v1605
        %v1607 = vadd.f32 %v1606, 1.0
        %v1608 = vrcp.pop %v1607
        %v1609 = vmul.f32 %v1607, %v1608
        %v1610 = vsub.f32 1.0, %v1609
        %v1611 = vmul.f32 %v1608, %v1610
        %v1612 = vadd.f32 %v1608, %v1611
        %vm1613 = vweird.f32 %v1607
        %vm1614 = vweird.f32 %v1608
        %vm1615 = vmor %vm1613, %vm1614
        %v1616 = vsel %vm1615, %v1608, %v1612
        %v1617 = vand.u32 2147483647, %v1607
        %vm1618 = vcmp.eq.f32.partialorder %v1617, 8.507059e+37
        %v1619 = vand.u32 %v1607, 2147483648
        %v1620 = vor.u32 1.1754944e-38, %v1619
        %v1621 = vsel %vm1618, %v1620, %v1616
        %v1622 = vmul.f32 %v1597, %v1621
        %v1623 = vmin.f32 %v1622, 1.0
        %v1624 = vmax.f32 %v1623, -1.0
        %v1625 = vmul.f32 %v657, %v657
        %v1626 = vmin.f32 16.0, %v1625
        %v1627 = vmul.f32 %v1626, 2.1237322e-06
        %v1628 = vadd.f32 %v1627, 0.00028619796
        %v1629 = vmul.f32 %v1626, %v1628
        %v1630 = vadd.f32 %v1629, 0.0036580483
        %v1631 = vmul.f32 %v1626, %v1630
        %v1632 = vadd.f32 %v1631, 0.05243302
        %v1633 = vmul.f32 %v1626, %v1632
        %v1634 = vadd.f32 %v1633, 0.18741608
        %v1635 = vmul.f32 %v1626, %v1634
        %v1636 = vadd.f32 %v1635, 1.1283791
        %v1637 = vmul.f32 %v657, %v1636
        %v1638 = vmul.f32 %v1626, 3.8918573e-05
        %v1639 = vadd.f32 %v1638, 0.001143296
        %v1640 = vmul.f32 %v1626, %v1639
        %v1641 = vadd.f32 %v1640, 0.014752088
        %v1642 = vmul.f32 %v1626, %v1641
        %v1643 = vadd.f32 %v1642, 0.112945676
        %v1644 = vmul.f32 %v1626, %v1643
        %v1645 = vadd.f32 %v1644, 0.4994258
        %v1646 = vmul.f32 %v1626, %v1645
        %v1647 = vadd.f32 %v1646, 1.0
        %v1648 = vrcp.pop %v1647
        %v1649 = vmul.f32 %v1647, %v1648
        %v1650 = vsub.f32 1.0, %v1649
        %v1651 = vmul.f32 %v1648, %v1650
        %v1652 = vadd.f32 %v1648, %v1651
        %vm1653 = vweird.f32 %v1647
        %vm1654 = vweird.f32 %v1648
        %vm1655 = vmor %vm1653, %vm1654
        %v1656 = vsel %vm1655, %v1648, %v1652
        %v1657 = vand.u32 2147483647, %v1647
        %vm1658 = vcmp.eq.f32.partialorder %v1657, 8.507059e+37
        %v1659 = vand.u32 %v1647, 2147483648
        %v1660 = vor.u32 1.1754944e-38, %v1659
        %v1661 = vsel %vm1658, %v1660, %v1656
        %v1662 = vmul.f32 %v1637, %v1661
        %v1663 = vmin.f32 %v1662, 1.0
        %v1664 = vmax.f32 %v1663, -1.0
        %v1665 = vmul.f32 %v658, %v658
        %v1666 = vmin.f32 16.0, %v1665
        %v1667 = vmul.f32 %v1666, 2.1237322e-06
        %v1668 = vadd.f32 %v1667, 0.00028619796
        %v1669 = vmul.f32 %v1666, %v1668
        %v1670 = vadd.f32 %v1669, 0.0036580483
        %v1671 = vmul.f32 %v1666, %v1670
        %v1672 = vadd.f32 %v1671, 0.05243302
        %v1673 = vmul.f32 %v1666, %v1672
        %v1674 = vadd.f32 %v1673, 0.18741608
        %v1675 = vmul.f32 %v1666, %v1674
        %v1676 = vadd.f32 %v1675, 1.1283791
        %v1677 = vmul.f32 %v658, %v1676
        %v1678 = vmul.f32 %v1666, 3.8918573e-05
        %v1679 = vadd.f32 %v1678, 0.001143296
        %v1680 = vmul.f32 %v1666, %v1679
        %v1681 = vadd.f32 %v1680, 0.014752088
        %v1682 = vmul.f32 %v1666, %v1681
        %v1683 = vadd.f32 %v1682, 0.112945676
        %v1684 = vmul.f32 %v1666, %v1683
        %v1685 = vadd.f32 %v1684, 0.4994258
        %v1686 = vmul.f32 %v1666, %v1685
        %v1687 = vadd.f32 %v1686, 1.0
        %v1688 = vrcp.pop %v1687
        %v1689 = vmul.f32 %v1687, %v1688
        %v1690 = vsub.f32 1.0, %v1689
        %v1691 = vmul.f32 %v1688, %v1690
        %v1692 = vadd.f32 %v1688, %v1691
        %vm1693 = vweird.f32 %v1687
        %vm1694 = vweird.f32 %v1688
        %vm1695 = vmor %vm1693, %vm1694
        %v1696 = vsel %vm1695, %v1688, %v1692
        %v1697 = vand.u32 2147483647, %v1687
        %vm1698 = vcmp.eq.f32.partialorder %v1697, 8.507059e+37
        %v1699 = vand.u32 %v1687, 2147483648
        %v1700 = vor.u32 1.1754944e-38, %v1699
        %v1701 = vsel %vm1698, %v1700, %v1696
        %v1702 = vmul.f32 %v1677, %v1701
        %v1703 = vmin.f32 %v1702, 1.0
        %v1704 = vmax.f32 %v1703, -1.0
        %v1705 = vmul.f32 %v659, %v659
        %v1706 = vmin.f32 16.0, %v1705
        %v1707 = vmul.f32 %v1706, 2.1237322e-06
        %v1708 = vadd.f32 %v1707, 0.00028619796
        %v1709 = vmul.f32 %v1706, %v1708
        %v1710 = vadd.f32 %v1709, 0.0036580483
        %v1711 = vmul.f32 %v1706, %v1710
        %v1712 = vadd.f32 %v1711, 0.05243302
        %v1713 = vmul.f32 %v1706, %v1712
        %v1714 = vadd.f32 %v1713, 0.18741608
        %v1715 = vmul.f32 %v1706, %v1714
        %v1716 = vadd.f32 %v1715, 1.1283791
        %v1717 = vmul.f32 %v659, %v1716
        %v1718 = vmul.f32 %v1706, 3.8918573e-05
        %v1719 = vadd.f32 %v1718, 0.001143296
        %v1720 = vmul.f32 %v1706, %v1719
        %v1721 = vadd.f32 %v1720, 0.014752088
        %v1722 = vmul.f32 %v1706, %v1721
        %v1723 = vadd.f32 %v1722, 0.112945676
        %v1724 = vmul.f32 %v1706, %v1723
        %v1725 = vadd.f32 %v1724, 0.4994258
        %v1726 = vmul.f32 %v1706, %v1725
        %v1727 = vadd.f32 %v1726, 1.0
        %v1728 = vrcp.pop %v1727
        %v1729 = vmul.f32 %v1727, %v1728
        %v1730 = vsub.f32 1.0, %v1729
        %v1731 = vmul.f32 %v1728, %v1730
        %v1732 = vadd.f32 %v1728, %v1731
        %vm1733 = vweird.f32 %v1727
        %vm1734 = vweird.f32 %v1728
        %vm1735 = vmor %vm1733, %vm1734
        %v1736 = vsel %vm1735, %v1728, %v1732
        %v1737 = vand.u32 2147483647, %v1727
        %vm1738 = vcmp.eq.f32.partialorder %v1737, 8.507059e+37
        %v1739 = vand.u32 %v1727, 2147483648
        %v1740 = vor.u32 1.1754944e-38, %v1739
        %v1741 = vsel %vm1738, %v1740, %v1736
        %v1742 = vmul.f32 %v1717, %v1741
        %v1743 = vmin.f32 %v1742, 1.0
        %v1744 = vmax.f32 %v1743, -1.0
        %v1745 = vmul.f32 %v660, %v660
        %v1746 = vmin.f32 16.0, %v1745
        %v1747 = vmul.f32 %v1746, 2.1237322e-06
        %v1748 = vadd.f32 %v1747, 0.00028619796
        %v1749 = vmul.f32 %v1746, %v1748
        %v1750 = vadd.f32 %v1749, 0.0036580483
        %v1751 = vmul.f32 %v1746, %v1750
        %v1752 = vadd.f32 %v1751, 0.05243302
        %v1753 = vmul.f32 %v1746, %v1752
        %v1754 = vadd.f32 %v1753, 0.18741608
        %v1755 = vmul.f32 %v1746, %v1754
        %v1756 = vadd.f32 %v1755, 1.1283791
        %v1757 = vmul.f32 %v660, %v1756
        %v1758 = vmul.f32 %v1746, 3.8918573e-05
        %v1759 = vadd.f32 %v1758, 0.001143296
        %v1760 = vmul.f32 %v1746, %v1759
        %v1761 = vadd.f32 %v1760, 0.014752088
        %v1762 = vmul.f32 %v1746, %v1761
        %v1763 = vadd.f32 %v1762, 0.112945676
        %v1764 = vmul.f32 %v1746, %v1763
        %v1765 = vadd.f32 %v1764, 0.4994258
        %v1766 = vmul.f32 %v1746, %v1765
        %v1767 = vadd.f32 %v1766, 1.0
        %v1768 = vrcp.pop %v1767
        %v1769 = vmul.f32 %v1767, %v1768
        %v1770 = vsub.f32 1.0, %v1769
        %v1771 = vmul.f32 %v1768, %v1770
        %v1772 = vadd.f32 %v1768, %v1771
        %vm1773 = vweird.f32 %v1767
        %vm1774 = vweird.f32 %v1768
        %vm1775 = vmor %vm1773, %vm1774
        %v1776 = vsel %vm1775, %v1768, %v1772
        %v1777 = vand.u32 2147483647, %v1767
        %vm1778 = vcmp.eq.f32.partialorder %v1777, 8.507059e+37
        %v1779 = vand.u32 %v1767, 2147483648
        %v1780 = vor.u32 1.1754944e-38, %v1779
        %v1781 = vsel %vm1778, %v1780, %v1776
        %v1782 = vmul.f32 %v1757, %v1781
        %v1783 = vmin.f32 %v1782, 1.0
        %v1784 = vmax.f32 %v1783, -1.0
        %v1785 = vmul.f32 %v661, %v661
        %v1786 = vmin.f32 16.0, %v1785
        %v1787 = vmul.f32 %v1786, 2.1237322e-06
        %v1788 = vadd.f32 %v1787, 0.00028619796
        %v1789 = vmul.f32 %v1786, %v1788
        %v1790 = vadd.f32 %v1789, 0.0036580483
        %v1791 = vmul.f32 %v1786, %v1790
        %v1792 = vadd.f32 %v1791, 0.05243302
        %v1793 = vmul.f32 %v1786, %v1792
        %v1794 = vadd.f32 %v1793, 0.18741608
        %v1795 = vmul.f32 %v1786, %v1794
        %v1796 = vadd.f32 %v1795, 1.1283791
        %v1797 = vmul.f32 %v661, %v1796
        %v1798 = vmul.f32 %v1786, 3.8918573e-05
        %v1799 = vadd.f32 %v1798, 0.001143296
        %v1800 = vmul.f32 %v1786, %v1799
        %v1801 = vadd.f32 %v1800, 0.014752088
        %v1802 = vmul.f32 %v1786, %v1801
        %v1803 = vadd.f32 %v1802, 0.112945676
        %v1804 = vmul.f32 %v1786, %v1803
        %v1805 = vadd.f32 %v1804, 0.4994258
        %v1806 = vmul.f32 %v1786, %v1805
        %v1807 = vadd.f32 %v1806, 1.0
        %v1808 = vrcp.pop %v1807
        %v1809 = vmul.f32 %v1807, %v1808
        %v1810 = vsub.f32 1.0, %v1809
        %v1811 = vmul.f32 %v1808, %v1810
        %v1812 = vadd.f32 %v1808, %v1811
        %vm1813 = vweird.f32 %v1807
        %vm1814 = vweird.f32 %v1808
        %vm1815 = vmor %vm1813, %vm1814
        %v1816 = vsel %vm1815, %v1808, %v1812
        %v1817 = vand.u32 2147483647, %v1807
        %vm1818 = vcmp.eq.f32.partialorder %v1817, 8.507059e+37
        %v1819 = vand.u32 %v1807, 2147483648
        %v1820 = vor.u32 1.1754944e-38, %v1819
        %v1821 = vsel %vm1818, %v1820, %v1816
        %v1822 = vmul.f32 %v1797, %v1821
        %v1823 = vmin.f32 %v1822, 1.0
        %v1824 = vmax.f32 %v1823, -1.0
        %v1825 = vmul.f32 %v662, %v662
        %v1826 = vmin.f32 16.0, %v1825
        %v1827 = vmul.f32 %v1826, 2.1237322e-06
        %v1828 = vadd.f32 %v1827, 0.00028619796
        %v1829 = vmul.f32 %v1826, %v1828
        %v1830 = vadd.f32 %v1829, 0.0036580483
        %v1831 = vmul.f32 %v1826, %v1830
        %v1832 = vadd.f32 %v1831, 0.05243302
        %v1833 = vmul.f32 %v1826, %v1832
        %v1834 = vadd.f32 %v1833, 0.18741608
        %v1835 = vmul.f32 %v1826, %v1834
        %v1836 = vadd.f32 %v1835, 1.1283791
        %v1837 = vmul.f32 %v662, %v1836
        %v1838 = vmul.f32 %v1826, 3.8918573e-05
        %v1839 = vadd.f32 %v1838, 0.001143296
        %v1840 = vmul.f32 %v1826, %v1839
        %v1841 = vadd.f32 %v1840, 0.014752088
        %v1842 = vmul.f32 %v1826, %v1841
        %v1843 = vadd.f32 %v1842, 0.112945676
        %v1844 = vmul.f32 %v1826, %v1843
        %v1845 = vadd.f32 %v1844, 0.4994258
        %v1846 = vmul.f32 %v1826, %v1845
        %v1847 = vadd.f32 %v1846, 1.0
        %v1848 = vrcp.pop %v1847
        %v1849 = vmul.f32 %v1847, %v1848
        %v1850 = vsub.f32 1.0, %v1849
        %v1851 = vmul.f32 %v1848, %v1850
        %v1852 = vadd.f32 %v1848, %v1851
        %vm1853 = vweird.f32 %v1847
        %vm1854 = vweird.f32 %v1848
        %vm1855 = vmor %vm1853, %vm1854
        %v1856 = vsel %vm1855, %v1848, %v1852
        %v1857 = vand.u32 2147483647, %v1847
        %vm1858 = vcmp.eq.f32.partialorder %v1857, 8.507059e+37
        %v1859 = vand.u32 %v1847, 2147483648
        %v1860 = vor.u32 1.1754944e-38, %v1859
        %v1861 = vsel %vm1858, %v1860, %v1856
        %v1862 = vmul.f32 %v1837, %v1861
        %v1863 = vmin.f32 %v1862, 1.0
        %v1864 = vmax.f32 %v1863, -1.0
        %v1865 = vmul.f32 %v663, %v663
        %v1866 = vmin.f32 16.0, %v1865
        %v1867 = vmul.f32 %v1866, 2.1237322e-06
        %v1868 = vadd.f32 %v1867, 0.00028619796
        %v1869 = vmul.f32 %v1866, %v1868
        %v1870 = vadd.f32 %v1869, 0.0036580483
        %v1871 = vmul.f32 %v1866, %v1870
        %v1872 = vadd.f32 %v1871, 0.05243302
        %v1873 = vmul.f32 %v1866, %v1872
        %v1874 = vadd.f32 %v1873, 0.18741608
        %v1875 = vmul.f32 %v1866, %v1874
        %v1876 = vadd.f32 %v1875, 1.1283791
        %v1877 = vmul.f32 %v663, %v1876
        %v1878 = vmul.f32 %v1866, 3.8918573e-05
        %v1879 = vadd.f32 %v1878, 0.001143296
        %v1880 = vmul.f32 %v1866, %v1879
        %v1881 = vadd.f32 %v1880, 0.014752088
        %v1882 = vmul.f32 %v1866, %v1881
        %v1883 = vadd.f32 %v1882, 0.112945676
        %v1884 = vmul.f32 %v1866, %v1883
        %v1885 = vadd.f32 %v1884, 0.4994258
        %v1886 = vmul.f32 %v1866, %v1885
        %v1887 = vadd.f32 %v1886, 1.0
        %v1888 = vrcp.pop %v1887
        %v1889 = vmul.f32 %v1887, %v1888
        %v1890 = vsub.f32 1.0, %v1889
        %v1891 = vmul.f32 %v1888, %v1890
        %v1892 = vadd.f32 %v1888, %v1891
        %vm1893 = vweird.f32 %v1887
        %vm1894 = vweird.f32 %v1888
        %vm1895 = vmor %vm1893, %vm1894
        %v1896 = vsel %vm1895, %v1888, %v1892
        %v1897 = vand.u32 2147483647, %v1887
        %vm1898 = vcmp.eq.f32.partialorder %v1897, 8.507059e+37
        %v1899 = vand.u32 %v1887, 2147483648
        %v1900 = vor.u32 1.1754944e-38, %v1899
        %v1901 = vsel %vm1898, %v1900, %v1896
        %v1902 = vmul.f32 %v1877, %v1901
        %v1903 = vmin.f32 %v1902, 1.0
        %v1904 = vmax.f32 %v1903, -1.0
        %v1905 = vmul.f32 %v664, %v664
        %v1906 = vmin.f32 16.0, %v1905
        %v1907 = vmul.f32 %v1906, 2.1237322e-06
        %v1908 = vadd.f32 %v1907, 0.00028619796
        %v1909 = vmul.f32 %v1906, %v1908
        %v1910 = vadd.f32 %v1909, 0.0036580483
        %v1911 = vmul.f32 %v1906, %v1910
        %v1912 = vadd.f32 %v1911, 0.05243302
        %v1913 = vmul.f32 %v1906, %v1912
        %v1914 = vadd.f32 %v1913, 0.18741608
        %v1915 = vmul.f32 %v1906, %v1914
        %v1916 = vadd.f32 %v1915, 1.1283791
        %v1917 = vmul.f32 %v664, %v1916
        %v1918 = vmul.f32 %v1906, 3.8918573e-05
        %v1919 = vadd.f32 %v1918, 0.001143296
        %v1920 = vmul.f32 %v1906, %v1919
        %v1921 = vadd.f32 %v1920, 0.014752088
        %v1922 = vmul.f32 %v1906, %v1921
        %v1923 = vadd.f32 %v1922, 0.112945676
        %v1924 = vmul.f32 %v1906, %v1923
        %v1925 = vadd.f32 %v1924, 0.4994258
        %v1926 = vmul.f32 %v1906, %v1925
        %v1927 = vadd.f32 %v1926, 1.0
        %v1928 = vrcp.pop %v1927
        %v1929 = vmul.f32 %v1927, %v1928
        %v1930 = vsub.f32 1.0, %v1929
        %v1931 = vmul.f32 %v1928, %v1930
        %v1932 = vadd.f32 %v1928, %v1931
        %vm1933 = vweird.f32 %v1927
        %vm1934 = vweird.f32 %v1928
        %vm1935 = vmor %vm1933, %vm1934
        %v1936 = vsel %vm1935, %v1928, %v1932
        %v1937 = vand.u32 2147483647, %v1927
        %vm1938 = vcmp.eq.f32.partialorder %v1937, 8.507059e+37
        %v1939 = vand.u32 %v1927, 2147483648
        %v1940 = vor.u32 1.1754944e-38, %v1939
        %v1941 = vsel %vm1938, %v1940, %v1936
        %v1942 = vmul.f32 %v1917, %v1941
        %v1943 = vmin.f32 %v1942, 1.0
        %v1944 = vmax.f32 %v1943, -1.0
        %v1945 = vadd.f32 %v704, 1.0
        %v1946 = vadd.f32 %v744, 1.0
        %v1947 = vadd.f32 %v784, 1.0
        %v1948 = vadd.f32 %v824, 1.0
        %v1949 = vadd.f32 %v864, 1.0
        %v1950 = vadd.f32 %v904, 1.0
        %v1951 = vadd.f32 %v944, 1.0
        %v1952 = vadd.f32 %v984, 1.0
        %v1953 = vadd.f32 %v1024, 1.0
        %v1954 = vadd.f32 %v1064, 1.0
        %v1955 = vadd.f32 %v1104, 1.0
        %v1956 = vadd.f32 %v1144, 1.0
        %v1957 = vadd.f32 %v1184, 1.0
        %v1958 = vadd.f32 %v1224, 1.0
        %v1959 = vadd.f32 %v1264, 1.0
        %v1960 = vadd.f32 %v1304, 1.0
        %v1961 = vadd.f32 %v1344, 1.0
        %v1962 = vadd.f32 %v1384, 1.0
        %v1963 = vadd.f32 %v1424, 1.0
        %v1964 = vadd.f32 %v1464, 1.0
        %v1965 = vadd.f32 %v1504, 1.0
        %v1966 = vadd.f32 %v1544, 1.0
        %v1967 = vadd.f32 %v1584, 1.0
        %v1968 = vadd.f32 %v1624, 1.0
        %v1969 = vadd.f32 %v1664, 1.0
        %v1970 = vadd.f32 %v1704, 1.0
        %v1971 = vadd.f32 %v1744, 1.0
        %v1972 = vadd.f32 %v1784, 1.0
        %v1973 = vadd.f32 %v1824, 1.0
        %v1974 = vadd.f32 %v1864, 1.0
        %v1975 = vadd.f32 %v1904, 1.0
        %v1976 = vadd.f32 %v1944, 1.0
        %v1977 = vmul.f32 %v601, %v1945
        %v1978 = vmul.f32 %v602, %v1946
        %v1979 = vmul.f32 %v603, %v1947
        %v1980 = vmul.f32 %v604, %v1948
        %v1981 = vmul.f32 %v605, %v1949
        %v1982 = vmul.f32 %v606, %v1950
        %v1983 = vmul.f32 %v607, %v1951
        %v1984 = vmul.f32 %v608, %v1952
        %v1985 = vmul.f32 %v609, %v1953
        %v1986 = vmul.f32 %v610, %v1954
        %v1987 = vmul.f32 %v611, %v1955
        %v1988 = vmul.f32 %v612, %v1956
        %v1989 = vmul.f32 %v613, %v1957
        %v1990 = vmul.f32 %v614, %v1958
        %v1991 = vmul.f32 %v615, %v1959
        %v1992 = vmul.f32 %v616, %v1960
        %v1993 = vmul.f32 %v617, %v1961
        %v1994 = vmul.f32 %v618, %v1962
        %v1995 = vmul.f32 %v619, %v1963
        %v1996 = vmul.f32 %v620, %v1964
        %v1997 = vmul.f32 %v621, %v1965
        %v1998 = vmul.f32 %v622, %v1966
        %v1999 = vmul.f32 %v623, %v1967
        %v2000 = vmul.f32 %v624, %v1968
        %v2001 = vmul.f32 %v625, %v1969
        %v2002 = vmul.f32 %v626, %v1970
        %v2003 = vmul.f32 %v627, %v1971
        %v2004 = vmul.f32 %v628, %v1972
        %v2005 = vmul.f32 %v629, %v1973
        %v2006 = vmul.f32 %v630, %v1974
        %v2007 = vmul.f32 %v631, %v1975
        %v2008 = vmul.f32 %v632, %v1976
        %2009 = vst [vmem:[#allocation2] sm:$0xff] 0.0
        %2010 = vst [vmem:[#allocation2 + $0x8] sm:$0xff] 0.0
        %2011 = vst [vmem:[#allocation2 + $0x10] sm:$0x3] 0.0
        %2012 = vst [vmem:[#allocation2 + $0x18] sm:$0xff] 0.0
        %2013 = vst [vmem:[#allocation2 + $0x20] sm:$0xff] 0.0
        %2014 = vst [vmem:[#allocation2 + $0x28] sm:$0x3] 0.0
        %2015 = vst [vmem:[#allocation2 + $0x30] sm:$0xff] 0.0
        %2016 = vst [vmem:[#allocation2 + $0x38] sm:$0xff] 0.0
        %2017 = vst [vmem:[#allocation2 + $0x40] sm:$0x3] 0.0
        %2018 = vst [vmem:[#allocation2 + $0x48] sm:$0xff] 0.0
        %2019 = vst [vmem:[#allocation2 + $0x50] sm:$0xff] 0.0
        %2020 = vst [vmem:[#allocation2 + $0x58] sm:$0x3] 0.0
        %2021 = vst [vmem:[#allocation2 + $0x60] sm:$0xff] 0.0
        %2022 = vst [vmem:[#allocation2 + $0x68] sm:$0xff] 0.0
        %2023 = vst [vmem:[#allocation2 + $0x70] sm:$0x3] 0.0
        %2024 = vst [vmem:[#allocation2 + $0x78] sm:$0xff] 0.0
        %2025 = vst [vmem:[#allocation2 + $0x80] sm:$0xff] 0.0
        %2026 = vst [vmem:[#allocation2 + $0x88] sm:$0x3] 0.0
        %2027 = vst [vmem:[#allocation2 + $0x90] sm:$0xff] 0.0
        %2028 = vst [vmem:[#allocation2 + $0x98] sm:$0xff] 0.0
        %2029 = vst [vmem:[#allocation2 + $0xa0] sm:$0x3] 0.0
        %2030 = vst [vmem:[#allocation2 + $0xa8] sm:$0xff] 0.0
        %2031 = vst [vmem:[#allocation2 + $0xb0] sm:$0xff] 0.0
        %2032 = vst [vmem:[#allocation2 + $0xb8] sm:$0x3] 0.0
        %2033 = vst [vmem:[#allocation2 + $0xc0] sm:$0xff] 0.0
        %2034 = vst [vmem:[#allocation2 + $0xc8] sm:$0xff] 0.0
        %2035 = vst [vmem:[#allocation2 + $0xd0] sm:$0x3] 0.0
        %2036 = vst [vmem:[#allocation2 + $0xd8] sm:$0xff] 0.0
        %2037 = vst [vmem:[#allocation2 + $0xe0] sm:$0xff] 0.0
        %2038 = vst [vmem:[#allocation2 + $0xe8] sm:$0x3] 0.0
        %2039 = vst [vmem:[#allocation2 + $0xf0] sm:$0xff] 0.0
        %2040 = vst [vmem:[#allocation2 + $0xf8] sm:$0xff] 0.0
        %2041 = vst [vmem:[#allocation2 + $0x100] sm:$0x3] 0.0
        %2042 = vst [vmem:[#allocation2 + $0x108] sm:$0xff] 0.0
        %2043 = vst [vmem:[#allocation2 + $0x110] sm:$0xff] 0.0
        %2044 = vst [vmem:[#allocation2 + $0x118] sm:$0x3] 0.0
        %2045 = vst [vmem:[#allocation2 + $0x120] sm:$0xff] 0.0
        %2046 = vst [vmem:[#allocation2 + $0x128] sm:$0xff] 0.0
        %2047 = vst [vmem:[#allocation2 + $0x130] sm:$0x3] 0.0
        %2048 = vst [vmem:[#allocation2 + $0x138] sm:$0xff] 0.0
        %2049 = vst [vmem:[#allocation2 + $0x140] sm:$0xff] 0.0
        %2050 = vst [vmem:[#allocation2 + $0x148] sm:$0x3] 0.0
        %2051 = vst [vmem:[#allocation2 + $0x150] sm:$0xff] 0.0
        %2052 = vst [vmem:[#allocation2 + $0x158] sm:$0xff] 0.0
        %2053 = vst [vmem:[#allocation2 + $0x160] sm:$0x3] 0.0
        %2054 = vst [vmem:[#allocation2 + $0x168] sm:$0xff] 0.0
        %2055 = vst [vmem:[#allocation2 + $0x170] sm:$0xff] 0.0
        %2056 = vst [vmem:[#allocation2 + $0x178] sm:$0x3] 0.0
        %2057 = vst [vmem:[#allocation2 + $0x180] sm:$0xff] 0.0
        %2058 = vst [vmem:[#allocation2 + $0x188] sm:$0xff] 0.0
        %2059 = vst [vmem:[#allocation2 + $0x190] sm:$0x3] 0.0
        %2060 = vst [vmem:[#allocation2 + $0x198] sm:$0xff] 0.0
        %2061 = vst [vmem:[#allocation2 + $0x1a0] sm:$0xff] 0.0
        %2062 = vst [vmem:[#allocation2 + $0x1a8] sm:$0x3] 0.0
        %s2063 = scalar_lea.vmem [#allocation2], 24
        %2064 = vst [vmem:[%s2063 + $0x1] sm:$0xff] %v1977
        %2065 = vst [vmem:[%s2063 + $0x9] sm:$0xff] %v1978
        %2066 = vst [vmem:[%s2063 + $0x19] sm:$0xff] %v1979
        %2067 = vst [vmem:[%s2063 + $0x21] sm:$0xff] %v1980
        %2068 = vst [vmem:[%s2063 + $0x31] sm:$0xff] %v1981
        %2069 = vst [vmem:[%s2063 + $0x39] sm:$0xff] %v1982
        %2070 = vst [vmem:[%s2063 + $0x49] sm:$0xff] %v1983
        %2071 = vst [vmem:[%s2063 + $0x51] sm:$0xff] %v1984
        %2072 = vst [vmem:[%s2063 + $0x61] sm:$0xff] %v1985
        %2073 = vst [vmem:[%s2063 + $0x69] sm:$0xff] %v1986
        %2074 = vst [vmem:[%s2063 + $0x79] sm:$0xff] %v1987
        %2075 = vst [vmem:[%s2063 + $0x81] sm:$0xff] %v1988
        %2076 = vst [vmem:[%s2063 + $0x91] sm:$0xff] %v1989
        %2077 = vst [vmem:[%s2063 + $0x99] sm:$0xff] %v1990
        %2078 = vst [vmem:[%s2063 + $0xa9] sm:$0xff] %v1991
        %2079 = vst [vmem:[%s2063 + $0xb1] sm:$0xff] %v1992
        %2080 = vst [vmem:[%s2063 + $0xc1] sm:$0xff] %v1993
        %2081 = vst [vmem:[%s2063 + $0xc9] sm:$0xff] %v1994
        %2082 = vst [vmem:[%s2063 + $0xd9] sm:$0xff] %v1995
        %2083 = vst [vmem:[%s2063 + $0xe1] sm:$0xff] %v1996
        %2084 = vst [vmem:[%s2063 + $0xf1] sm:$0xff] %v1997
        %2085 = vst [vmem:[%s2063 + $0xf9] sm:$0xff] %v1998
        %2086 = vst [vmem:[%s2063 + $0x109] sm:$0xff] %v1999
        %2087 = vst [vmem:[%s2063 + $0x111] sm:$0xff] %v2000
        %2088 = vst [vmem:[%s2063 + $0x121] sm:$0xff] %v2001
        %2089 = vst [vmem:[%s2063 + $0x129] sm:$0xff] %v2002
        %2090 = vst [vmem:[%s2063 + $0x139] sm:$0xff] %v2003
        %2091 = vst [vmem:[%s2063 + $0x141] sm:$0xff] %v2004
        %2092 = vst [vmem:[%s2063 + $0x151] sm:$0xff] %v2005
        %2093 = vst [vmem:[%s2063 + $0x159] sm:$0xff] %v2006
        %2094 = vst [vmem:[%s2063 + $0x169] sm:$0xff] %v2007
        %2095 = vst [vmem:[%s2063 + $0x171] sm:$0xff] %v2008
        %v2096 = vld [vmem:[#allocation8] sm:$0x7]
        %v2097 = vld [vmem:[#allocation8 + $0x4] sm:$0x7]
        %v2098 = vld [vmem:[#allocation8 + $0x8] sm:$0x7]
        %v2099 = vld [vmem:[#allocation2] sm:$0xff]
        %v2100 = vld [vmem:[#allocation2 + $0x8] sm:$0xff]
        %v2101 = vld [vmem:[#allocation2 + $0x18] sm:$0xff]
        %v2102 = vld [vmem:[#allocation2 + $0x20] sm:$0xff]
        %v2103 = vld [vmem:[#allocation2 + $0x30] sm:$0xff]
        %v2104 = vld [vmem:[#allocation2 + $0x38] sm:$0xff]
        %v2105 = vld [vmem:[#allocation2 + $0x48] sm:$0xff]
        %v2106 = vld [vmem:[#allocation2 + $0x50] sm:$0xff]
        %v2107 = vld [vmem:[#allocation2 + $0x60] sm:$0xff]
        %v2108 = vld [vmem:[#allocation2 + $0x68] sm:$0xff]
        %v2109 = vld [vmem:[#allocation2 + $0x78] sm:$0xff]
        %v2110 = vld [vmem:[#allocation2 + $0x80] sm:$0xff]
        %v2111 = vld [vmem:[#allocation2 + $0x90] sm:$0xff]
        %v2112 = vld [vmem:[#allocation2 + $0x98] sm:$0xff]
        %v2113 = vld [vmem:[#allocation2 + $0xa8] sm:$0xff]
        %v2114 = vld [vmem:[#allocation2 + $0xb0] sm:$0xff]
        %v2115 = vld [vmem:[#allocation2 + $0xc0] sm:$0xff]
        %v2116 = vld [vmem:[#allocation2 + $0xc8] sm:$0xff]
        %v2117 = vld [vmem:[#allocation2 + $0xd8] sm:$0xff]
        %v2118 = vld [vmem:[#allocation2 + $0xe0] sm:$0xff]
        %v2119 = vld [vmem:[#allocation2 + $0xf0] sm:$0xff]
        %v2120 = vld [vmem:[#allocation2 + $0xf8] sm:$0xff]
        %v2121 = vld [vmem:[#allocation2 + $0x108] sm:$0xff]
        %v2122 = vld [vmem:[#allocation2 + $0x110] sm:$0xff]
        %v2123 = vld [vmem:[#allocation2 + $0x120] sm:$0xff]
        %v2124 = vld [vmem:[#allocation2 + $0x128] sm:$0xff]
        %v2125 = vld [vmem:[#allocation2 + $0x138] sm:$0xff]
        %v2126 = vld [vmem:[#allocation2 + $0x140] sm:$0xff]
        %v2127 = vld [vmem:[#allocation2 + $0x150] sm:$0xff]
        %v2128 = vld [vmem:[#allocation2 + $0x158] sm:$0xff]
        %v2129 = vld [vmem:[#allocation2 + $0x168] sm:$0xff]
        %v2130 = vld [vmem:[#allocation2 + $0x170] sm:$0xff]
        %v2131 = vperm.slane %v2096, 0
        %v2132 = vmul.f32 %v2099, %v2131
        %v2133 = vmul.f32 %v2100, %v2131
        %v2134 = vmul.f32 %v2101, %v2131
        %v2135 = vmul.f32 %v2102, %v2131
        %v2136 = vmul.f32 %v2103, %v2131
        %v2137 = vmul.f32 %v2104, %v2131
        %v2138 = vmul.f32 %v2105, %v2131
        %v2139 = vmul.f32 %v2106, %v2131
        %v2140 = vmul.f32 %v2107, %v2131
        %v2141 = vmul.f32 %v2108, %v2131
        %v2142 = vmul.f32 %v2109, %v2131
        %v2143 = vmul.f32 %v2110, %v2131
        %v2144 = vmul.f32 %v2111, %v2131
        %v2145 = vmul.f32 %v2112, %v2131
        %v2146 = vmul.f32 %v2113, %v2131
        %v2147 = vmul.f32 %v2114, %v2131
        %v2148 = vmul.f32 %v2115, %v2131
        %v2149 = vmul.f32 %v2116, %v2131
        %v2150 = vmul.f32 %v2117, %v2131
        %v2151 = vmul.f32 %v2118, %v2131
        %v2152 = vmul.f32 %v2119, %v2131
        %v2153 = vmul.f32 %v2120, %v2131
        %v2154 = vmul.f32 %v2121, %v2131
        %v2155 = vmul.f32 %v2122, %v2131
        %v2156 = vmul.f32 %v2123, %v2131
        %v2157 = vmul.f32 %v2124, %v2131
        %v2158 = vmul.f32 %v2125, %v2131
        %v2159 = vmul.f32 %v2126, %v2131
        %v2160 = vmul.f32 %v2127, %v2131
        %v2161 = vmul.f32 %v2128, %v2131
        %v2162 = vmul.f32 %v2129, %v2131
        %v2163 = vmul.f32 %v2130, %v2131
        %v2164 = vadd.f32 %v2132, 0.0
        %v2165 = vadd.f32 %v2133, 0.0
        %v2166 = vadd.f32 %v2134, 0.0
        %v2167 = vadd.f32 %v2135, 0.0
        %v2168 = vadd.f32 %v2136, 0.0
        %v2169 = vadd.f32 %v2137, 0.0
        %v2170 = vadd.f32 %v2138, 0.0
        %v2171 = vadd.f32 %v2139, 0.0
        %v2172 = vadd.f32 %v2140, 0.0
        %v2173 = vadd.f32 %v2141, 0.0
        %v2174 = vadd.f32 %v2142, 0.0
        %v2175 = vadd.f32 %v2143, 0.0
        %v2176 = vadd.f32 %v2144, 0.0
        %v2177 = vadd.f32 %v2145, 0.0
        %v2178 = vadd.f32 %v2146, 0.0
        %v2179 = vadd.f32 %v2147, 0.0
        %v2180 = vadd.f32 %v2148, 0.0
        %v2181 = vadd.f32 %v2149, 0.0
        %v2182 = vadd.f32 %v2150, 0.0
        %v2183 = vadd.f32 %v2151, 0.0
        %v2184 = vadd.f32 %v2152, 0.0
        %v2185 = vadd.f32 %v2153, 0.0
        %v2186 = vadd.f32 %v2154, 0.0
        %v2187 = vadd.f32 %v2155, 0.0
        %v2188 = vadd.f32 %v2156, 0.0
        %v2189 = vadd.f32 %v2157, 0.0
        %v2190 = vadd.f32 %v2158, 0.0
        %v2191 = vadd.f32 %v2159, 0.0
        %v2192 = vadd.f32 %v2160, 0.0
        %v2193 = vadd.f32 %v2161, 0.0
        %v2194 = vadd.f32 %v2162, 0.0
        %v2195 = vadd.f32 %v2163, 0.0
        %v2196 = vld [vmem:[#allocation2 + $0x1] sm:$0xff]
        %v2197 = vld [vmem:[#allocation2 + $0x9] sm:$0xff]
        %v2198 = vld [vmem:[#allocation2 + $0x19] sm:$0xff]
        %v2199 = vld [vmem:[#allocation2 + $0x21] sm:$0xff]
        %v2200 = vld [vmem:[#allocation2 + $0x31] sm:$0xff]
        %v2201 = vld [vmem:[#allocation2 + $0x39] sm:$0xff]
        %v2202 = vld [vmem:[#allocation2 + $0x49] sm:$0xff]
        %v2203 = vld [vmem:[#allocation2 + $0x51] sm:$0xff]
        %v2204 = vld [vmem:[#allocation2 + $0x61] sm:$0xff]
        %v2205 = vld [vmem:[#allocation2 + $0x69] sm:$0xff]
        %v2206 = vld [vmem:[#allocation2 + $0x79] sm:$0xff]
        %v2207 = vld [vmem:[#allocation2 + $0x81] sm:$0xff]
        %v2208 = vld [vmem:[#allocation2 + $0x91] sm:$0xff]
        %v2209 = vld [vmem:[#allocation2 + $0x99] sm:$0xff]
        %v2210 = vld [vmem:[#allocation2 + $0xa9] sm:$0xff]
        %v2211 = vld [vmem:[#allocation2 + $0xb1] sm:$0xff]
        %v2212 = vld [vmem:[#allocation2 + $0xc1] sm:$0xff]
        %v2213 = vld [vmem:[#allocation2 + $0xc9] sm:$0xff]
        %v2214 = vld [vmem:[#allocation2 + $0xd9] sm:$0xff]
        %v2215 = vld [vmem:[#allocation2 + $0xe1] sm:$0xff]
        %v2216 = vld [vmem:[#allocation2 + $0xf1] sm:$0xff]
        %v2217 = vld [vmem:[#allocation2 + $0xf9] sm:$0xff]
        %v2218 = vld [vmem:[#allocation2 + $0x109] sm:$0xff]
        %v2219 = vld [vmem:[#allocation2 + $0x111] sm:$0xff]
        %v2220 = vld [vmem:[#allocation2 + $0x121] sm:$0xff]
        %v2221 = vld [vmem:[#allocation2 + $0x129] sm:$0xff]
        %v2222 = vld [vmem:[#allocation2 + $0x139] sm:$0xff]
        %v2223 = vld [vmem:[#allocation2 + $0x141] sm:$0xff]
        %v2224 = vld [vmem:[#allocation2 + $0x151] sm:$0xff]
        %v2225 = vld [vmem:[#allocation2 + $0x159] sm:$0xff]
        %v2226 = vld [vmem:[#allocation2 + $0x169] sm:$0xff]
        %v2227 = vld [vmem:[#allocation2 + $0x171] sm:$0xff]
        %v2228 = vperm.slane %v2096, 1
        %v2229 = vmul.f32 %v2196, %v2228
        %v2230 = vmul.f32 %v2197, %v2228
        %v2231 = vmul.f32 %v2198, %v2228
        %v2232 = vmul.f32 %v2199, %v2228
        %v2233 = vmul.f32 %v2200, %v2228
        %v2234 = vmul.f32 %v2201, %v2228
        %v2235 = vmul.f32 %v2202, %v2228
        %v2236 = vmul.f32 %v2203, %v2228
        %v2237 = vmul.f32 %v2204, %v2228
        %v2238 = vmul.f32 %v2205, %v2228
        %v2239 = vmul.f32 %v2206, %v2228
        %v2240 = vmul.f32 %v2207, %v2228
        %v2241 = vmul.f32 %v2208, %v2228
        %v2242 = vmul.f32 %v2209, %v2228
        %v2243 = vmul.f32 %v2210, %v2228
        %v2244 = vmul.f32 %v2211, %v2228
        %v2245 = vmul.f32 %v2212, %v2228
        %v2246 = vmul.f32 %v2213, %v2228
        %v2247 = vmul.f32 %v2214, %v2228
        %v2248 = vmul.f32 %v2215, %v2228
        %v2249 = vmul.f32 %v2216, %v2228
        %v2250 = vmul.f32 %v2217, %v2228
        %v2251 = vmul.f32 %v2218, %v2228
        %v2252 = vmul.f32 %v2219, %v2228
        %v2253 = vmul.f32 %v2220, %v2228
        %v2254 = vmul.f32 %v2221, %v2228
        %v2255 = vmul.f32 %v2222, %v2228
        %v2256 = vmul.f32 %v2223, %v2228
        %v2257 = vmul.f32 %v2224, %v2228
        %v2258 = vmul.f32 %v2225, %v2228
        %v2259 = vmul.f32 %v2226, %v2228
        %v2260 = vmul.f32 %v2227, %v2228
        %v2261 = vadd.f32 %v2164, %v2229
        %v2262 = vadd.f32 %v2165, %v2230
        %v2263 = vadd.f32 %v2166, %v2231
        %v2264 = vadd.f32 %v2167, %v2232
        %v2265 = vadd.f32 %v2168, %v2233
        %v2266 = vadd.f32 %v2169, %v2234
        %v2267 = vadd.f32 %v2170, %v2235
        %v2268 = vadd.f32 %v2171, %v2236
        %v2269 = vadd.f32 %v2172, %v2237
        %v2270 = vadd.f32 %v2173, %v2238
        %v2271 = vadd.f32 %v2174, %v2239
        %v2272 = vadd.f32 %v2175, %v2240
        %v2273 = vadd.f32 %v2176, %v2241
        %v2274 = vadd.f32 %v2177, %v2242
        %v2275 = vadd.f32 %v2178, %v2243
        %v2276 = vadd.f32 %v2179, %v2244
        %v2277 = vadd.f32 %v2180, %v2245
        %v2278 = vadd.f32 %v2181, %v2246
        %v2279 = vadd.f32 %v2182, %v2247
        %v2280 = vadd.f32 %v2183, %v2248
        %v2281 = vadd.f32 %v2184, %v2249
        %v2282 = vadd.f32 %v2185, %v2250
        %v2283 = vadd.f32 %v2186, %v2251
        %v2284 = vadd.f32 %v2187, %v2252
        %v2285 = vadd.f32 %v2188, %v2253
        %v2286 = vadd.f32 %v2189, %v2254
        %v2287 = vadd.f32 %v2190, %v2255
        %v2288 = vadd.f32 %v2191, %v2256
        %v2289 = vadd.f32 %v2192, %v2257
        %v2290 = vadd.f32 %v2193, %v2258
        %v2291 = vadd.f32 %v2194, %v2259
        %v2292 = vadd.f32 %v2195, %v2260
        %v2293 = vld [vmem:[#allocation2 + $0x2] sm:$0xff]
        %v2294 = vld [vmem:[#allocation2 + $0xa] sm:$0xff]
        %v2295 = vld [vmem:[#allocation2 + $0x1a] sm:$0xff]
        %v2296 = vld [vmem:[#allocation2 + $0x22] sm:$0xff]
        %v2297 = vld [vmem:[#allocation2 + $0x32] sm:$0xff]
        %v2298 = vld [vmem:[#allocation2 + $0x3a] sm:$0xff]
        %v2299 = vld [vmem:[#allocation2 + $0x4a] sm:$0xff]
        %v2300 = vld [vmem:[#allocation2 + $0x52] sm:$0xff]
        %v2301 = vld [vmem:[#allocation2 + $0x62] sm:$0xff]
        %v2302 = vld [vmem:[#allocation2 + $0x6a] sm:$0xff]
        %v2303 = vld [vmem:[#allocation2 + $0x7a] sm:$0xff]
        %v2304 = vld [vmem:[#allocation2 + $0x82] sm:$0xff]
        %v2305 = vld [vmem:[#allocation2 + $0x92] sm:$0xff]
        %v2306 = vld [vmem:[#allocation2 + $0x9a] sm:$0xff]
        %v2307 = vld [vmem:[#allocation2 + $0xaa] sm:$0xff]
        %v2308 = vld [vmem:[#allocation2 + $0xb2] sm:$0xff]
        %v2309 = vld [vmem:[#allocation2 + $0xc2] sm:$0xff]
        %v2310 = vld [vmem:[#allocation2 + $0xca] sm:$0xff]
        %v2311 = vld [vmem:[#allocation2 + $0xda] sm:$0xff]
        %v2312 = vld [vmem:[#allocation2 + $0xe2] sm:$0xff]
        %v2313 = vld [vmem:[#allocation2 + $0xf2] sm:$0xff]
        %v2314 = vld [vmem:[#allocation2 + $0xfa] sm:$0xff]
        %v2315 = vld [vmem:[#allocation2 + $0x10a] sm:$0xff]
        %v2316 = vld [vmem:[#allocation2 + $0x112] sm:$0xff]
        %v2317 = vld [vmem:[#allocation2 + $0x122] sm:$0xff]
        %v2318 = vld [vmem:[#allocation2 + $0x12a] sm:$0xff]
        %v2319 = vld [vmem:[#allocation2 + $0x13a] sm:$0xff]
        %v2320 = vld [vmem:[#allocation2 + $0x142] sm:$0xff]
        %v2321 = vld [vmem:[#allocation2 + $0x152] sm:$0xff]
        %v2322 = vld [vmem:[#allocation2 + $0x15a] sm:$0xff]
        %v2323 = vld [vmem:[#allocation2 + $0x16a] sm:$0xff]
        %v2324 = vld [vmem:[#allocation2 + $0x172] sm:$0xff]
        %v2325 = vperm.slane %v2096, 2
        %v2326 = vmul.f32 %v2293, %v2325
        %v2327 = vmul.f32 %v2294, %v2325
        %v2328 = vmul.f32 %v2295, %v2325
        %v2329 = vmul.f32 %v2296, %v2325
        %v2330 = vmul.f32 %v2297, %v2325
        %v2331 = vmul.f32 %v2298, %v2325
        %v2332 = vmul.f32 %v2299, %v2325
        %v2333 = vmul.f32 %v2300, %v2325
        %v2334 = vmul.f32 %v2301, %v2325
        %v2335 = vmul.f32 %v2302, %v2325
        %v2336 = vmul.f32 %v2303, %v2325
        %v2337 = vmul.f32 %v2304, %v2325
        %v2338 = vmul.f32 %v2305, %v2325
        %v2339 = vmul.f32 %v2306, %v2325
        %v2340 = vmul.f32 %v2307, %v2325
        %v2341 = vmul.f32 %v2308, %v2325
        %v2342 = vmul.f32 %v2309, %v2325
        %v2343 = vmul.f32 %v2310, %v2325
        %v2344 = vmul.f32 %v2311, %v2325
        %v2345 = vmul.f32 %v2312, %v2325
        %v2346 = vmul.f32 %v2313, %v2325
        %v2347 = vmul.f32 %v2314, %v2325
        %v2348 = vmul.f32 %v2315, %v2325
        %v2349 = vmul.f32 %v2316, %v2325
        %v2350 = vmul.f32 %v2317, %v2325
        %v2351 = vmul.f32 %v2318, %v2325
        %v2352 = vmul.f32 %v2319, %v2325
        %v2353 = vmul.f32 %v2320, %v2325
        %v2354 = vmul.f32 %v2321, %v2325
        %v2355 = vmul.f32 %v2322, %v2325
        %v2356 = vmul.f32 %v2323, %v2325
        %v2357 = vmul.f32 %v2324, %v2325
        %v2358 = vadd.f32 %v2261, %v2326
        %v2359 = vadd.f32 %v2262, %v2327
        %v2360 = vadd.f32 %v2263, %v2328
        %v2361 = vadd.f32 %v2264, %v2329
        %v2362 = vadd.f32 %v2265, %v2330
        %v2363 = vadd.f32 %v2266, %v2331
        %v2364 = vadd.f32 %v2267, %v2332
        %v2365 = vadd.f32 %v2268, %v2333
        %v2366 = vadd.f32 %v2269, %v2334
        %v2367 = vadd.f32 %v2270, %v2335
        %v2368 = vadd.f32 %v2271, %v2336
        %v2369 = vadd.f32 %v2272, %v2337
        %v2370 = vadd.f32 %v2273, %v2338
        %v2371 = vadd.f32 %v2274, %v2339
        %v2372 = vadd.f32 %v2275, %v2340
        %v2373 = vadd.f32 %v2276, %v2341
        %v2374 = vadd.f32 %v2277, %v2342
        %v2375 = vadd.f32 %v2278, %v2343
        %v2376 = vadd.f32 %v2279, %v2344
        %v2377 = vadd.f32 %v2280, %v2345
        %v2378 = vadd.f32 %v2281, %v2346
        %v2379 = vadd.f32 %v2282, %v2347
        %v2380 = vadd.f32 %v2283, %v2348
        %v2381 = vadd.f32 %v2284, %v2349
        %v2382 = vadd.f32 %v2285, %v2350
        %v2383 = vadd.f32 %v2286, %v2351
        %v2384 = vadd.f32 %v2287, %v2352
        %v2385 = vadd.f32 %v2288, %v2353
        %v2386 = vadd.f32 %v2289, %v2354
        %v2387 = vadd.f32 %v2290, %v2355
        %v2388 = vadd.f32 %v2291, %v2356
        %v2389 = vadd.f32 %v2292, %v2357
        %v2390 = vld [vmem:[%s2063] sm:$0xff]
        %v2391 = vld [vmem:[%s2063 + $0x8] sm:$0xff]
        %v2392 = vld [vmem:[%s2063 + $0x18] sm:$0xff]
        %v2393 = vld [vmem:[%s2063 + $0x20] sm:$0xff]
        %v2394 = vld [vmem:[%s2063 + $0x30] sm:$0xff]
        %v2395 = vld [vmem:[%s2063 + $0x38] sm:$0xff]
        %v2396 = vld [vmem:[%s2063 + $0x48] sm:$0xff]
        %v2397 = vld [vmem:[%s2063 + $0x50] sm:$0xff]
        %v2398 = vld [vmem:[%s2063 + $0x60] sm:$0xff]
        %v2399 = vld [vmem:[%s2063 + $0x68] sm:$0xff]
        %v2400 = vld [vmem:[%s2063 + $0x78] sm:$0xff]
        %v2401 = vld [vmem:[%s2063 + $0x80] sm:$0xff]
        %v2402 = vld [vmem:[%s2063 + $0x90] sm:$0xff]
        %v2403 = vld [vmem:[%s2063 + $0x98] sm:$0xff]
        %v2404 = vld [vmem:[%s2063 + $0xa8] sm:$0xff]
        %v2405 = vld [vmem:[%s2063 + $0xb0] sm:$0xff]
        %v2406 = vld [vmem:[%s2063 + $0xc0] sm:$0xff]
        %v2407 = vld [vmem:[%s2063 + $0xc8] sm:$0xff]
        %v2408 = vld [vmem:[%s2063 + $0xd8] sm:$0xff]
        %v2409 = vld [vmem:[%s2063 + $0xe0] sm:$0xff]
        %v2410 = vld [vmem:[%s2063 + $0xf0] sm:$0xff]
        %v2411 = vld [vmem:[%s2063 + $0xf8] sm:$0xff]
        %v2412 = vld [vmem:[%s2063 + $0x108] sm:$0xff]
        %v2413 = vld [vmem:[%s2063 + $0x110] sm:$0xff]
        %v2414 = vld [vmem:[%s2063 + $0x120] sm:$0xff]
        %v2415 = vld [vmem:[%s2063 + $0x128] sm:$0xff]
        %v2416 = vld [vmem:[%s2063 + $0x138] sm:$0xff]
        %v2417 = vld [vmem:[%s2063 + $0x140] sm:$0xff]
        %v2418 = vld [vmem:[%s2063 + $0x150] sm:$0xff]
        %v2419 = vld [vmem:[%s2063 + $0x158] sm:$0xff]
        %v2420 = vld [vmem:[%s2063 + $0x168] sm:$0xff]
        %v2421 = vld [vmem:[%s2063 + $0x170] sm:$0xff]
        %v2422 = vperm.slane %v2097, 0
        %v2423 = vmul.f32 %v2390, %v2422
        %v2424 = vmul.f32 %v2391, %v2422
        %v2425 = vmul.f32 %v2392, %v2422
        %v2426 = vmul.f32 %v2393, %v2422
        %v2427 = vmul.f32 %v2394, %v2422
        %v2428 = vmul.f32 %v2395, %v2422
        %v2429 = vmul.f32 %v2396, %v2422
        %v2430 = vmul.f32 %v2397, %v2422
        %v2431 = vmul.f32 %v2398, %v2422
        %v2432 = vmul.f32 %v2399, %v2422
        %v2433 = vmul.f32 %v2400, %v2422
        %v2434 = vmul.f32 %v2401, %v2422
        %v2435 = vmul.f32 %v2402, %v2422
        %v2436 = vmul.f32 %v2403, %v2422
        %v2437 = vmul.f32 %v2404, %v2422
        %v2438 = vmul.f32 %v2405, %v2422
        %v2439 = vmul.f32 %v2406, %v2422
        %v2440 = vmul.f32 %v2407, %v2422
        %v2441 = vmul.f32 %v2408, %v2422
        %v2442 = vmul.f32 %v2409, %v2422
        %v2443 = vmul.f32 %v2410, %v2422
        %v2444 = vmul.f32 %v2411, %v2422
        %v2445 = vmul.f32 %v2412, %v2422
        %v2446 = vmul.f32 %v2413, %v2422
        %v2447 = vmul.f32 %v2414, %v2422
        %v2448 = vmul.f32 %v2415, %v2422
        %v2449 = vmul.f32 %v2416, %v2422
        %v2450 = vmul.f32 %v2417, %v2422
        %v2451 = vmul.f32 %v2418, %v2422
        %v2452 = vmul.f32 %v2419, %v2422
        %v2453 = vmul.f32 %v2420, %v2422
        %v2454 = vmul.f32 %v2421, %v2422
        %v2455 = vadd.f32 %v2358, %v2423
        %v2456 = vadd.f32 %v2359, %v2424
        %v2457 = vadd.f32 %v2360, %v2425
        %v2458 = vadd.f32 %v2361, %v2426
        %v2459 = vadd.f32 %v2362, %v2427
        %v2460 = vadd.f32 %v2363, %v2428
        %v2461 = vadd.f32 %v2364, %v2429
        %v2462 = vadd.f32 %v2365, %v2430
        %v2463 = vadd.f32 %v2366, %v2431
        %v2464 = vadd.f32 %v2367, %v2432
        %v2465 = vadd.f32 %v2368, %v2433
        %v2466 = vadd.f32 %v2369, %v2434
        %v2467 = vadd.f32 %v2370, %v2435
        %v2468 = vadd.f32 %v2371, %v2436
        %v2469 = vadd.f32 %v2372, %v2437
        %v2470 = vadd.f32 %v2373, %v2438
        %v2471 = vadd.f32 %v2374, %v2439
        %v2472 = vadd.f32 %v2375, %v2440
        %v2473 = vadd.f32 %v2376, %v2441
        %v2474 = vadd.f32 %v2377, %v2442
        %v2475 = vadd.f32 %v2378, %v2443
        %v2476 = vadd.f32 %v2379, %v2444
        %v2477 = vadd.f32 %v2380, %v2445
        %v2478 = vadd.f32 %v2381, %v2446
        %v2479 = vadd.f32 %v2382, %v2447
        %v2480 = vadd.f32 %v2383, %v2448
        %v2481 = vadd.f32 %v2384, %v2449
        %v2482 = vadd.f32 %v2385, %v2450
        %v2483 = vadd.f32 %v2386, %v2451
        %v2484 = vadd.f32 %v2387, %v2452
        %v2485 = vadd.f32 %v2388, %v2453
        %v2486 = vadd.f32 %v2389, %v2454
        %v2487 = vld [vmem:[%s2063 + $0x1] sm:$0xff]
        %v2488 = vld [vmem:[%s2063 + $0x9] sm:$0xff]
        %v2489 = vld [vmem:[%s2063 + $0x19] sm:$0xff]
        %v2490 = vld [vmem:[%s2063 + $0x21] sm:$0xff]
        %v2491 = vld [vmem:[%s2063 + $0x31] sm:$0xff]
        %v2492 = vld [vmem:[%s2063 + $0x39] sm:$0xff]
        %v2493 = vld [vmem:[%s2063 + $0x49] sm:$0xff]
        %v2494 = vld [vmem:[%s2063 + $0x51] sm:$0xff]
        %v2495 = vld [vmem:[%s2063 + $0x61] sm:$0xff]
        %v2496 = vld [vmem:[%s2063 + $0x69] sm:$0xff]
        %v2497 = vld [vmem:[%s2063 + $0x79] sm:$0xff]
        %v2498 = vld [vmem:[%s2063 + $0x81] sm:$0xff]
        %v2499 = vld [vmem:[%s2063 + $0x91] sm:$0xff]
        %v2500 = vld [vmem:[%s2063 + $0x99] sm:$0xff]
        %v2501 = vld [vmem:[%s2063 + $0xa9] sm:$0xff]
        %v2502 = vld [vmem:[%s2063 + $0xb1] sm:$0xff]
        %v2503 = vld [vmem:[%s2063 + $0xc1] sm:$0xff]
        %v2504 = vld [vmem:[%s2063 + $0xc9] sm:$0xff]
        %v2505 = vld [vmem:[%s2063 + $0xd9] sm:$0xff]
        %v2506 = vld [vmem:[%s2063 + $0xe1] sm:$0xff]
        %v2507 = vld [vmem:[%s2063 + $0xf1] sm:$0xff]
        %v2508 = vld [vmem:[%s2063 + $0xf9] sm:$0xff]
        %v2509 = vld [vmem:[%s2063 + $0x109] sm:$0xff]
        %v2510 = vld [vmem:[%s2063 + $0x111] sm:$0xff]
        %v2511 = vld [vmem:[%s2063 + $0x121] sm:$0xff]
        %v2512 = vld [vmem:[%s2063 + $0x129] sm:$0xff]
        %v2513 = vld [vmem:[%s2063 + $0x139] sm:$0xff]
        %v2514 = vld [vmem:[%s2063 + $0x141] sm:$0xff]
        %v2515 = vld [vmem:[%s2063 + $0x151] sm:$0xff]
        %v2516 = vld [vmem:[%s2063 + $0x159] sm:$0xff]
        %v2517 = vld [vmem:[%s2063 + $0x169] sm:$0xff]
        %v2518 = vld [vmem:[%s2063 + $0x171] sm:$0xff]
        %v2519 = vperm.slane %v2097, 1
        %v2520 = vmul.f32 %v2487, %v2519
        %v2521 = vmul.f32 %v2488, %v2519
        %v2522 = vmul.f32 %v2489, %v2519
        %v2523 = vmul.f32 %v2490, %v2519
        %v2524 = vmul.f32 %v2491, %v2519
        %v2525 = vmul.f32 %v2492, %v2519
        %v2526 = vmul.f32 %v2493, %v2519
        %v2527 = vmul.f32 %v2494, %v2519
        %v2528 = vmul.f32 %v2495, %v2519
        %v2529 = vmul.f32 %v2496, %v2519
        %v2530 = vmul.f32 %v2497, %v2519
        %v2531 = vmul.f32 %v2498, %v2519
        %v2532 = vmul.f32 %v2499, %v2519
        %v2533 = vmul.f32 %v2500, %v2519
        %v2534 = vmul.f32 %v2501, %v2519
        %v2535 = vmul.f32 %v2502, %v2519
        %v2536 = vmul.f32 %v2503, %v2519
        %v2537 = vmul.f32 %v2504, %v2519
        %v2538 = vmul.f32 %v2505, %v2519
        %v2539 = vmul.f32 %v2506, %v2519
        %v2540 = vmul.f32 %v2507, %v2519
        %v2541 = vmul.f32 %v2508, %v2519
        %v2542 = vmul.f32 %v2509, %v2519
        %v2543 = vmul.f32 %v2510, %v2519
        %v2544 = vmul.f32 %v2511, %v2519
        %v2545 = vmul.f32 %v2512, %v2519
        %v2546 = vmul.f32 %v2513, %v2519
        %v2547 = vmul.f32 %v2514, %v2519
        %v2548 = vmul.f32 %v2515, %v2519
        %v2549 = vmul.f32 %v2516, %v2519
        %v2550 = vmul.f32 %v2517, %v2519
        %v2551 = vmul.f32 %v2518, %v2519
        %v2552 = vadd.f32 %v2455, %v2520
        %v2553 = vadd.f32 %v2456, %v2521
        %v2554 = vadd.f32 %v2457, %v2522
        %v2555 = vadd.f32 %v2458, %v2523
        %v2556 = vadd.f32 %v2459, %v2524
        %v2557 = vadd.f32 %v2460, %v2525
        %v2558 = vadd.f32 %v2461, %v2526
        %v2559 = vadd.f32 %v2462, %v2527
        %v2560 = vadd.f32 %v2463, %v2528
        %v2561 = vadd.f32 %v2464, %v2529
        %v2562 = vadd.f32 %v2465, %v2530
        %v2563 = vadd.f32 %v2466, %v2531
        %v2564 = vadd.f32 %v2467, %v2532
        %v2565 = vadd.f32 %v2468, %v2533
        %v2566 = vadd.f32 %v2469, %v2534
        %v2567 = vadd.f32 %v2470, %v2535
        %v2568 = vadd.f32 %v2471, %v2536
        %v2569 = vadd.f32 %v2472, %v2537
        %v2570 = vadd.f32 %v2473, %v2538
        %v2571 = vadd.f32 %v2474, %v2539
        %v2572 = vadd.f32 %v2475, %v2540
        %v2573 = vadd.f32 %v2476, %v2541
        %v2574 = vadd.f32 %v2477, %v2542
        %v2575 = vadd.f32 %v2478, %v2543
        %v2576 = vadd.f32 %v2479, %v2544
        %v2577 = vadd.f32 %v2480, %v2545
        %v2578 = vadd.f32 %v2481, %v2546
        %v2579 = vadd.f32 %v2482, %v2547
        %v2580 = vadd.f32 %v2483, %v2548
        %v2581 = vadd.f32 %v2484, %v2549
        %v2582 = vadd.f32 %v2485, %v2550
        %v2583 = vadd.f32 %v2486, %v2551
        %v2584 = vld [vmem:[%s2063 + $0x2] sm:$0xff]
        %v2585 = vld [vmem:[%s2063 + $0xa] sm:$0xff]
        %v2586 = vld [vmem:[%s2063 + $0x1a] sm:$0xff]
        %v2587 = vld [vmem:[%s2063 + $0x22] sm:$0xff]
        %v2588 = vld [vmem:[%s2063 + $0x32] sm:$0xff]
        %v2589 = vld [vmem:[%s2063 + $0x3a] sm:$0xff]
        %v2590 = vld [vmem:[%s2063 + $0x4a] sm:$0xff]
        %v2591 = vld [vmem:[%s2063 + $0x52] sm:$0xff]
        %v2592 = vld [vmem:[%s2063 + $0x62] sm:$0xff]
        %v2593 = vld [vmem:[%s2063 + $0x6a] sm:$0xff]
        %v2594 = vld [vmem:[%s2063 + $0x7a] sm:$0xff]
        %v2595 = vld [vmem:[%s2063 + $0x82] sm:$0xff]
        %v2596 = vld [vmem:[%s2063 + $0x92] sm:$0xff]
        %v2597 = vld [vmem:[%s2063 + $0x9a] sm:$0xff]
        %v2598 = vld [vmem:[%s2063 + $0xaa] sm:$0xff]
        %v2599 = vld [vmem:[%s2063 + $0xb2] sm:$0xff]
        %v2600 = vld [vmem:[%s2063 + $0xc2] sm:$0xff]
        %v2601 = vld [vmem:[%s2063 + $0xca] sm:$0xff]
        %v2602 = vld [vmem:[%s2063 + $0xda] sm:$0xff]
        %v2603 = vld [vmem:[%s2063 + $0xe2] sm:$0xff]
        %v2604 = vld [vmem:[%s2063 + $0xf2] sm:$0xff]
        %v2605 = vld [vmem:[%s2063 + $0xfa] sm:$0xff]
        %v2606 = vld [vmem:[%s2063 + $0x10a] sm:$0xff]
        %v2607 = vld [vmem:[%s2063 + $0x112] sm:$0xff]
        %v2608 = vld [vmem:[%s2063 + $0x122] sm:$0xff]
        %v2609 = vld [vmem:[%s2063 + $0x12a] sm:$0xff]
        %v2610 = vld [vmem:[%s2063 + $0x13a] sm:$0xff]
        %v2611 = vld [vmem:[%s2063 + $0x142] sm:$0xff]
        %v2612 = vld [vmem:[%s2063 + $0x152] sm:$0xff]
        %v2613 = vld [vmem:[%s2063 + $0x15a] sm:$0xff]
        %v2614 = vld [vmem:[%s2063 + $0x16a] sm:$0xff]
        %v2615 = vld [vmem:[%s2063 + $0x172] sm:$0xff]
        %v2616 = vperm.slane %v2097, 2
        %v2617 = vmul.f32 %v2584, %v2616
        %v2618 = vmul.f32 %v2585, %v2616
        %v2619 = vmul.f32 %v2586, %v2616
        %v2620 = vmul.f32 %v2587, %v2616
        %v2621 = vmul.f32 %v2588, %v2616
        %v2622 = vmul.f32 %v2589, %v2616
        %v2623 = vmul.f32 %v2590, %v2616
        %v2624 = vmul.f32 %v2591, %v2616
        %v2625 = vmul.f32 %v2592, %v2616
        %v2626 = vmul.f32 %v2593, %v2616
        %v2627 = vmul.f32 %v2594, %v2616
        %v2628 = vmul.f32 %v2595, %v2616
        %v2629 = vmul.f32 %v2596, %v2616
        %v2630 = vmul.f32 %v2597, %v2616
        %v2631 = vmul.f32 %v2598, %v2616
        %v2632 = vmul.f32 %v2599, %v2616
        %v2633 = vmul.f32 %v2600, %v2616
        %v2634 = vmul.f32 %v2601, %v2616
        %v2635 = vmul.f32 %v2602, %v2616
        %v2636 = vmul.f32 %v2603, %v2616
        %v2637 = vmul.f32 %v2604, %v2616
        %v2638 = vmul.f32 %v2605, %v2616
        %v2639 = vmul.f32 %v2606, %v2616
        %v2640 = vmul.f32 %v2607, %v2616
        %v2641 = vmul.f32 %v2608, %v2616
        %v2642 = vmul.f32 %v2609, %v2616
        %v2643 = vmul.f32 %v2610, %v2616
        %v2644 = vmul.f32 %v2611, %v2616
        %v2645 = vmul.f32 %v2612, %v2616
        %v2646 = vmul.f32 %v2613, %v2616
        %v2647 = vmul.f32 %v2614, %v2616
        %v2648 = vmul.f32 %v2615, %v2616
        %v2649 = vadd.f32 %v2552, %v2617
        %v2650 = vadd.f32 %v2553, %v2618
        %v2651 = vadd.f32 %v2554, %v2619
        %v2652 = vadd.f32 %v2555, %v2620
        %v2653 = vadd.f32 %v2556, %v2621
        %v2654 = vadd.f32 %v2557, %v2622
        %v2655 = vadd.f32 %v2558, %v2623
        %v2656 = vadd.f32 %v2559, %v2624
        %v2657 = vadd.f32 %v2560, %v2625
        %v2658 = vadd.f32 %v2561, %v2626
        %v2659 = vadd.f32 %v2562, %v2627
        %v2660 = vadd.f32 %v2563, %v2628
        %v2661 = vadd.f32 %v2564, %v2629
        %v2662 = vadd.f32 %v2565, %v2630
        %v2663 = vadd.f32 %v2566, %v2631
        %v2664 = vadd.f32 %v2567, %v2632
        %v2665 = vadd.f32 %v2568, %v2633
        %v2666 = vadd.f32 %v2569, %v2634
        %v2667 = vadd.f32 %v2570, %v2635
        %v2668 = vadd.f32 %v2571, %v2636
        %v2669 = vadd.f32 %v2572, %v2637
        %v2670 = vadd.f32 %v2573, %v2638
        %v2671 = vadd.f32 %v2574, %v2639
        %v2672 = vadd.f32 %v2575, %v2640
        %v2673 = vadd.f32 %v2576, %v2641
        %v2674 = vadd.f32 %v2577, %v2642
        %v2675 = vadd.f32 %v2578, %v2643
        %v2676 = vadd.f32 %v2579, %v2644
        %v2677 = vadd.f32 %v2580, %v2645
        %v2678 = vadd.f32 %v2581, %v2646
        %v2679 = vadd.f32 %v2582, %v2647
        %v2680 = vadd.f32 %v2583, %v2648
        %s2681 = scalar_lea.vmem [#allocation2], 48
        %v2682 = vld [vmem:[%s2681] sm:$0xff]
        %v2683 = vld [vmem:[%s2681 + $0x8] sm:$0xff]
        %v2684 = vld [vmem:[%s2681 + $0x18] sm:$0xff]
        %v2685 = vld [vmem:[%s2681 + $0x20] sm:$0xff]
        %v2686 = vld [vmem:[%s2681 + $0x30] sm:$0xff]
        %v2687 = vld [vmem:[%s2681 + $0x38] sm:$0xff]
        %v2688 = vld [vmem:[%s2681 + $0x48] sm:$0xff]
        %v2689 = vld [vmem:[%s2681 + $0x50] sm:$0xff]
        %v2690 = vld [vmem:[%s2681 + $0x60] sm:$0xff]
        %v2691 = vld [vmem:[%s2681 + $0x68] sm:$0xff]
        %v2692 = vld [vmem:[%s2681 + $0x78] sm:$0xff]
        %v2693 = vld [vmem:[%s2681 + $0x80] sm:$0xff]
        %v2694 = vld [vmem:[%s2681 + $0x90] sm:$0xff]
        %v2695 = vld [vmem:[%s2681 + $0x98] sm:$0xff]
        %v2696 = vld [vmem:[%s2681 + $0xa8] sm:$0xff]
        %v2697 = vld [vmem:[%s2681 + $0xb0] sm:$0xff]
        %v2698 = vld [vmem:[%s2681 + $0xc0] sm:$0xff]
        %v2699 = vld [vmem:[%s2681 + $0xc8] sm:$0xff]
        %v2700 = vld [vmem:[%s2681 + $0xd8] sm:$0xff]
        %v2701 = vld [vmem:[%s2681 + $0xe0] sm:$0xff]
        %v2702 = vld [vmem:[%s2681 + $0xf0] sm:$0xff]
        %v2703 = vld [vmem:[%s2681 + $0xf8] sm:$0xff]
        %v2704 = vld [vmem:[%s2681 + $0x108] sm:$0xff]
        %v2705 = vld [vmem:[%s2681 + $0x110] sm:$0xff]
        %v2706 = vld [vmem:[%s2681 + $0x120] sm:$0xff]
        %v2707 = vld [vmem:[%s2681 + $0x128] sm:$0xff]
        %v2708 = vld [vmem:[%s2681 + $0x138] sm:$0xff]
        %v2709 = vld [vmem:[%s2681 + $0x140] sm:$0xff]
        %v2710 = vld [vmem:[%s2681 + $0x150] sm:$0xff]
        %v2711 = vld [vmem:[%s2681 + $0x158] sm:$0xff]
        %v2712 = vld [vmem:[%s2681 + $0x168] sm:$0xff]
        %v2713 = vld [vmem:[%s2681 + $0x170] sm:$0xff]
        %v2714 = vperm.slane %v2098, 0
        %v2715 = vmul.f32 %v2682, %v2714
        %v2716 = vmul.f32 %v2683, %v2714
        %v2717 = vmul.f32 %v2684, %v2714
        %v2718 = vmul.f32 %v2685, %v2714
        %v2719 = vmul.f32 %v2686, %v2714
        %v2720 = vmul.f32 %v2687, %v2714
        %v2721 = vmul.f32 %v2688, %v2714
        %v2722 = vmul.f32 %v2689, %v2714
        %v2723 = vmul.f32 %v2690, %v2714
        %v2724 = vmul.f32 %v2691, %v2714
        %v2725 = vmul.f32 %v2692, %v2714
        %v2726 = vmul.f32 %v2693, %v2714
        %v2727 = vmul.f32 %v2694, %v2714
        %v2728 = vmul.f32 %v2695, %v2714
        %v2729 = vmul.f32 %v2696, %v2714
        %v2730 = vmul.f32 %v2697, %v2714
        %v2731 = vmul.f32 %v2698, %v2714
        %v2732 = vmul.f32 %v2699, %v2714
        %v2733 = vmul.f32 %v2700, %v2714
        %v2734 = vmul.f32 %v2701, %v2714
        %v2735 = vmul.f32 %v2702, %v2714
        %v2736 = vmul.f32 %v2703, %v2714
        %v2737 = vmul.f32 %v2704, %v2714
        %v2738 = vmul.f32 %v2705, %v2714
        %v2739 = vmul.f32 %v2706, %v2714
        %v2740 = vmul.f32 %v2707, %v2714
        %v2741 = vmul.f32 %v2708, %v2714
        %v2742 = vmul.f32 %v2709, %v2714
        %v2743 = vmul.f32 %v2710, %v2714
        %v2744 = vmul.f32 %v2711, %v2714
        %v2745 = vmul.f32 %v2712, %v2714
        %v2746 = vmul.f32 %v2713, %v2714
        %v2747 = vadd.f32 %v2649, %v2715
        %v2748 = vadd.f32 %v2650, %v2716
        %v2749 = vadd.f32 %v2651, %v2717
        %v2750 = vadd.f32 %v2652, %v2718
        %v2751 = vadd.f32 %v2653, %v2719
        %v2752 = vadd.f32 %v2654, %v2720
        %v2753 = vadd.f32 %v2655, %v2721
        %v2754 = vadd.f32 %v2656, %v2722
        %v2755 = vadd.f32 %v2657, %v2723
        %v2756 = vadd.f32 %v2658, %v2724
        %v2757 = vadd.f32 %v2659, %v2725
        %v2758 = vadd.f32 %v2660, %v2726
        %v2759 = vadd.f32 %v2661, %v2727
        %v2760 = vadd.f32 %v2662, %v2728
        %v2761 = vadd.f32 %v2663, %v2729
        %v2762 = vadd.f32 %v2664, %v2730
        %v2763 = vadd.f32 %v2665, %v2731
        %v2764 = vadd.f32 %v2666, %v2732
        %v2765 = vadd.f32 %v2667, %v2733
        %v2766 = vadd.f32 %v2668, %v2734
        %v2767 = vadd.f32 %v2669, %v2735
        %v2768 = vadd.f32 %v2670, %v2736
        %v2769 = vadd.f32 %v2671, %v2737
        %v2770 = vadd.f32 %v2672, %v2738
        %v2771 = vadd.f32 %v2673, %v2739
        %v2772 = vadd.f32 %v2674, %v2740
        %v2773 = vadd.f32 %v2675, %v2741
        %v2774 = vadd.f32 %v2676, %v2742
        %v2775 = vadd.f32 %v2677, %v2743
        %v2776 = vadd.f32 %v2678, %v2744
        %v2777 = vadd.f32 %v2679, %v2745
        %v2778 = vadd.f32 %v2680, %v2746
        %v2779 = vld [vmem:[%s2681 + $0x1] sm:$0xff]
        %v2780 = vld [vmem:[%s2681 + $0x9] sm:$0xff]
        %v2781 = vld [vmem:[%s2681 + $0x19] sm:$0xff]
        %v2782 = vld [vmem:[%s2681 + $0x21] sm:$0xff]
        %v2783 = vld [vmem:[%s2681 + $0x31] sm:$0xff]
        %v2784 = vld [vmem:[%s2681 + $0x39] sm:$0xff]
        %v2785 = vld [vmem:[%s2681 + $0x49] sm:$0xff]
        %v2786 = vld [vmem:[%s2681 + $0x51] sm:$0xff]
        %v2787 = vld [vmem:[%s2681 + $0x61] sm:$0xff]
        %v2788 = vld [vmem:[%s2681 + $0x69] sm:$0xff]
        %v2789 = vld [vmem:[%s2681 + $0x79] sm:$0xff]
        %v2790 = vld [vmem:[%s2681 + $0x81] sm:$0xff]
        %v2791 = vld [vmem:[%s2681 + $0x91] sm:$0xff]
        %v2792 = vld [vmem:[%s2681 + $0x99] sm:$0xff]
        %v2793 = vld [vmem:[%s2681 + $0xa9] sm:$0xff]
        %v2794 = vld [vmem:[%s2681 + $0xb1] sm:$0xff]
        %v2795 = vld [vmem:[%s2681 + $0xc1] sm:$0xff]
        %v2796 = vld [vmem:[%s2681 + $0xc9] sm:$0xff]
        %v2797 = vld [vmem:[%s2681 + $0xd9] sm:$0xff]
        %v2798 = vld [vmem:[%s2681 + $0xe1] sm:$0xff]
        %v2799 = vld [vmem:[%s2681 + $0xf1] sm:$0xff]
        %v2800 = vld [vmem:[%s2681 + $0xf9] sm:$0xff]
        %v2801 = vld [vmem:[%s2681 + $0x109] sm:$0xff]
        %v2802 = vld [vmem:[%s2681 + $0x111] sm:$0xff]
        %v2803 = vld [vmem:[%s2681 + $0x121] sm:$0xff]
        %v2804 = vld [vmem:[%s2681 + $0x129] sm:$0xff]
        %v2805 = vld [vmem:[%s2681 + $0x139] sm:$0xff]
        %v2806 = vld [vmem:[%s2681 + $0x141] sm:$0xff]
        %v2807 = vld [vmem:[%s2681 + $0x151] sm:$0xff]
        %v2808 = vld [vmem:[%s2681 + $0x159] sm:$0xff]
        %v2809 = vld [vmem:[%s2681 + $0x169] sm:$0xff]
        %v2810 = vld [vmem:[%s2681 + $0x171] sm:$0xff]
        %v2811 = vperm.slane %v2098, 1
        %v2812 = vmul.f32 %v2779, %v2811
        %v2813 = vmul.f32 %v2780, %v2811
        %v2814 = vmul.f32 %v2781, %v2811
        %v2815 = vmul.f32 %v2782, %v2811
        %v2816 = vmul.f32 %v2783, %v2811
        %v2817 = vmul.f32 %v2784, %v2811
        %v2818 = vmul.f32 %v2785, %v2811
        %v2819 = vmul.f32 %v2786, %v2811
        %v2820 = vmul.f32 %v2787, %v2811
        %v2821 = vmul.f32 %v2788, %v2811
        %v2822 = vmul.f32 %v2789, %v2811
        %v2823 = vmul.f32 %v2790, %v2811
        %v2824 = vmul.f32 %v2791, %v2811
        %v2825 = vmul.f32 %v2792, %v2811
        %v2826 = vmul.f32 %v2793, %v2811
        %v2827 = vmul.f32 %v2794, %v2811
        %v2828 = vmul.f32 %v2795, %v2811
        %v2829 = vmul.f32 %v2796, %v2811
        %v2830 = vmul.f32 %v2797, %v2811
        %v2831 = vmul.f32 %v2798, %v2811
        %v2832 = vmul.f32 %v2799, %v2811
        %v2833 = vmul.f32 %v2800, %v2811
        %v2834 = vmul.f32 %v2801, %v2811
        %v2835 = vmul.f32 %v2802, %v2811
        %v2836 = vmul.f32 %v2803, %v2811
        %v2837 = vmul.f32 %v2804, %v2811
        %v2838 = vmul.f32 %v2805, %v2811
        %v2839 = vmul.f32 %v2806, %v2811
        %v2840 = vmul.f32 %v2807, %v2811
        %v2841 = vmul.f32 %v2808, %v2811
        %v2842 = vmul.f32 %v2809, %v2811
        %v2843 = vmul.f32 %v2810, %v2811
        %v2844 = vadd.f32 %v2747, %v2812
        %v2845 = vadd.f32 %v2748, %v2813
        %v2846 = vadd.f32 %v2749, %v2814
        %v2847 = vadd.f32 %v2750, %v2815
        %v2848 = vadd.f32 %v2751, %v2816
        %v2849 = vadd.f32 %v2752, %v2817
        %v2850 = vadd.f32 %v2753, %v2818
        %v2851 = vadd.f32 %v2754, %v2819
        %v2852 = vadd.f32 %v2755, %v2820
        %v2853 = vadd.f32 %v2756, %v2821
        %v2854 = vadd.f32 %v2757, %v2822
        %v2855 = vadd.f32 %v2758, %v2823
        %v2856 = vadd.f32 %v2759, %v2824
        %v2857 = vadd.f32 %v2760, %v2825
        %v2858 = vadd.f32 %v2761, %v2826
        %v2859 = vadd.f32 %v2762, %v2827
        %v2860 = vadd.f32 %v2763, %v2828
        %v2861 = vadd.f32 %v2764, %v2829
        %v2862 = vadd.f32 %v2765, %v2830
        %v2863 = vadd.f32 %v2766, %v2831
        %v2864 = vadd.f32 %v2767, %v2832
        %v2865 = vadd.f32 %v2768, %v2833
        %v2866 = vadd.f32 %v2769, %v2834
        %v2867 = vadd.f32 %v2770, %v2835
        %v2868 = vadd.f32 %v2771, %v2836
        %v2869 = vadd.f32 %v2772, %v2837
        %v2870 = vadd.f32 %v2773, %v2838
        %v2871 = vadd.f32 %v2774, %v2839
        %v2872 = vadd.f32 %v2775, %v2840
        %v2873 = vadd.f32 %v2776, %v2841
        %v2874 = vadd.f32 %v2777, %v2842
        %v2875 = vadd.f32 %v2778, %v2843
        %v2876 = vld [vmem:[%s2681 + $0x2] sm:$0xff]
        %v2877 = vld [vmem:[%s2681 + $0xa] sm:$0xff]
        %v2878 = vld [vmem:[%s2681 + $0x1a] sm:$0xff]
        %v2879 = vld [vmem:[%s2681 + $0x22] sm:$0xff]
        %v2880 = vld [vmem:[%s2681 + $0x32] sm:$0xff]
        %v2881 = vld [vmem:[%s2681 + $0x3a] sm:$0xff]
        %v2882 = vld [vmem:[%s2681 + $0x4a] sm:$0xff]
        %v2883 = vld [vmem:[%s2681 + $0x52] sm:$0xff]
        %v2884 = vld [vmem:[%s2681 + $0x62] sm:$0xff]
        %v2885 = vld [vmem:[%s2681 + $0x6a] sm:$0xff]
        %v2886 = vld [vmem:[%s2681 + $0x7a] sm:$0xff]
        %v2887 = vld [vmem:[%s2681 + $0x82] sm:$0xff]
        %v2888 = vld [vmem:[%s2681 + $0x92] sm:$0xff]
        %v2889 = vld [vmem:[%s2681 + $0x9a] sm:$0xff]
        %v2890 = vld [vmem:[%s2681 + $0xaa] sm:$0xff]
        %v2891 = vld [vmem:[%s2681 + $0xb2] sm:$0xff]
        %v2892 = vld [vmem:[%s2681 + $0xc2] sm:$0xff]
        %v2893 = vld [vmem:[%s2681 + $0xca] sm:$0xff]
        %v2894 = vld [vmem:[%s2681 + $0xda] sm:$0xff]
        %v2895 = vld [vmem:[%s2681 + $0xe2] sm:$0xff]
        %v2896 = vld [vmem:[%s2681 + $0xf2] sm:$0xff]
        %v2897 = vld [vmem:[%s2681 + $0xfa] sm:$0xff]
        %v2898 = vld [vmem:[%s2681 + $0x10a] sm:$0xff]
        %v2899 = vld [vmem:[%s2681 + $0x112] sm:$0xff]
        %v2900 = vld [vmem:[%s2681 + $0x122] sm:$0xff]
        %v2901 = vld [vmem:[%s2681 + $0x12a] sm:$0xff]
        %v2902 = vld [vmem:[%s2681 + $0x13a] sm:$0xff]
        %v2903 = vld [vmem:[%s2681 + $0x142] sm:$0xff]
        %v2904 = vld [vmem:[%s2681 + $0x152] sm:$0xff]
        %v2905 = vld [vmem:[%s2681 + $0x15a] sm:$0xff]
        %v2906 = vld [vmem:[%s2681 + $0x16a] sm:$0xff]
        %v2907 = vld [vmem:[%s2681 + $0x172] sm:$0xff]
        %v2908 = vperm.slane %v2098, 2
        %v2909 = vmul.f32 %v2876, %v2908
        %v2910 = vmul.f32 %v2877, %v2908
        %v2911 = vmul.f32 %v2878, %v2908
        %v2912 = vmul.f32 %v2879, %v2908
        %v2913 = vmul.f32 %v2880, %v2908
        %v2914 = vmul.f32 %v2881, %v2908
        %v2915 = vmul.f32 %v2882, %v2908
        %v2916 = vmul.f32 %v2883, %v2908
        %v2917 = vmul.f32 %v2884, %v2908
        %v2918 = vmul.f32 %v2885, %v2908
        %v2919 = vmul.f32 %v2886, %v2908
        %v2920 = vmul.f32 %v2887, %v2908
        %v2921 = vmul.f32 %v2888, %v2908
        %v2922 = vmul.f32 %v2889, %v2908
        %v2923 = vmul.f32 %v2890, %v2908
        %v2924 = vmul.f32 %v2891, %v2908
        %v2925 = vmul.f32 %v2892, %v2908
        %v2926 = vmul.f32 %v2893, %v2908
        %v2927 = vmul.f32 %v2894, %v2908
        %v2928 = vmul.f32 %v2895, %v2908
        %v2929 = vmul.f32 %v2896, %v2908
        %v2930 = vmul.f32 %v2897, %v2908
        %v2931 = vmul.f32 %v2898, %v2908
        %v2932 = vmul.f32 %v2899, %v2908
        %v2933 = vmul.f32 %v2900, %v2908
        %v2934 = vmul.f32 %v2901, %v2908
        %v2935 = vmul.f32 %v2902, %v2908
        %v2936 = vmul.f32 %v2903, %v2908
        %v2937 = vmul.f32 %v2904, %v2908
        %v2938 = vmul.f32 %v2905, %v2908
        %v2939 = vmul.f32 %v2906, %v2908
        %v2940 = vmul.f32 %v2907, %v2908
        %v2941 = vadd.f32 %v2844, %v2909
        %v2942 = vadd.f32 %v2845, %v2910
        %v2943 = vadd.f32 %v2846, %v2911
        %v2944 = vadd.f32 %v2847, %v2912
        %v2945 = vadd.f32 %v2848, %v2913
        %v2946 = vadd.f32 %v2849, %v2914
        %v2947 = vadd.f32 %v2850, %v2915
        %v2948 = vadd.f32 %v2851, %v2916
        %v2949 = vadd.f32 %v2852, %v2917
        %v2950 = vadd.f32 %v2853, %v2918
        %v2951 = vadd.f32 %v2854, %v2919
        %v2952 = vadd.f32 %v2855, %v2920
        %v2953 = vadd.f32 %v2856, %v2921
        %v2954 = vadd.f32 %v2857, %v2922
        %v2955 = vadd.f32 %v2858, %v2923
        %v2956 = vadd.f32 %v2859, %v2924
        %v2957 = vadd.f32 %v2860, %v2925
        %v2958 = vadd.f32 %v2861, %v2926
        %v2959 = vadd.f32 %v2862, %v2927
        %v2960 = vadd.f32 %v2863, %v2928
        %v2961 = vadd.f32 %v2864, %v2929
        %v2962 = vadd.f32 %v2865, %v2930
        %v2963 = vadd.f32 %v2866, %v2931
        %v2964 = vadd.f32 %v2867, %v2932
        %v2965 = vadd.f32 %v2868, %v2933
        %v2966 = vadd.f32 %v2869, %v2934
        %v2967 = vadd.f32 %v2870, %v2935
        %v2968 = vadd.f32 %v2871, %v2936
        %v2969 = vadd.f32 %v2872, %v2937
        %v2970 = vadd.f32 %v2873, %v2938
        %v2971 = vadd.f32 %v2874, %v2939
        %v2972 = vadd.f32 %v2875, %v2940
        %v2973 = vld [vmem:[%s4] sm:$0x1]
        %v2975 = vperm.slane %v2973, 0
        %v2977 = vadd.f32 %v2941, %v2975
        %v2978 = vadd.f32 %v2942, %v2975
        %v2979 = vadd.f32 %v2943, %v2975
        %v2980 = vadd.f32 %v2944, %v2975
        %v2981 = vadd.f32 %v2945, %v2975
        %v2982 = vadd.f32 %v2946, %v2975
        %v2983 = vadd.f32 %v2947, %v2975
        %v2984 = vadd.f32 %v2948, %v2975
        %v2985 = vadd.f32 %v2949, %v2975
        %v2986 = vadd.f32 %v2950, %v2975
        %v2987 = vadd.f32 %v2951, %v2975
        %v2988 = vadd.f32 %v2952, %v2975
        %v2989 = vadd.f32 %v2953, %v2975
        %v2990 = vadd.f32 %v2954, %v2975
        %v2991 = vadd.f32 %v2955, %v2975
        %v2992 = vadd.f32 %v2956, %v2975
        %v2993 = vadd.f32 %v2957, %v2975
        %v2994 = vadd.f32 %v2958, %v2975
        %v2995 = vadd.f32 %v2959, %v2975
        %v2996 = vadd.f32 %v2960, %v2975
        %v2997 = vadd.f32 %v2961, %v2975
        %v2998 = vadd.f32 %v2962, %v2975
        %v2999 = vadd.f32 %v2963, %v2975
        %v3000 = vadd.f32 %v2964, %v2975
        %v3001 = vadd.f32 %v2965, %v2975
        %v3002 = vadd.f32 %v2966, %v2975
        %v3003 = vadd.f32 %v2967, %v2975
        %v3004 = vadd.f32 %v2968, %v2975
        %v3005 = vadd.f32 %v2969, %v2975
        %v3006 = vadd.f32 %v2970, %v2975
        %v3007 = vadd.f32 %v2971, %v2975
        %v3008 = vadd.f32 %v2972, %v2975
        %v3009 = vmul.f32 %v2977, 0.5
        %v3010 = vmul.f32 %v2978, 0.5
        %v3011 = vmul.f32 %v2979, 0.5
        %v3012 = vmul.f32 %v2980, 0.5
        %v3013 = vmul.f32 %v2981, 0.5
        %v3014 = vmul.f32 %v2982, 0.5
        %v3015 = vmul.f32 %v2983, 0.5
        %v3016 = vmul.f32 %v2984, 0.5
        %v3017 = vmul.f32 %v2985, 0.5
        %v3018 = vmul.f32 %v2986, 0.5
        %v3019 = vmul.f32 %v2987, 0.5
        %v3020 = vmul.f32 %v2988, 0.5
        %v3021 = vmul.f32 %v2989, 0.5
        %v3022 = vmul.f32 %v2990, 0.5
        %v3023 = vmul.f32 %v2991, 0.5
        %v3024 = vmul.f32 %v2992, 0.5
        %v3025 = vmul.f32 %v2993, 0.5
        %v3026 = vmul.f32 %v2994, 0.5
        %v3027 = vmul.f32 %v2995, 0.5
        %v3028 = vmul.f32 %v2996, 0.5
        %v3029 = vmul.f32 %v2997, 0.5
        %v3030 = vmul.f32 %v2998, 0.5
        %v3031 = vmul.f32 %v2999, 0.5
        %v3032 = vmul.f32 %v3000, 0.5
        %v3033 = vmul.f32 %v3001, 0.5
        %v3034 = vmul.f32 %v3002, 0.5
        %v3035 = vmul.f32 %v3003, 0.5
        %v3036 = vmul.f32 %v3004, 0.5
        %v3037 = vmul.f32 %v3005, 0.5
        %v3038 = vmul.f32 %v3006, 0.5
        %v3039 = vmul.f32 %v3007, 0.5
        %v3040 = vmul.f32 %v3008, 0.5
        %v3041 = vmul.f32 %v2977, 0.70710677
        %v3042 = vmul.f32 %v2978, 0.70710677
        %v3043 = vmul.f32 %v2979, 0.70710677
        %v3044 = vmul.f32 %v2980, 0.70710677
        %v3045 = vmul.f32 %v2981, 0.70710677
        %v3046 = vmul.f32 %v2982, 0.70710677
        %v3047 = vmul.f32 %v2983, 0.70710677
        %v3048 = vmul.f32 %v2984, 0.70710677
        %v3049 = vmul.f32 %v2985, 0.70710677
        %v3050 = vmul.f32 %v2986, 0.70710677
        %v3051 = vmul.f32 %v2987, 0.70710677
        %v3052 = vmul.f32 %v2988, 0.70710677
        %v3053 = vmul.f32 %v2989, 0.70710677
        %v3054 = vmul.f32 %v2990, 0.70710677
        %v3055 = vmul.f32 %v2991, 0.70710677
        %v3056 = vmul.f32 %v2992, 0.70710677
        %v3057 = vmul.f32 %v2993, 0.70710677
        %v3058 = vmul.f32 %v2994, 0.70710677
        %v3059 = vmul.f32 %v2995, 0.70710677
        %v3060 = vmul.f32 %v2996, 0.70710677
        %v3061 = vmul.f32 %v2997, 0.70710677
        %v3062 = vmul.f32 %v2998, 0.70710677
        %v3063 = vmul.f32 %v2999, 0.70710677
        %v3064 = vmul.f32 %v3000, 0.70710677
        %v3065 = vmul.f32 %v3001, 0.70710677
        %v3066 = vmul.f32 %v3002, 0.70710677
        %v3067 = vmul.f32 %v3003, 0.70710677
        %v3068 = vmul.f32 %v3004, 0.70710677
        %v3069 = vmul.f32 %v3005, 0.70710677
        %v3070 = vmul.f32 %v3006, 0.70710677
        %v3071 = vmul.f32 %v3007, 0.70710677
        %v3072 = vmul.f32 %v3008, 0.70710677
        %v3073 = vmul.f32 %v3041, %v3041
        %v3074 = vmin.f32 16.0, %v3073
        %v3075 = vmul.f32 %v3074, 2.1237322e-06
        %v3076 = vadd.f32 %v3075, 0.00028619796
        %v3077 = vmul.f32 %v3074, %v3076
        %v3078 = vadd.f32 %v3077, 0.0036580483
        %v3079 = vmul.f32 %v3074, %v3078
        %v3080 = vadd.f32 %v3079, 0.05243302
        %v3081 = vmul.f32 %v3074, %v3080
        %v3082 = vadd.f32 %v3081, 0.18741608
        %v3083 = vmul.f32 %v3074, %v3082
        %v3084 = vadd.f32 %v3083, 1.1283791
        %v3085 = vmul.f32 %v3041, %v3084
        %v3086 = vmul.f32 %v3074, 3.8918573e-05
        %v3087 = vadd.f32 %v3086, 0.001143296
        %v3088 = vmul.f32 %v3074, %v3087
        %v3089 = vadd.f32 %v3088, 0.014752088
        %v3090 = vmul.f32 %v3074, %v3089
        %v3091 = vadd.f32 %v3090, 0.112945676
        %v3092 = vmul.f32 %v3074, %v3091
        %v3093 = vadd.f32 %v3092, 0.4994258
        %v3094 = vmul.f32 %v3074, %v3093
        %v3095 = vadd.f32 %v3094, 1.0
        %v3096 = vrcp.pop %v3095
        %v3097 = vmul.f32 %v3095, %v3096
        %v3098 = vsub.f32 1.0, %v3097
        %v3099 = vmul.f32 %v3096, %v3098
        %v3100 = vadd.f32 %v3096, %v3099
        %vm3101 = vweird.f32 %v3095
        %vm3102 = vweird.f32 %v3096
        %vm3103 = vmor %vm3101, %vm3102
        %v3104 = vsel %vm3103, %v3096, %v3100
        %v3105 = vand.u32 2147483647, %v3095
        %vm3106 = vcmp.eq.f32.partialorder %v3105, 8.507059e+37
        %v3107 = vand.u32 %v3095, 2147483648
        %v3108 = vor.u32 1.1754944e-38, %v3107
        %v3109 = vsel %vm3106, %v3108, %v3104
        %v3110 = vmul.f32 %v3085, %v3109
        %v3111 = vmin.f32 %v3110, 1.0
        %v3112 = vmax.f32 %v3111, -1.0
        %v3113 = vmul.f32 %v3042, %v3042
        %v3114 = vmin.f32 16.0, %v3113
        %v3115 = vmul.f32 %v3114, 2.1237322e-06
        %v3116 = vadd.f32 %v3115, 0.00028619796
        %v3117 = vmul.f32 %v3114, %v3116
        %v3118 = vadd.f32 %v3117, 0.0036580483
        %v3119 = vmul.f32 %v3114, %v3118
        %v3120 = vadd.f32 %v3119, 0.05243302
        %v3121 = vmul.f32 %v3114, %v3120
        %v3122 = vadd.f32 %v3121, 0.18741608
        %v3123 = vmul.f32 %v3114, %v3122
        %v3124 = vadd.f32 %v3123, 1.1283791
        %v3125 = vmul.f32 %v3042, %v3124
        %v3126 = vmul.f32 %v3114, 3.8918573e-05
        %v3127 = vadd.f32 %v3126, 0.001143296
        %v3128 = vmul.f32 %v3114, %v3127
        %v3129 = vadd.f32 %v3128, 0.014752088
        %v3130 = vmul.f32 %v3114, %v3129
        %v3131 = vadd.f32 %v3130, 0.112945676
        %v3132 = vmul.f32 %v3114, %v3131
        %v3133 = vadd.f32 %v3132, 0.4994258
        %v3134 = vmul.f32 %v3114, %v3133
        %v3135 = vadd.f32 %v3134, 1.0
        %v3136 = vrcp.pop %v3135
        %v3137 = vmul.f32 %v3135, %v3136
        %v3138 = vsub.f32 1.0, %v3137
        %v3139 = vmul.f32 %v3136, %v3138
        %v3140 = vadd.f32 %v3136, %v3139
        %vm3141 = vweird.f32 %v3135
        %vm3142 = vweird.f32 %v3136
        %vm3143 = vmor %vm3141, %vm3142
        %v3144 = vsel %vm3143, %v3136, %v3140
        %v3145 = vand.u32 2147483647, %v3135
        %vm3146 = vcmp.eq.f32.partialorder %v3145, 8.507059e+37
        %v3147 = vand.u32 %v3135, 2147483648
        %v3148 = vor.u32 1.1754944e-38, %v3147
        %v3149 = vsel %vm3146, %v3148, %v3144
        %v3150 = vmul.f32 %v3125, %v3149
        %v3151 = vmin.f32 %v3150, 1.0
        %v3152 = vmax.f32 %v3151, -1.0
        %v3153 = vmul.f32 %v3043, %v3043
        %v3154 = vmin.f32 16.0, %v3153
        %v3155 = vmul.f32 %v3154, 2.1237322e-06
        %v3156 = vadd.f32 %v3155, 0.00028619796
        %v3157 = vmul.f32 %v3154, %v3156
        %v3158 = vadd.f32 %v3157, 0.0036580483
        %v3159 = vmul.f32 %v3154, %v3158
        %v3160 = vadd.f32 %v3159, 0.05243302
        %v3161 = vmul.f32 %v3154, %v3160
        %v3162 = vadd.f32 %v3161, 0.18741608
        %v3163 = vmul.f32 %v3154, %v3162
        %v3164 = vadd.f32 %v3163, 1.1283791
        %v3165 = vmul.f32 %v3043, %v3164
        %v3166 = vmul.f32 %v3154, 3.8918573e-05
        %v3167 = vadd.f32 %v3166, 0.001143296
        %v3168 = vmul.f32 %v3154, %v3167
        %v3169 = vadd.f32 %v3168, 0.014752088
        %v3170 = vmul.f32 %v3154, %v3169
        %v3171 = vadd.f32 %v3170, 0.112945676
        %v3172 = vmul.f32 %v3154, %v3171
        %v3173 = vadd.f32 %v3172, 0.4994258
        %v3174 = vmul.f32 %v3154, %v3173
        %v3175 = vadd.f32 %v3174, 1.0
        %v3176 = vrcp.pop %v3175
        %v3177 = vmul.f32 %v3175, %v3176
        %v3178 = vsub.f32 1.0, %v3177
        %v3179 = vmul.f32 %v3176, %v3178
        %v3180 = vadd.f32 %v3176, %v3179
        %vm3181 = vweird.f32 %v3175
        %vm3182 = vweird.f32 %v3176
        %vm3183 = vmor %vm3181, %vm3182
        %v3184 = vsel %vm3183, %v3176, %v3180
        %v3185 = vand.u32 2147483647, %v3175
        %vm3186 = vcmp.eq.f32.partialorder %v3185, 8.507059e+37
        %v3187 = vand.u32 %v3175, 2147483648
        %v3188 = vor.u32 1.1754944e-38, %v3187
        %v3189 = vsel %vm3186, %v3188, %v3184
        %v3190 = vmul.f32 %v3165, %v3189
        %v3191 = vmin.f32 %v3190, 1.0
        %v3192 = vmax.f32 %v3191, -1.0
        %v3193 = vmul.f32 %v3044, %v3044
        %v3194 = vmin.f32 16.0, %v3193
        %v3195 = vmul.f32 %v3194, 2.1237322e-06
        %v3196 = vadd.f32 %v3195, 0.00028619796
        %v3197 = vmul.f32 %v3194, %v3196
        %v3198 = vadd.f32 %v3197, 0.0036580483
        %v3199 = vmul.f32 %v3194, %v3198
        %v3200 = vadd.f32 %v3199, 0.05243302
        %v3201 = vmul.f32 %v3194, %v3200
        %v3202 = vadd.f32 %v3201, 0.18741608
        %v3203 = vmul.f32 %v3194, %v3202
        %v3204 = vadd.f32 %v3203, 1.1283791
        %v3205 = vmul.f32 %v3044, %v3204
        %v3206 = vmul.f32 %v3194, 3.8918573e-05
        %v3207 = vadd.f32 %v3206, 0.001143296
        %v3208 = vmul.f32 %v3194, %v3207
        %v3209 = vadd.f32 %v3208, 0.014752088
        %v3210 = vmul.f32 %v3194, %v3209
        %v3211 = vadd.f32 %v3210, 0.112945676
        %v3212 = vmul.f32 %v3194, %v3211
        %v3213 = vadd.f32 %v3212, 0.4994258
        %v3214 = vmul.f32 %v3194, %v3213
        %v3215 = vadd.f32 %v3214, 1.0
        %v3216 = vrcp.pop %v3215
        %v3217 = vmul.f32 %v3215, %v3216
        %v3218 = vsub.f32 1.0, %v3217
        %v3219 = vmul.f32 %v3216, %v3218
        %v3220 = vadd.f32 %v3216, %v3219
        %vm3221 = vweird.f32 %v3215
        %vm3222 = vweird.f32 %v3216
        %vm3223 = vmor %vm3221, %vm3222
        %v3224 = vsel %vm3223, %v3216, %v3220
        %v3225 = vand.u32 2147483647, %v3215
        %vm3226 = vcmp.eq.f32.partialorder %v3225, 8.507059e+37
        %v3227 = vand.u32 %v3215, 2147483648
        %v3228 = vor.u32 1.1754944e-38, %v3227
        %v3229 = vsel %vm3226, %v3228, %v3224
        %v3230 = vmul.f32 %v3205, %v3229
        %v3231 = vmin.f32 %v3230, 1.0
        %v3232 = vmax.f32 %v3231, -1.0
        %v3233 = vmul.f32 %v3045, %v3045
        %v3234 = vmin.f32 16.0, %v3233
        %v3235 = vmul.f32 %v3234, 2.1237322e-06
        %v3236 = vadd.f32 %v3235, 0.00028619796
        %v3237 = vmul.f32 %v3234, %v3236
        %v3238 = vadd.f32 %v3237, 0.0036580483
        %v3239 = vmul.f32 %v3234, %v3238
        %v3240 = vadd.f32 %v3239, 0.05243302
        %v3241 = vmul.f32 %v3234, %v3240
        %v3242 = vadd.f32 %v3241, 0.18741608
        %v3243 = vmul.f32 %v3234, %v3242
        %v3244 = vadd.f32 %v3243, 1.1283791
        %v3245 = vmul.f32 %v3045, %v3244
        %v3246 = vmul.f32 %v3234, 3.8918573e-05
        %v3247 = vadd.f32 %v3246, 0.001143296
        %v3248 = vmul.f32 %v3234, %v3247
        %v3249 = vadd.f32 %v3248, 0.014752088
        %v3250 = vmul.f32 %v3234, %v3249
        %v3251 = vadd.f32 %v3250, 0.112945676
        %v3252 = vmul.f32 %v3234, %v3251
        %v3253 = vadd.f32 %v3252, 0.4994258
        %v3254 = vmul.f32 %v3234, %v3253
        %v3255 = vadd.f32 %v3254, 1.0
        %v3256 = vrcp.pop %v3255
        %v3257 = vmul.f32 %v3255, %v3256
        %v3258 = vsub.f32 1.0, %v3257
        %v3259 = vmul.f32 %v3256, %v3258
        %v3260 = vadd.f32 %v3256, %v3259
        %vm3261 = vweird.f32 %v3255
        %vm3262 = vweird.f32 %v3256
        %vm3263 = vmor %vm3261, %vm3262
        %v3264 = vsel %vm3263, %v3256, %v3260
        %v3265 = vand.u32 2147483647, %v3255
        %vm3266 = vcmp.eq.f32.partialorder %v3265, 8.507059e+37
        %v3267 = vand.u32 %v3255, 2147483648
        %v3268 = vor.u32 1.1754944e-38, %v3267
        %v3269 = vsel %vm3266, %v3268, %v3264
        %v3270 = vmul.f32 %v3245, %v3269
        %v3271 = vmin.f32 %v3270, 1.0
        %v3272 = vmax.f32 %v3271, -1.0
        %v3273 = vmul.f32 %v3046, %v3046
        %v3274 = vmin.f32 16.0, %v3273
        %v3275 = vmul.f32 %v3274, 2.1237322e-06
        %v3276 = vadd.f32 %v3275, 0.00028619796
        %v3277 = vmul.f32 %v3274, %v3276
        %v3278 = vadd.f32 %v3277, 0.0036580483
        %v3279 = vmul.f32 %v3274, %v3278
        %v3280 = vadd.f32 %v3279, 0.05243302
        %v3281 = vmul.f32 %v3274, %v3280
        %v3282 = vadd.f32 %v3281, 0.18741608
        %v3283 = vmul.f32 %v3274, %v3282
        %v3284 = vadd.f32 %v3283, 1.1283791
        %v3285 = vmul.f32 %v3046, %v3284
        %v3286 = vmul.f32 %v3274, 3.8918573e-05
        %v3287 = vadd.f32 %v3286, 0.001143296
        %v3288 = vmul.f32 %v3274, %v3287
        %v3289 = vadd.f32 %v3288, 0.014752088
        %v3290 = vmul.f32 %v3274, %v3289
        %v3291 = vadd.f32 %v3290, 0.112945676
        %v3292 = vmul.f32 %v3274, %v3291
        %v3293 = vadd.f32 %v3292, 0.4994258
        %v3294 = vmul.f32 %v3274, %v3293
        %v3295 = vadd.f32 %v3294, 1.0
        %v3296 = vrcp.pop %v3295
        %v3297 = vmul.f32 %v3295, %v3296
        %v3298 = vsub.f32 1.0, %v3297
        %v3299 = vmul.f32 %v3296, %v3298
        %v3300 = vadd.f32 %v3296, %v3299
        %vm3301 = vweird.f32 %v3295
        %vm3302 = vweird.f32 %v3296
        %vm3303 = vmor %vm3301, %vm3302
        %v3304 = vsel %vm3303, %v3296, %v3300
        %v3305 = vand.u32 2147483647, %v3295
        %vm3306 = vcmp.eq.f32.partialorder %v3305, 8.507059e+37
        %v3307 = vand.u32 %v3295, 2147483648
        %v3308 = vor.u32 1.1754944e-38, %v3307
        %v3309 = vsel %vm3306, %v3308, %v3304
        %v3310 = vmul.f32 %v3285, %v3309
        %v3311 = vmin.f32 %v3310, 1.0
        %v3312 = vmax.f32 %v3311, -1.0
        %v3313 = vmul.f32 %v3047, %v3047
        %v3314 = vmin.f32 16.0, %v3313
        %v3315 = vmul.f32 %v3314, 2.1237322e-06
        %v3316 = vadd.f32 %v3315, 0.00028619796
        %v3317 = vmul.f32 %v3314, %v3316
        %v3318 = vadd.f32 %v3317, 0.0036580483
        %v3319 = vmul.f32 %v3314, %v3318
        %v3320 = vadd.f32 %v3319, 0.05243302
        %v3321 = vmul.f32 %v3314, %v3320
        %v3322 = vadd.f32 %v3321, 0.18741608
        %v3323 = vmul.f32 %v3314, %v3322
        %v3324 = vadd.f32 %v3323, 1.1283791
        %v3325 = vmul.f32 %v3047, %v3324
        %v3326 = vmul.f32 %v3314, 3.8918573e-05
        %v3327 = vadd.f32 %v3326, 0.001143296
        %v3328 = vmul.f32 %v3314, %v3327
        %v3329 = vadd.f32 %v3328, 0.014752088
        %v3330 = vmul.f32 %v3314, %v3329
        %v3331 = vadd.f32 %v3330, 0.112945676
        %v3332 = vmul.f32 %v3314, %v3331
        %v3333 = vadd.f32 %v3332, 0.4994258
        %v3334 = vmul.f32 %v3314, %v3333
        %v3335 = vadd.f32 %v3334, 1.0
        %v3336 = vrcp.pop %v3335
        %v3337 = vmul.f32 %v3335, %v3336
        %v3338 = vsub.f32 1.0, %v3337
        %v3339 = vmul.f32 %v3336, %v3338
        %v3340 = vadd.f32 %v3336, %v3339
        %vm3341 = vweird.f32 %v3335
        %vm3342 = vweird.f32 %v3336
        %vm3343 = vmor %vm3341, %vm3342
        %v3344 = vsel %vm3343, %v3336, %v3340
        %v3345 = vand.u32 2147483647, %v3335
        %vm3346 = vcmp.eq.f32.partialorder %v3345, 8.507059e+37
        %v3347 = vand.u32 %v3335, 2147483648
        %v3348 = vor.u32 1.1754944e-38, %v3347
        %v3349 = vsel %vm3346, %v3348, %v3344
        %v3350 = vmul.f32 %v3325, %v3349
        %v3351 = vmin.f32 %v3350, 1.0
        %v3352 = vmax.f32 %v3351, -1.0
        %v3353 = vmul.f32 %v3048, %v3048
        %v3354 = vmin.f32 16.0, %v3353
        %v3355 = vmul.f32 %v3354, 2.1237322e-06
        %v3356 = vadd.f32 %v3355, 0.00028619796
        %v3357 = vmul.f32 %v3354, %v3356
        %v3358 = vadd.f32 %v3357, 0.0036580483
        %v3359 = vmul.f32 %v3354, %v3358
        %v3360 = vadd.f32 %v3359, 0.05243302
        %v3361 = vmul.f32 %v3354, %v3360
        %v3362 = vadd.f32 %v3361, 0.18741608
        %v3363 = vmul.f32 %v3354, %v3362
        %v3364 = vadd.f32 %v3363, 1.1283791
        %v3365 = vmul.f32 %v3048, %v3364
        %v3366 = vmul.f32 %v3354, 3.8918573e-05
        %v3367 = vadd.f32 %v3366, 0.001143296
        %v3368 = vmul.f32 %v3354, %v3367
        %v3369 = vadd.f32 %v3368, 0.014752088
        %v3370 = vmul.f32 %v3354, %v3369
        %v3371 = vadd.f32 %v3370, 0.112945676
        %v3372 = vmul.f32 %v3354, %v3371
        %v3373 = vadd.f32 %v3372, 0.4994258
        %v3374 = vmul.f32 %v3354, %v3373
        %v3375 = vadd.f32 %v3374, 1.0
        %v3376 = vrcp.pop %v3375
        %v3377 = vmul.f32 %v3375, %v3376
        %v3378 = vsub.f32 1.0, %v3377
        %v3379 = vmul.f32 %v3376, %v3378
        %v3380 = vadd.f32 %v3376, %v3379
        %vm3381 = vweird.f32 %v3375
        %vm3382 = vweird.f32 %v3376
        %vm3383 = vmor %vm3381, %vm3382
        %v3384 = vsel %vm3383, %v3376, %v3380
        %v3385 = vand.u32 2147483647, %v3375
        %vm3386 = vcmp.eq.f32.partialorder %v3385, 8.507059e+37
        %v3387 = vand.u32 %v3375, 2147483648
        %v3388 = vor.u32 1.1754944e-38, %v3387
        %v3389 = vsel %vm3386, %v3388, %v3384
        %v3390 = vmul.f32 %v3365, %v3389
        %v3391 = vmin.f32 %v3390, 1.0
        %v3392 = vmax.f32 %v3391, -1.0
        %v3393 = vmul.f32 %v3049, %v3049
        %v3394 = vmin.f32 16.0, %v3393
        %v3395 = vmul.f32 %v3394, 2.1237322e-06
        %v3396 = vadd.f32 %v3395, 0.00028619796
        %v3397 = vmul.f32 %v3394, %v3396
        %v3398 = vadd.f32 %v3397, 0.0036580483
        %v3399 = vmul.f32 %v3394, %v3398
        %v3400 = vadd.f32 %v3399, 0.05243302
        %v3401 = vmul.f32 %v3394, %v3400
        %v3402 = vadd.f32 %v3401, 0.18741608
        %v3403 = vmul.f32 %v3394, %v3402
        %v3404 = vadd.f32 %v3403, 1.1283791
        %v3405 = vmul.f32 %v3049, %v3404
        %v3406 = vmul.f32 %v3394, 3.8918573e-05
        %v3407 = vadd.f32 %v3406, 0.001143296
        %v3408 = vmul.f32 %v3394, %v3407
        %v3409 = vadd.f32 %v3408, 0.014752088
        %v3410 = vmul.f32 %v3394, %v3409
        %v3411 = vadd.f32 %v3410, 0.112945676
        %v3412 = vmul.f32 %v3394, %v3411
        %v3413 = vadd.f32 %v3412, 0.4994258
        %v3414 = vmul.f32 %v3394, %v3413
        %v3415 = vadd.f32 %v3414, 1.0
        %v3416 = vrcp.pop %v3415
        %v3417 = vmul.f32 %v3415, %v3416
        %v3418 = vsub.f32 1.0, %v3417
        %v3419 = vmul.f32 %v3416, %v3418
        %v3420 = vadd.f32 %v3416, %v3419
        %vm3421 = vweird.f32 %v3415
        %vm3422 = vweird.f32 %v3416
        %vm3423 = vmor %vm3421, %vm3422
        %v3424 = vsel %vm3423, %v3416, %v3420
        %v3425 = vand.u32 2147483647, %v3415
        %vm3426 = vcmp.eq.f32.partialorder %v3425, 8.507059e+37
        %v3427 = vand.u32 %v3415, 2147483648
        %v3428 = vor.u32 1.1754944e-38, %v3427
        %v3429 = vsel %vm3426, %v3428, %v3424
        %v3430 = vmul.f32 %v3405, %v3429
        %v3431 = vmin.f32 %v3430, 1.0
        %v3432 = vmax.f32 %v3431, -1.0
        %v3433 = vmul.f32 %v3050, %v3050
        %v3434 = vmin.f32 16.0, %v3433
        %v3435 = vmul.f32 %v3434, 2.1237322e-06
        %v3436 = vadd.f32 %v3435, 0.00028619796
        %v3437 = vmul.f32 %v3434, %v3436
        %v3438 = vadd.f32 %v3437, 0.0036580483
        %v3439 = vmul.f32 %v3434, %v3438
        %v3440 = vadd.f32 %v3439, 0.05243302
        %v3441 = vmul.f32 %v3434, %v3440
        %v3442 = vadd.f32 %v3441, 0.18741608
        %v3443 = vmul.f32 %v3434, %v3442
        %v3444 = vadd.f32 %v3443, 1.1283791
        %v3445 = vmul.f32 %v3050, %v3444
        %v3446 = vmul.f32 %v3434, 3.8918573e-05
        %v3447 = vadd.f32 %v3446, 0.001143296
        %v3448 = vmul.f32 %v3434, %v3447
        %v3449 = vadd.f32 %v3448, 0.014752088
        %v3450 = vmul.f32 %v3434, %v3449
        %v3451 = vadd.f32 %v3450, 0.112945676
        %v3452 = vmul.f32 %v3434, %v3451
        %v3453 = vadd.f32 %v3452, 0.4994258
        %v3454 = vmul.f32 %v3434, %v3453
        %v3455 = vadd.f32 %v3454, 1.0
        %v3456 = vrcp.pop %v3455
        %v3457 = vmul.f32 %v3455, %v3456
        %v3458 = vsub.f32 1.0, %v3457
        %v3459 = vmul.f32 %v3456, %v3458
        %v3460 = vadd.f32 %v3456, %v3459
        %vm3461 = vweird.f32 %v3455
        %vm3462 = vweird.f32 %v3456
        %vm3463 = vmor %vm3461, %vm3462
        %v3464 = vsel %vm3463, %v3456, %v3460
        %v3465 = vand.u32 2147483647, %v3455
        %vm3466 = vcmp.eq.f32.partialorder %v3465, 8.507059e+37
        %v3467 = vand.u32 %v3455, 2147483648
        %v3468 = vor.u32 1.1754944e-38, %v3467
        %v3469 = vsel %vm3466, %v3468, %v3464
        %v3470 = vmul.f32 %v3445, %v3469
        %v3471 = vmin.f32 %v3470, 1.0
        %v3472 = vmax.f32 %v3471, -1.0
        %v3473 = vmul.f32 %v3051, %v3051
        %v3474 = vmin.f32 16.0, %v3473
        %v3475 = vmul.f32 %v3474, 2.1237322e-06
        %v3476 = vadd.f32 %v3475, 0.00028619796
        %v3477 = vmul.f32 %v3474, %v3476
        %v3478 = vadd.f32 %v3477, 0.0036580483
        %v3479 = vmul.f32 %v3474, %v3478
        %v3480 = vadd.f32 %v3479, 0.05243302
        %v3481 = vmul.f32 %v3474, %v3480
        %v3482 = vadd.f32 %v3481, 0.18741608
        %v3483 = vmul.f32 %v3474, %v3482
        %v3484 = vadd.f32 %v3483, 1.1283791
        %v3485 = vmul.f32 %v3051, %v3484
        %v3486 = vmul.f32 %v3474, 3.8918573e-05
        %v3487 = vadd.f32 %v3486, 0.001143296
        %v3488 = vmul.f32 %v3474, %v3487
        %v3489 = vadd.f32 %v3488, 0.014752088
        %v3490 = vmul.f32 %v3474, %v3489
        %v3491 = vadd.f32 %v3490, 0.112945676
        %v3492 = vmul.f32 %v3474, %v3491
        %v3493 = vadd.f32 %v3492, 0.4994258
        %v3494 = vmul.f32 %v3474, %v3493
        %v3495 = vadd.f32 %v3494, 1.0
        %v3496 = vrcp.pop %v3495
        %v3497 = vmul.f32 %v3495, %v3496
        %v3498 = vsub.f32 1.0, %v3497
        %v3499 = vmul.f32 %v3496, %v3498
        %v3500 = vadd.f32 %v3496, %v3499
        %vm3501 = vweird.f32 %v3495
        %vm3502 = vweird.f32 %v3496
        %vm3503 = vmor %vm3501, %vm3502
        %v3504 = vsel %vm3503, %v3496, %v3500
        %v3505 = vand.u32 2147483647, %v3495
        %vm3506 = vcmp.eq.f32.partialorder %v3505, 8.507059e+37
        %v3507 = vand.u32 %v3495, 2147483648
        %v3508 = vor.u32 1.1754944e-38, %v3507
        %v3509 = vsel %vm3506, %v3508, %v3504
        %v3510 = vmul.f32 %v3485, %v3509
        %v3511 = vmin.f32 %v3510, 1.0
        %v3512 = vmax.f32 %v3511, -1.0
        %v3513 = vmul.f32 %v3052, %v3052
        %v3514 = vmin.f32 16.0, %v3513
        %v3515 = vmul.f32 %v3514, 2.1237322e-06
        %v3516 = vadd.f32 %v3515, 0.00028619796
        %v3517 = vmul.f32 %v3514, %v3516
        %v3518 = vadd.f32 %v3517, 0.0036580483
        %v3519 = vmul.f32 %v3514, %v3518
        %v3520 = vadd.f32 %v3519, 0.05243302
        %v3521 = vmul.f32 %v3514, %v3520
        %v3522 = vadd.f32 %v3521, 0.18741608
        %v3523 = vmul.f32 %v3514, %v3522
        %v3524 = vadd.f32 %v3523, 1.1283791
        %v3525 = vmul.f32 %v3052, %v3524
        %v3526 = vmul.f32 %v3514, 3.8918573e-05
        %v3527 = vadd.f32 %v3526, 0.001143296
        %v3528 = vmul.f32 %v3514, %v3527
        %v3529 = vadd.f32 %v3528, 0.014752088
        %v3530 = vmul.f32 %v3514, %v3529
        %v3531 = vadd.f32 %v3530, 0.112945676
        %v3532 = vmul.f32 %v3514, %v3531
        %v3533 = vadd.f32 %v3532, 0.4994258
        %v3534 = vmul.f32 %v3514, %v3533
        %v3535 = vadd.f32 %v3534, 1.0
        %v3536 = vrcp.pop %v3535
        %v3537 = vmul.f32 %v3535, %v3536
        %v3538 = vsub.f32 1.0, %v3537
        %v3539 = vmul.f32 %v3536, %v3538
        %v3540 = vadd.f32 %v3536, %v3539
        %vm3541 = vweird.f32 %v3535
        %vm3542 = vweird.f32 %v3536
        %vm3543 = vmor %vm3541, %vm3542
        %v3544 = vsel %vm3543, %v3536, %v3540
        %v3545 = vand.u32 2147483647, %v3535
        %vm3546 = vcmp.eq.f32.partialorder %v3545, 8.507059e+37
        %v3547 = vand.u32 %v3535, 2147483648
        %v3548 = vor.u32 1.1754944e-38, %v3547
        %v3549 = vsel %vm3546, %v3548, %v3544
        %v3550 = vmul.f32 %v3525, %v3549
        %v3551 = vmin.f32 %v3550, 1.0
        %v3552 = vmax.f32 %v3551, -1.0
        %v3553 = vmul.f32 %v3053, %v3053
        %v3554 = vmin.f32 16.0, %v3553
        %v3555 = vmul.f32 %v3554, 2.1237322e-06
        %v3556 = vadd.f32 %v3555, 0.00028619796
        %v3557 = vmul.f32 %v3554, %v3556
        %v3558 = vadd.f32 %v3557, 0.0036580483
        %v3559 = vmul.f32 %v3554, %v3558
        %v3560 = vadd.f32 %v3559, 0.05243302
        %v3561 = vmul.f32 %v3554, %v3560
        %v3562 = vadd.f32 %v3561, 0.18741608
        %v3563 = vmul.f32 %v3554, %v3562
        %v3564 = vadd.f32 %v3563, 1.1283791
        %v3565 = vmul.f32 %v3053, %v3564
        %v3566 = vmul.f32 %v3554, 3.8918573e-05
        %v3567 = vadd.f32 %v3566, 0.001143296
        %v3568 = vmul.f32 %v3554, %v3567
        %v3569 = vadd.f32 %v3568, 0.014752088
        %v3570 = vmul.f32 %v3554, %v3569
        %v3571 = vadd.f32 %v3570, 0.112945676
        %v3572 = vmul.f32 %v3554, %v3571
        %v3573 = vadd.f32 %v3572, 0.4994258
        %v3574 = vmul.f32 %v3554, %v3573
        %v3575 = vadd.f32 %v3574, 1.0
        %v3576 = vrcp.pop %v3575
        %v3577 = vmul.f32 %v3575, %v3576
        %v3578 = vsub.f32 1.0, %v3577
        %v3579 = vmul.f32 %v3576, %v3578
        %v3580 = vadd.f32 %v3576, %v3579
        %vm3581 = vweird.f32 %v3575
        %vm3582 = vweird.f32 %v3576
        %vm3583 = vmor %vm3581, %vm3582
        %v3584 = vsel %vm3583, %v3576, %v3580
        %v3585 = vand.u32 2147483647, %v3575
        %vm3586 = vcmp.eq.f32.partialorder %v3585, 8.507059e+37
        %v3587 = vand.u32 %v3575, 2147483648
        %v3588 = vor.u32 1.1754944e-38, %v3587
        %v3589 = vsel %vm3586, %v3588, %v3584
        %v3590 = vmul.f32 %v3565, %v3589
        %v3591 = vmin.f32 %v3590, 1.0
        %v3592 = vmax.f32 %v3591, -1.0
        %v3593 = vmul.f32 %v3054, %v3054
        %v3594 = vmin.f32 16.0, %v3593
        %v3595 = vmul.f32 %v3594, 2.1237322e-06
        %v3596 = vadd.f32 %v3595, 0.00028619796
        %v3597 = vmul.f32 %v3594, %v3596
        %v3598 = vadd.f32 %v3597, 0.0036580483
        %v3599 = vmul.f32 %v3594, %v3598
        %v3600 = vadd.f32 %v3599, 0.05243302
        %v3601 = vmul.f32 %v3594, %v3600
        %v3602 = vadd.f32 %v3601, 0.18741608
        %v3603 = vmul.f32 %v3594, %v3602
        %v3604 = vadd.f32 %v3603, 1.1283791
        %v3605 = vmul.f32 %v3054, %v3604
        %v3606 = vmul.f32 %v3594, 3.8918573e-05
        %v3607 = vadd.f32 %v3606, 0.001143296
        %v3608 = vmul.f32 %v3594, %v3607
        %v3609 = vadd.f32 %v3608, 0.014752088
        %v3610 = vmul.f32 %v3594, %v3609
        %v3611 = vadd.f32 %v3610, 0.112945676
        %v3612 = vmul.f32 %v3594, %v3611
        %v3613 = vadd.f32 %v3612, 0.4994258
        %v3614 = vmul.f32 %v3594, %v3613
        %v3615 = vadd.f32 %v3614, 1.0
        %v3616 = vrcp.pop %v3615
        %v3617 = vmul.f32 %v3615, %v3616
        %v3618 = vsub.f32 1.0, %v3617
        %v3619 = vmul.f32 %v3616, %v3618
        %v3620 = vadd.f32 %v3616, %v3619
        %vm3621 = vweird.f32 %v3615
        %vm3622 = vweird.f32 %v3616
        %vm3623 = vmor %vm3621, %vm3622
        %v3624 = vsel %vm3623, %v3616, %v3620
        %v3625 = vand.u32 2147483647, %v3615
        %vm3626 = vcmp.eq.f32.partialorder %v3625, 8.507059e+37
        %v3627 = vand.u32 %v3615, 2147483648
        %v3628 = vor.u32 1.1754944e-38, %v3627
        %v3629 = vsel %vm3626, %v3628, %v3624
        %v3630 = vmul.f32 %v3605, %v3629
        %v3631 = vmin.f32 %v3630, 1.0
        %v3632 = vmax.f32 %v3631, -1.0
        %v3633 = vmul.f32 %v3055, %v3055
        %v3634 = vmin.f32 16.0, %v3633
        %v3635 = vmul.f32 %v3634, 2.1237322e-06
        %v3636 = vadd.f32 %v3635, 0.00028619796
        %v3637 = vmul.f32 %v3634, %v3636
        %v3638 = vadd.f32 %v3637, 0.0036580483
        %v3639 = vmul.f32 %v3634, %v3638
        %v3640 = vadd.f32 %v3639, 0.05243302
        %v3641 = vmul.f32 %v3634, %v3640
        %v3642 = vadd.f32 %v3641, 0.18741608
        %v3643 = vmul.f32 %v3634, %v3642
        %v3644 = vadd.f32 %v3643, 1.1283791
        %v3645 = vmul.f32 %v3055, %v3644
        %v3646 = vmul.f32 %v3634, 3.8918573e-05
        %v3647 = vadd.f32 %v3646, 0.001143296
        %v3648 = vmul.f32 %v3634, %v3647
        %v3649 = vadd.f32 %v3648, 0.014752088
        %v3650 = vmul.f32 %v3634, %v3649
        %v3651 = vadd.f32 %v3650, 0.112945676
        %v3652 = vmul.f32 %v3634, %v3651
        %v3653 = vadd.f32 %v3652, 0.4994258
        %v3654 = vmul.f32 %v3634, %v3653
        %v3655 = vadd.f32 %v3654, 1.0
        %v3656 = vrcp.pop %v3655
        %v3657 = vmul.f32 %v3655, %v3656
        %v3658 = vsub.f32 1.0, %v3657
        %v3659 = vmul.f32 %v3656, %v3658
        %v3660 = vadd.f32 %v3656, %v3659
        %vm3661 = vweird.f32 %v3655
        %vm3662 = vweird.f32 %v3656
        %vm3663 = vmor %vm3661, %vm3662
        %v3664 = vsel %vm3663, %v3656, %v3660
        %v3665 = vand.u32 2147483647, %v3655
        %vm3666 = vcmp.eq.f32.partialorder %v3665, 8.507059e+37
        %v3667 = vand.u32 %v3655, 2147483648
        %v3668 = vor.u32 1.1754944e-38, %v3667
        %v3669 = vsel %vm3666, %v3668, %v3664
        %v3670 = vmul.f32 %v3645, %v3669
        %v3671 = vmin.f32 %v3670, 1.0
        %v3672 = vmax.f32 %v3671, -1.0
        %v3673 = vmul.f32 %v3056, %v3056
        %v3674 = vmin.f32 16.0, %v3673
        %v3675 = vmul.f32 %v3674, 2.1237322e-06
        %v3676 = vadd.f32 %v3675, 0.00028619796
        %v3677 = vmul.f32 %v3674, %v3676
        %v3678 = vadd.f32 %v3677, 0.0036580483
        %v3679 = vmul.f32 %v3674, %v3678
        %v3680 = vadd.f32 %v3679, 0.05243302
        %v3681 = vmul.f32 %v3674, %v3680
        %v3682 = vadd.f32 %v3681, 0.18741608
        %v3683 = vmul.f32 %v3674, %v3682
        %v3684 = vadd.f32 %v3683, 1.1283791
        %v3685 = vmul.f32 %v3056, %v3684
        %v3686 = vmul.f32 %v3674, 3.8918573e-05
        %v3687 = vadd.f32 %v3686, 0.001143296
        %v3688 = vmul.f32 %v3674, %v3687
        %v3689 = vadd.f32 %v3688, 0.014752088
        %v3690 = vmul.f32 %v3674, %v3689
        %v3691 = vadd.f32 %v3690, 0.112945676
        %v3692 = vmul.f32 %v3674, %v3691
        %v3693 = vadd.f32 %v3692, 0.4994258
        %v3694 = vmul.f32 %v3674, %v3693
        %v3695 = vadd.f32 %v3694, 1.0
        %v3696 = vrcp.pop %v3695
        %v3697 = vmul.f32 %v3695, %v3696
        %v3698 = vsub.f32 1.0, %v3697
        %v3699 = vmul.f32 %v3696, %v3698
        %v3700 = vadd.f32 %v3696, %v3699
        %vm3701 = vweird.f32 %v3695
        %vm3702 = vweird.f32 %v3696
        %vm3703 = vmor %vm3701, %vm3702
        %v3704 = vsel %vm3703, %v3696, %v3700
        %v3705 = vand.u32 2147483647, %v3695
        %vm3706 = vcmp.eq.f32.partialorder %v3705, 8.507059e+37
        %v3707 = vand.u32 %v3695, 2147483648
        %v3708 = vor.u32 1.1754944e-38, %v3707
        %v3709 = vsel %vm3706, %v3708, %v3704
        %v3710 = vmul.f32 %v3685, %v3709
        %v3711 = vmin.f32 %v3710, 1.0
        %v3712 = vmax.f32 %v3711, -1.0
        %v3713 = vmul.f32 %v3057, %v3057
        %v3714 = vmin.f32 16.0, %v3713
        %v3715 = vmul.f32 %v3714, 2.1237322e-06
        %v3716 = vadd.f32 %v3715, 0.00028619796
        %v3717 = vmul.f32 %v3714, %v3716
        %v3718 = vadd.f32 %v3717, 0.0036580483
        %v3719 = vmul.f32 %v3714, %v3718
        %v3720 = vadd.f32 %v3719, 0.05243302
        %v3721 = vmul.f32 %v3714, %v3720
        %v3722 = vadd.f32 %v3721, 0.18741608
        %v3723 = vmul.f32 %v3714, %v3722
        %v3724 = vadd.f32 %v3723, 1.1283791
        %v3725 = vmul.f32 %v3057, %v3724
        %v3726 = vmul.f32 %v3714, 3.8918573e-05
        %v3727 = vadd.f32 %v3726, 0.001143296
        %v3728 = vmul.f32 %v3714, %v3727
        %v3729 = vadd.f32 %v3728, 0.014752088
        %v3730 = vmul.f32 %v3714, %v3729
        %v3731 = vadd.f32 %v3730, 0.112945676
        %v3732 = vmul.f32 %v3714, %v3731
        %v3733 = vadd.f32 %v3732, 0.4994258
        %v3734 = vmul.f32 %v3714, %v3733
        %v3735 = vadd.f32 %v3734, 1.0
        %v3736 = vrcp.pop %v3735
        %v3737 = vmul.f32 %v3735, %v3736
        %v3738 = vsub.f32 1.0, %v3737
        %v3739 = vmul.f32 %v3736, %v3738
        %v3740 = vadd.f32 %v3736, %v3739
        %vm3741 = vweird.f32 %v3735
        %vm3742 = vweird.f32 %v3736
        %vm3743 = vmor %vm3741, %vm3742
        %v3744 = vsel %vm3743, %v3736, %v3740
        %v3745 = vand.u32 2147483647, %v3735
        %vm3746 = vcmp.eq.f32.partialorder %v3745, 8.507059e+37
        %v3747 = vand.u32 %v3735, 2147483648
        %v3748 = vor.u32 1.1754944e-38, %v3747
        %v3749 = vsel %vm3746, %v3748, %v3744
        %v3750 = vmul.f32 %v3725, %v3749
        %v3751 = vmin.f32 %v3750, 1.0
        %v3752 = vmax.f32 %v3751, -1.0
        %v3753 = vmul.f32 %v3058, %v3058
        %v3754 = vmin.f32 16.0, %v3753
        %v3755 = vmul.f32 %v3754, 2.1237322e-06
        %v3756 = vadd.f32 %v3755, 0.00028619796
        %v3757 = vmul.f32 %v3754, %v3756
        %v3758 = vadd.f32 %v3757, 0.0036580483
        %v3759 = vmul.f32 %v3754, %v3758
        %v3760 = vadd.f32 %v3759, 0.05243302
        %v3761 = vmul.f32 %v3754, %v3760
        %v3762 = vadd.f32 %v3761, 0.18741608
        %v3763 = vmul.f32 %v3754, %v3762
        %v3764 = vadd.f32 %v3763, 1.1283791
        %v3765 = vmul.f32 %v3058, %v3764
        %v3766 = vmul.f32 %v3754, 3.8918573e-05
        %v3767 = vadd.f32 %v3766, 0.001143296
        %v3768 = vmul.f32 %v3754, %v3767
        %v3769 = vadd.f32 %v3768, 0.014752088
        %v3770 = vmul.f32 %v3754, %v3769
        %v3771 = vadd.f32 %v3770, 0.112945676
        %v3772 = vmul.f32 %v3754, %v3771
        %v3773 = vadd.f32 %v3772, 0.4994258
        %v3774 = vmul.f32 %v3754, %v3773
        %v3775 = vadd.f32 %v3774, 1.0
        %v3776 = vrcp.pop %v3775
        %v3777 = vmul.f32 %v3775, %v3776
        %v3778 = vsub.f32 1.0, %v3777
        %v3779 = vmul.f32 %v3776, %v3778
        %v3780 = vadd.f32 %v3776, %v3779
        %vm3781 = vweird.f32 %v3775
        %vm3782 = vweird.f32 %v3776
        %vm3783 = vmor %vm3781, %vm3782
        %v3784 = vsel %vm3783, %v3776, %v3780
        %v3785 = vand.u32 2147483647, %v3775
        %vm3786 = vcmp.eq.f32.partialorder %v3785, 8.507059e+37
        %v3787 = vand.u32 %v3775, 2147483648
        %v3788 = vor.u32 1.1754944e-38, %v3787
        %v3789 = vsel %vm3786, %v3788, %v3784
        %v3790 = vmul.f32 %v3765, %v3789
        %v3791 = vmin.f32 %v3790, 1.0
        %v3792 = vmax.f32 %v3791, -1.0
        %v3793 = vmul.f32 %v3059, %v3059
        %v3794 = vmin.f32 16.0, %v3793
        %v3795 = vmul.f32 %v3794, 2.1237322e-06
        %v3796 = vadd.f32 %v3795, 0.00028619796
        %v3797 = vmul.f32 %v3794, %v3796
        %v3798 = vadd.f32 %v3797, 0.0036580483
        %v3799 = vmul.f32 %v3794, %v3798
        %v3800 = vadd.f32 %v3799, 0.05243302
        %v3801 = vmul.f32 %v3794, %v3800
        %v3802 = vadd.f32 %v3801, 0.18741608
        %v3803 = vmul.f32 %v3794, %v3802
        %v3804 = vadd.f32 %v3803, 1.1283791
        %v3805 = vmul.f32 %v3059, %v3804
        %v3806 = vmul.f32 %v3794, 3.8918573e-05
        %v3807 = vadd.f32 %v3806, 0.001143296
        %v3808 = vmul.f32 %v3794, %v3807
        %v3809 = vadd.f32 %v3808, 0.014752088
        %v3810 = vmul.f32 %v3794, %v3809
        %v3811 = vadd.f32 %v3810, 0.112945676
        %v3812 = vmul.f32 %v3794, %v3811
        %v3813 = vadd.f32 %v3812, 0.4994258
        %v3814 = vmul.f32 %v3794, %v3813
        %v3815 = vadd.f32 %v3814, 1.0
        %v3816 = vrcp.pop %v3815
        %v3817 = vmul.f32 %v3815, %v3816
        %v3818 = vsub.f32 1.0, %v3817
        %v3819 = vmul.f32 %v3816, %v3818
        %v3820 = vadd.f32 %v3816, %v3819
        %vm3821 = vweird.f32 %v3815
        %vm3822 = vweird.f32 %v3816
        %vm3823 = vmor %vm3821, %vm3822
        %v3824 = vsel %vm3823, %v3816, %v3820
        %v3825 = vand.u32 2147483647, %v3815
        %vm3826 = vcmp.eq.f32.partialorder %v3825, 8.507059e+37
        %v3827 = vand.u32 %v3815, 2147483648
        %v3828 = vor.u32 1.1754944e-38, %v3827
        %v3829 = vsel %vm3826, %v3828, %v3824
        %v3830 = vmul.f32 %v3805, %v3829
        %v3831 = vmin.f32 %v3830, 1.0
        %v3832 = vmax.f32 %v3831, -1.0
        %v3833 = vmul.f32 %v3060, %v3060
        %v3834 = vmin.f32 16.0, %v3833
        %v3835 = vmul.f32 %v3834, 2.1237322e-06
        %v3836 = vadd.f32 %v3835, 0.00028619796
        %v3837 = vmul.f32 %v3834, %v3836
        %v3838 = vadd.f32 %v3837, 0.0036580483
        %v3839 = vmul.f32 %v3834, %v3838
        %v3840 = vadd.f32 %v3839, 0.05243302
        %v3841 = vmul.f32 %v3834, %v3840
        %v3842 = vadd.f32 %v3841, 0.18741608
        %v3843 = vmul.f32 %v3834, %v3842
        %v3844 = vadd.f32 %v3843, 1.1283791
        %v3845 = vmul.f32 %v3060, %v3844
        %v3846 = vmul.f32 %v3834, 3.8918573e-05
        %v3847 = vadd.f32 %v3846, 0.001143296
        %v3848 = vmul.f32 %v3834, %v3847
        %v3849 = vadd.f32 %v3848, 0.014752088
        %v3850 = vmul.f32 %v3834, %v3849
        %v3851 = vadd.f32 %v3850, 0.112945676
        %v3852 = vmul.f32 %v3834, %v3851
        %v3853 = vadd.f32 %v3852, 0.4994258
        %v3854 = vmul.f32 %v3834, %v3853
        %v3855 = vadd.f32 %v3854, 1.0
        %v3856 = vrcp.pop %v3855
        %v3857 = vmul.f32 %v3855, %v3856
        %v3858 = vsub.f32 1.0, %v3857
        %v3859 = vmul.f32 %v3856, %v3858
        %v3860 = vadd.f32 %v3856, %v3859
        %vm3861 = vweird.f32 %v3855
        %vm3862 = vweird.f32 %v3856
        %vm3863 = vmor %vm3861, %vm3862
        %v3864 = vsel %vm3863, %v3856, %v3860
        %v3865 = vand.u32 2147483647, %v3855
        %vm3866 = vcmp.eq.f32.partialorder %v3865, 8.507059e+37
        %v3867 = vand.u32 %v3855, 2147483648
        %v3868 = vor.u32 1.1754944e-38, %v3867
        %v3869 = vsel %vm3866, %v3868, %v3864
        %v3870 = vmul.f32 %v3845, %v3869
        %v3871 = vmin.f32 %v3870, 1.0
        %v3872 = vmax.f32 %v3871, -1.0
        %v3873 = vmul.f32 %v3061, %v3061
        %v3874 = vmin.f32 16.0, %v3873
        %v3875 = vmul.f32 %v3874, 2.1237322e-06
        %v3876 = vadd.f32 %v3875, 0.00028619796
        %v3877 = vmul.f32 %v3874, %v3876
        %v3878 = vadd.f32 %v3877, 0.0036580483
        %v3879 = vmul.f32 %v3874, %v3878
        %v3880 = vadd.f32 %v3879, 0.05243302
        %v3881 = vmul.f32 %v3874, %v3880
        %v3882 = vadd.f32 %v3881, 0.18741608
        %v3883 = vmul.f32 %v3874, %v3882
        %v3884 = vadd.f32 %v3883, 1.1283791
        %v3885 = vmul.f32 %v3061, %v3884
        %v3886 = vmul.f32 %v3874, 3.8918573e-05
        %v3887 = vadd.f32 %v3886, 0.001143296
        %v3888 = vmul.f32 %v3874, %v3887
        %v3889 = vadd.f32 %v3888, 0.014752088
        %v3890 = vmul.f32 %v3874, %v3889
        %v3891 = vadd.f32 %v3890, 0.112945676
        %v3892 = vmul.f32 %v3874, %v3891
        %v3893 = vadd.f32 %v3892, 0.4994258
        %v3894 = vmul.f32 %v3874, %v3893
        %v3895 = vadd.f32 %v3894, 1.0
        %v3896 = vrcp.pop %v3895
        %v3897 = vmul.f32 %v3895, %v3896
        %v3898 = vsub.f32 1.0, %v3897
        %v3899 = vmul.f32 %v3896, %v3898
        %v3900 = vadd.f32 %v3896, %v3899
        %vm3901 = vweird.f32 %v3895
        %vm3902 = vweird.f32 %v3896
        %vm3903 = vmor %vm3901, %vm3902
        %v3904 = vsel %vm3903, %v3896, %v3900
        %v3905 = vand.u32 2147483647, %v3895
        %vm3906 = vcmp.eq.f32.partialorder %v3905, 8.507059e+37
        %v3907 = vand.u32 %v3895, 2147483648
        %v3908 = vor.u32 1.1754944e-38, %v3907
        %v3909 = vsel %vm3906, %v3908, %v3904
        %v3910 = vmul.f32 %v3885, %v3909
        %v3911 = vmin.f32 %v3910, 1.0
        %v3912 = vmax.f32 %v3911, -1.0
        %v3913 = vmul.f32 %v3062, %v3062
        %v3914 = vmin.f32 16.0, %v3913
        %v3915 = vmul.f32 %v3914, 2.1237322e-06
        %v3916 = vadd.f32 %v3915, 0.00028619796
        %v3917 = vmul.f32 %v3914, %v3916
        %v3918 = vadd.f32 %v3917, 0.0036580483
        %v3919 = vmul.f32 %v3914, %v3918
        %v3920 = vadd.f32 %v3919, 0.05243302
        %v3921 = vmul.f32 %v3914, %v3920
        %v3922 = vadd.f32 %v3921, 0.18741608
        %v3923 = vmul.f32 %v3914, %v3922
        %v3924 = vadd.f32 %v3923, 1.1283791
        %v3925 = vmul.f32 %v3062, %v3924
        %v3926 = vmul.f32 %v3914, 3.8918573e-05
        %v3927 = vadd.f32 %v3926, 0.001143296
        %v3928 = vmul.f32 %v3914, %v3927
        %v3929 = vadd.f32 %v3928, 0.014752088
        %v3930 = vmul.f32 %v3914, %v3929
        %v3931 = vadd.f32 %v3930, 0.112945676
        %v3932 = vmul.f32 %v3914, %v3931
        %v3933 = vadd.f32 %v3932, 0.4994258
        %v3934 = vmul.f32 %v3914, %v3933
        %v3935 = vadd.f32 %v3934, 1.0
        %v3936 = vrcp.pop %v3935
        %v3937 = vmul.f32 %v3935, %v3936
        %v3938 = vsub.f32 1.0, %v3937
        %v3939 = vmul.f32 %v3936, %v3938
        %v3940 = vadd.f32 %v3936, %v3939
        %vm3941 = vweird.f32 %v3935
        %vm3942 = vweird.f32 %v3936
        %vm3943 = vmor %vm3941, %vm3942
        %v3944 = vsel %vm3943, %v3936, %v3940
        %v3945 = vand.u32 2147483647, %v3935
        %vm3946 = vcmp.eq.f32.partialorder %v3945, 8.507059e+37
        %v3947 = vand.u32 %v3935, 2147483648
        %v3948 = vor.u32 1.1754944e-38, %v3947
        %v3949 = vsel %vm3946, %v3948, %v3944
        %v3950 = vmul.f32 %v3925, %v3949
        %v3951 = vmin.f32 %v3950, 1.0
        %v3952 = vmax.f32 %v3951, -1.0
        %v3953 = vmul.f32 %v3063, %v3063
        %v3954 = vmin.f32 16.0, %v3953
        %v3955 = vmul.f32 %v3954, 2.1237322e-06
        %v3956 = vadd.f32 %v3955, 0.00028619796
        %v3957 = vmul.f32 %v3954, %v3956
        %v3958 = vadd.f32 %v3957, 0.0036580483
        %v3959 = vmul.f32 %v3954, %v3958
        %v3960 = vadd.f32 %v3959, 0.05243302
        %v3961 = vmul.f32 %v3954, %v3960
        %v3962 = vadd.f32 %v3961, 0.18741608
        %v3963 = vmul.f32 %v3954, %v3962
        %v3964 = vadd.f32 %v3963, 1.1283791
        %v3965 = vmul.f32 %v3063, %v3964
        %v3966 = vmul.f32 %v3954, 3.8918573e-05
        %v3967 = vadd.f32 %v3966, 0.001143296
        %v3968 = vmul.f32 %v3954, %v3967
        %v3969 = vadd.f32 %v3968, 0.014752088
        %v3970 = vmul.f32 %v3954, %v3969
        %v3971 = vadd.f32 %v3970, 0.112945676
        %v3972 = vmul.f32 %v3954, %v3971
        %v3973 = vadd.f32 %v3972, 0.4994258
        %v3974 = vmul.f32 %v3954, %v3973
        %v3975 = vadd.f32 %v3974, 1.0
        %v3976 = vrcp.pop %v3975
        %v3977 = vmul.f32 %v3975, %v3976
        %v3978 = vsub.f32 1.0, %v3977
        %v3979 = vmul.f32 %v3976, %v3978
        %v3980 = vadd.f32 %v3976, %v3979
        %vm3981 = vweird.f32 %v3975
        %vm3982 = vweird.f32 %v3976
        %vm3983 = vmor %vm3981, %vm3982
        %v3984 = vsel %vm3983, %v3976, %v3980
        %v3985 = vand.u32 2147483647, %v3975
        %vm3986 = vcmp.eq.f32.partialorder %v3985, 8.507059e+37
        %v3987 = vand.u32 %v3975, 2147483648
        %v3988 = vor.u32 1.1754944e-38, %v3987
        %v3989 = vsel %vm3986, %v3988, %v3984
        %v3990 = vmul.f32 %v3965, %v3989
        %v3991 = vmin.f32 %v3990, 1.0
        %v3992 = vmax.f32 %v3991, -1.0
        %v3993 = vmul.f32 %v3064, %v3064
        %v3994 = vmin.f32 16.0, %v3993
        %v3995 = vmul.f32 %v3994, 2.1237322e-06
        %v3996 = vadd.f32 %v3995, 0.00028619796
        %v3997 = vmul.f32 %v3994, %v3996
        %v3998 = vadd.f32 %v3997, 0.0036580483
        %v3999 = vmul.f32 %v3994, %v3998
        %v4000 = vadd.f32 %v3999, 0.05243302
        %v4001 = vmul.f32 %v3994, %v4000
        %v4002 = vadd.f32 %v4001, 0.18741608
        %v4003 = vmul.f32 %v3994, %v4002
        %v4004 = vadd.f32 %v4003, 1.1283791
        %v4005 = vmul.f32 %v3064, %v4004
        %v4006 = vmul.f32 %v3994, 3.8918573e-05
        %v4007 = vadd.f32 %v4006, 0.001143296
        %v4008 = vmul.f32 %v3994, %v4007
        %v4009 = vadd.f32 %v4008, 0.014752088
        %v4010 = vmul.f32 %v3994, %v4009
        %v4011 = vadd.f32 %v4010, 0.112945676
        %v4012 = vmul.f32 %v3994, %v4011
        %v4013 = vadd.f32 %v4012, 0.4994258
        %v4014 = vmul.f32 %v3994, %v4013
        %v4015 = vadd.f32 %v4014, 1.0
        %v4016 = vrcp.pop %v4015
        %v4017 = vmul.f32 %v4015, %v4016
        %v4018 = vsub.f32 1.0, %v4017
        %v4019 = vmul.f32 %v4016, %v4018
        %v4020 = vadd.f32 %v4016, %v4019
        %vm4021 = vweird.f32 %v4015
        %vm4022 = vweird.f32 %v4016
        %vm4023 = vmor %vm4021, %vm4022
        %v4024 = vsel %vm4023, %v4016, %v4020
        %v4025 = vand.u32 2147483647, %v4015
        %vm4026 = vcmp.eq.f32.partialorder %v4025, 8.507059e+37
        %v4027 = vand.u32 %v4015, 2147483648
        %v4028 = vor.u32 1.1754944e-38, %v4027
        %v4029 = vsel %vm4026, %v4028, %v4024
        %v4030 = vmul.f32 %v4005, %v4029
        %v4031 = vmin.f32 %v4030, 1.0
        %v4032 = vmax.f32 %v4031, -1.0
        %v4033 = vmul.f32 %v3065, %v3065
        %v4034 = vmin.f32 16.0, %v4033
        %v4035 = vmul.f32 %v4034, 2.1237322e-06
        %v4036 = vadd.f32 %v4035, 0.00028619796
        %v4037 = vmul.f32 %v4034, %v4036
        %v4038 = vadd.f32 %v4037, 0.0036580483
        %v4039 = vmul.f32 %v4034, %v4038
        %v4040 = vadd.f32 %v4039, 0.05243302
        %v4041 = vmul.f32 %v4034, %v4040
        %v4042 = vadd.f32 %v4041, 0.18741608
        %v4043 = vmul.f32 %v4034, %v4042
        %v4044 = vadd.f32 %v4043, 1.1283791
        %v4045 = vmul.f32 %v3065, %v4044
        %v4046 = vmul.f32 %v4034, 3.8918573e-05
        %v4047 = vadd.f32 %v4046, 0.001143296
        %v4048 = vmul.f32 %v4034, %v4047
        %v4049 = vadd.f32 %v4048, 0.014752088
        %v4050 = vmul.f32 %v4034, %v4049
        %v4051 = vadd.f32 %v4050, 0.112945676
        %v4052 = vmul.f32 %v4034, %v4051
        %v4053 = vadd.f32 %v4052, 0.4994258
        %v4054 = vmul.f32 %v4034, %v4053
        %v4055 = vadd.f32 %v4054, 1.0
        %v4056 = vrcp.pop %v4055
        %v4057 = vmul.f32 %v4055, %v4056
        %v4058 = vsub.f32 1.0, %v4057
        %v4059 = vmul.f32 %v4056, %v4058
        %v4060 = vadd.f32 %v4056, %v4059
        %vm4061 = vweird.f32 %v4055
        %vm4062 = vweird.f32 %v4056
        %vm4063 = vmor %vm4061, %vm4062
        %v4064 = vsel %vm4063, %v4056, %v4060
        %v4065 = vand.u32 2147483647, %v4055
        %vm4066 = vcmp.eq.f32.partialorder %v4065, 8.507059e+37
        %v4067 = vand.u32 %v4055, 2147483648
        %v4068 = vor.u32 1.1754944e-38, %v4067
        %v4069 = vsel %vm4066, %v4068, %v4064
        %v4070 = vmul.f32 %v4045, %v4069
        %v4071 = vmin.f32 %v4070, 1.0
        %v4072 = vmax.f32 %v4071, -1.0
        %v4073 = vmul.f32 %v3066, %v3066
        %v4074 = vmin.f32 16.0, %v4073
        %v4075 = vmul.f32 %v4074, 2.1237322e-06
        %v4076 = vadd.f32 %v4075, 0.00028619796
        %v4077 = vmul.f32 %v4074, %v4076
        %v4078 = vadd.f32 %v4077, 0.0036580483
        %v4079 = vmul.f32 %v4074, %v4078
        %v4080 = vadd.f32 %v4079, 0.05243302
        %v4081 = vmul.f32 %v4074, %v4080
        %v4082 = vadd.f32 %v4081, 0.18741608
        %v4083 = vmul.f32 %v4074, %v4082
        %v4084 = vadd.f32 %v4083, 1.1283791
        %v4085 = vmul.f32 %v3066, %v4084
        %v4086 = vmul.f32 %v4074, 3.8918573e-05
        %v4087 = vadd.f32 %v4086, 0.001143296
        %v4088 = vmul.f32 %v4074, %v4087
        %v4089 = vadd.f32 %v4088, 0.014752088
        %v4090 = vmul.f32 %v4074, %v4089
        %v4091 = vadd.f32 %v4090, 0.112945676
        %v4092 = vmul.f32 %v4074, %v4091
        %v4093 = vadd.f32 %v4092, 0.4994258
        %v4094 = vmul.f32 %v4074, %v4093
        %v4095 = vadd.f32 %v4094, 1.0
        %v4096 = vrcp.pop %v4095
        %v4097 = vmul.f32 %v4095, %v4096
        %v4098 = vsub.f32 1.0, %v4097
        %v4099 = vmul.f32 %v4096, %v4098
        %v4100 = vadd.f32 %v4096, %v4099
        %vm4101 = vweird.f32 %v4095
        %vm4102 = vweird.f32 %v4096
        %vm4103 = vmor %vm4101, %vm4102
        %v4104 = vsel %vm4103, %v4096, %v4100
        %v4105 = vand.u32 2147483647, %v4095
        %vm4106 = vcmp.eq.f32.partialorder %v4105, 8.507059e+37
        %v4107 = vand.u32 %v4095, 2147483648
        %v4108 = vor.u32 1.1754944e-38, %v4107
        %v4109 = vsel %vm4106, %v4108, %v4104
        %v4110 = vmul.f32 %v4085, %v4109
        %v4111 = vmin.f32 %v4110, 1.0
        %v4112 = vmax.f32 %v4111, -1.0
        %v4113 = vmul.f32 %v3067, %v3067
        %v4114 = vmin.f32 16.0, %v4113
        %v4115 = vmul.f32 %v4114, 2.1237322e-06
        %v4116 = vadd.f32 %v4115, 0.00028619796
        %v4117 = vmul.f32 %v4114, %v4116
        %v4118 = vadd.f32 %v4117, 0.0036580483
        %v4119 = vmul.f32 %v4114, %v4118
        %v4120 = vadd.f32 %v4119, 0.05243302
        %v4121 = vmul.f32 %v4114, %v4120
        %v4122 = vadd.f32 %v4121, 0.18741608
        %v4123 = vmul.f32 %v4114, %v4122
        %v4124 = vadd.f32 %v4123, 1.1283791
        %v4125 = vmul.f32 %v3067, %v4124
        %v4126 = vmul.f32 %v4114, 3.8918573e-05
        %v4127 = vadd.f32 %v4126, 0.001143296
        %v4128 = vmul.f32 %v4114, %v4127
        %v4129 = vadd.f32 %v4128, 0.014752088
        %v4130 = vmul.f32 %v4114, %v4129
        %v4131 = vadd.f32 %v4130, 0.112945676
        %v4132 = vmul.f32 %v4114, %v4131
        %v4133 = vadd.f32 %v4132, 0.4994258
        %v4134 = vmul.f32 %v4114, %v4133
        %v4135 = vadd.f32 %v4134, 1.0
        %v4136 = vrcp.pop %v4135
        %v4137 = vmul.f32 %v4135, %v4136
        %v4138 = vsub.f32 1.0, %v4137
        %v4139 = vmul.f32 %v4136, %v4138
        %v4140 = vadd.f32 %v4136, %v4139
        %vm4141 = vweird.f32 %v4135
        %vm4142 = vweird.f32 %v4136
        %vm4143 = vmor %vm4141, %vm4142
        %v4144 = vsel %vm4143, %v4136, %v4140
        %v4145 = vand.u32 2147483647, %v4135
        %vm4146 = vcmp.eq.f32.partialorder %v4145, 8.507059e+37
        %v4147 = vand.u32 %v4135, 2147483648
        %v4148 = vor.u32 1.1754944e-38, %v4147
        %v4149 = vsel %vm4146, %v4148, %v4144
        %v4150 = vmul.f32 %v4125, %v4149
        %v4151 = vmin.f32 %v4150, 1.0
        %v4152 = vmax.f32 %v4151, -1.0
        %v4153 = vmul.f32 %v3068, %v3068
        %v4154 = vmin.f32 16.0, %v4153
        %v4155 = vmul.f32 %v4154, 2.1237322e-06
        %v4156 = vadd.f32 %v4155, 0.00028619796
        %v4157 = vmul.f32 %v4154, %v4156
        %v4158 = vadd.f32 %v4157, 0.0036580483
        %v4159 = vmul.f32 %v4154, %v4158
        %v4160 = vadd.f32 %v4159, 0.05243302
        %v4161 = vmul.f32 %v4154, %v4160
        %v4162 = vadd.f32 %v4161, 0.18741608
        %v4163 = vmul.f32 %v4154, %v4162
        %v4164 = vadd.f32 %v4163, 1.1283791
        %v4165 = vmul.f32 %v3068, %v4164
        %v4166 = vmul.f32 %v4154, 3.8918573e-05
        %v4167 = vadd.f32 %v4166, 0.001143296
        %v4168 = vmul.f32 %v4154, %v4167
        %v4169 = vadd.f32 %v4168, 0.014752088
        %v4170 = vmul.f32 %v4154, %v4169
        %v4171 = vadd.f32 %v4170, 0.112945676
        %v4172 = vmul.f32 %v4154, %v4171
        %v4173 = vadd.f32 %v4172, 0.4994258
        %v4174 = vmul.f32 %v4154, %v4173
        %v4175 = vadd.f32 %v4174, 1.0
        %v4176 = vrcp.pop %v4175
        %v4177 = vmul.f32 %v4175, %v4176
        %v4178 = vsub.f32 1.0, %v4177
        %v4179 = vmul.f32 %v4176, %v4178
        %v4180 = vadd.f32 %v4176, %v4179
        %vm4181 = vweird.f32 %v4175
        %vm4182 = vweird.f32 %v4176
        %vm4183 = vmor %vm4181, %vm4182
        %v4184 = vsel %vm4183, %v4176, %v4180
        %v4185 = vand.u32 2147483647, %v4175
        %vm4186 = vcmp.eq.f32.partialorder %v4185, 8.507059e+37
        %v4187 = vand.u32 %v4175, 2147483648
        %v4188 = vor.u32 1.1754944e-38, %v4187
        %v4189 = vsel %vm4186, %v4188, %v4184
        %v4190 = vmul.f32 %v4165, %v4189
        %v4191 = vmin.f32 %v4190, 1.0
        %v4192 = vmax.f32 %v4191, -1.0
        %v4193 = vmul.f32 %v3069, %v3069
        %v4194 = vmin.f32 16.0, %v4193
        %v4195 = vmul.f32 %v4194, 2.1237322e-06
        %v4196 = vadd.f32 %v4195, 0.00028619796
        %v4197 = vmul.f32 %v4194, %v4196
        %v4198 = vadd.f32 %v4197, 0.0036580483
        %v4199 = vmul.f32 %v4194, %v4198
        %v4200 = vadd.f32 %v4199, 0.05243302
        %v4201 = vmul.f32 %v4194, %v4200
        %v4202 = vadd.f32 %v4201, 0.18741608
        %v4203 = vmul.f32 %v4194, %v4202
        %v4204 = vadd.f32 %v4203, 1.1283791
        %v4205 = vmul.f32 %v3069, %v4204
        %v4206 = vmul.f32 %v4194, 3.8918573e-05
        %v4207 = vadd.f32 %v4206, 0.001143296
        %v4208 = vmul.f32 %v4194, %v4207
        %v4209 = vadd.f32 %v4208, 0.014752088
        %v4210 = vmul.f32 %v4194, %v4209
        %v4211 = vadd.f32 %v4210, 0.112945676
        %v4212 = vmul.f32 %v4194, %v4211
        %v4213 = vadd.f32 %v4212, 0.4994258
        %v4214 = vmul.f32 %v4194, %v4213
        %v4215 = vadd.f32 %v4214, 1.0
        %v4216 = vrcp.pop %v4215
        %v4217 = vmul.f32 %v4215, %v4216
        %v4218 = vsub.f32 1.0, %v4217
        %v4219 = vmul.f32 %v4216, %v4218
        %v4220 = vadd.f32 %v4216, %v4219
        %vm4221 = vweird.f32 %v4215
        %vm4222 = vweird.f32 %v4216
        %vm4223 = vmor %vm4221, %vm4222
        %v4224 = vsel %vm4223, %v4216, %v4220
        %v4225 = vand.u32 2147483647, %v4215
        %vm4226 = vcmp.eq.f32.partialorder %v4225, 8.507059e+37
        %v4227 = vand.u32 %v4215, 2147483648
        %v4228 = vor.u32 1.1754944e-38, %v4227
        %v4229 = vsel %vm4226, %v4228, %v4224
        %v4230 = vmul.f32 %v4205, %v4229
        %v4231 = vmin.f32 %v4230, 1.0
        %v4232 = vmax.f32 %v4231, -1.0
        %v4233 = vmul.f32 %v3070, %v3070
        %v4234 = vmin.f32 16.0, %v4233
        %v4235 = vmul.f32 %v4234, 2.1237322e-06
        %v4236 = vadd.f32 %v4235, 0.00028619796
        %v4237 = vmul.f32 %v4234, %v4236
        %v4238 = vadd.f32 %v4237, 0.0036580483
        %v4239 = vmul.f32 %v4234, %v4238
        %v4240 = vadd.f32 %v4239, 0.05243302
        %v4241 = vmul.f32 %v4234, %v4240
        %v4242 = vadd.f32 %v4241, 0.18741608
        %v4243 = vmul.f32 %v4234, %v4242
        %v4244 = vadd.f32 %v4243, 1.1283791
        %v4245 = vmul.f32 %v3070, %v4244
        %v4246 = vmul.f32 %v4234, 3.8918573e-05
        %v4247 = vadd.f32 %v4246, 0.001143296
        %v4248 = vmul.f32 %v4234, %v4247
        %v4249 = vadd.f32 %v4248, 0.014752088
        %v4250 = vmul.f32 %v4234, %v4249
        %v4251 = vadd.f32 %v4250, 0.112945676
        %v4252 = vmul.f32 %v4234, %v4251
        %v4253 = vadd.f32 %v4252, 0.4994258
        %v4254 = vmul.f32 %v4234, %v4253
        %v4255 = vadd.f32 %v4254, 1.0
        %v4256 = vrcp.pop %v4255
        %v4257 = vmul.f32 %v4255, %v4256
        %v4258 = vsub.f32 1.0, %v4257
        %v4259 = vmul.f32 %v4256, %v4258
        %v4260 = vadd.f32 %v4256, %v4259
        %vm4261 = vweird.f32 %v4255
        %vm4262 = vweird.f32 %v4256
        %vm4263 = vmor %vm4261, %vm4262
        %v4264 = vsel %vm4263, %v4256, %v4260
        %v4265 = vand.u32 2147483647, %v4255
        %vm4266 = vcmp.eq.f32.partialorder %v4265, 8.507059e+37
        %v4267 = vand.u32 %v4255, 2147483648
        %v4268 = vor.u32 1.1754944e-38, %v4267
        %v4269 = vsel %vm4266, %v4268, %v4264
        %v4270 = vmul.f32 %v4245, %v4269
        %v4271 = vmin.f32 %v4270, 1.0
        %v4272 = vmax.f32 %v4271, -1.0
        %v4273 = vmul.f32 %v3071, %v3071
        %v4274 = vmin.f32 16.0, %v4273
        %v4275 = vmul.f32 %v4274, 2.1237322e-06
        %v4276 = vadd.f32 %v4275, 0.00028619796
        %v4277 = vmul.f32 %v4274, %v4276
        %v4278 = vadd.f32 %v4277, 0.0036580483
        %v4279 = vmul.f32 %v4274, %v4278
        %v4280 = vadd.f32 %v4279, 0.05243302
        %v4281 = vmul.f32 %v4274, %v4280
        %v4282 = vadd.f32 %v4281, 0.18741608
        %v4283 = vmul.f32 %v4274, %v4282
        %v4284 = vadd.f32 %v4283, 1.1283791
        %v4285 = vmul.f32 %v3071, %v4284
        %v4286 = vmul.f32 %v4274, 3.8918573e-05
        %v4287 = vadd.f32 %v4286, 0.001143296
        %v4288 = vmul.f32 %v4274, %v4287
        %v4289 = vadd.f32 %v4288, 0.014752088
        %v4290 = vmul.f32 %v4274, %v4289
        %v4291 = vadd.f32 %v4290, 0.112945676
        %v4292 = vmul.f32 %v4274, %v4291
        %v4293 = vadd.f32 %v4292, 0.4994258
        %v4294 = vmul.f32 %v4274, %v4293
        %v4295 = vadd.f32 %v4294, 1.0
        %v4296 = vrcp.pop %v4295
        %v4297 = vmul.f32 %v4295, %v4296
        %v4298 = vsub.f32 1.0, %v4297
        %v4299 = vmul.f32 %v4296, %v4298
        %v4300 = vadd.f32 %v4296, %v4299
        %vm4301 = vweird.f32 %v4295
        %vm4302 = vweird.f32 %v4296
        %vm4303 = vmor %vm4301, %vm4302
        %v4304 = vsel %vm4303, %v4296, %v4300
        %v4305 = vand.u32 2147483647, %v4295
        %vm4306 = vcmp.eq.f32.partialorder %v4305, 8.507059e+37
        %v4307 = vand.u32 %v4295, 2147483648
        %v4308 = vor.u32 1.1754944e-38, %v4307
        %v4309 = vsel %vm4306, %v4308, %v4304
        %v4310 = vmul.f32 %v4285, %v4309
        %v4311 = vmin.f32 %v4310, 1.0
        %v4312 = vmax.f32 %v4311, -1.0
        %v4313 = vmul.f32 %v3072, %v3072
        %v4314 = vmin.f32 16.0, %v4313
        %v4315 = vmul.f32 %v4314, 2.1237322e-06
        %v4316 = vadd.f32 %v4315, 0.00028619796
        %v4317 = vmul.f32 %v4314, %v4316
        %v4318 = vadd.f32 %v4317, 0.0036580483
        %v4319 = vmul.f32 %v4314, %v4318
        %v4320 = vadd.f32 %v4319, 0.05243302
        %v4321 = vmul.f32 %v4314, %v4320
        %v4322 = vadd.f32 %v4321, 0.18741608
        %v4323 = vmul.f32 %v4314, %v4322
        %v4324 = vadd.f32 %v4323, 1.1283791
        %v4325 = vmul.f32 %v3072, %v4324
        %v4326 = vmul.f32 %v4314, 3.8918573e-05
        %v4327 = vadd.f32 %v4326, 0.001143296
        %v4328 = vmul.f32 %v4314, %v4327
        %v4329 = vadd.f32 %v4328, 0.014752088
        %v4330 = vmul.f32 %v4314, %v4329
        %v4331 = vadd.f32 %v4330, 0.112945676
        %v4332 = vmul.f32 %v4314, %v4331
        %v4333 = vadd.f32 %v4332, 0.4994258
        %v4334 = vmul.f32 %v4314, %v4333
        %v4335 = vadd.f32 %v4334, 1.0
        %v4336 = vrcp.pop %v4335
        %v4337 = vmul.f32 %v4335, %v4336
        %v4338 = vsub.f32 1.0, %v4337
        %v4339 = vmul.f32 %v4336, %v4338
        %v4340 = vadd.f32 %v4336, %v4339
        %vm4341 = vweird.f32 %v4335
        %vm4342 = vweird.f32 %v4336
        %vm4343 = vmor %vm4341, %vm4342
        %v4344 = vsel %vm4343, %v4336, %v4340
        %v4345 = vand.u32 2147483647, %v4335
        %vm4346 = vcmp.eq.f32.partialorder %v4345, 8.507059e+37
        %v4347 = vand.u32 %v4335, 2147483648
        %v4348 = vor.u32 1.1754944e-38, %v4347
        %v4349 = vsel %vm4346, %v4348, %v4344
        %v4350 = vmul.f32 %v4325, %v4349
        %v4351 = vmin.f32 %v4350, 1.0
        %v4352 = vmax.f32 %v4351, -1.0
        %v4353 = vadd.f32 %v3112, 1.0
        %v4354 = vadd.f32 %v3152, 1.0
        %v4355 = vadd.f32 %v3192, 1.0
        %v4356 = vadd.f32 %v3232, 1.0
        %v4357 = vadd.f32 %v3272, 1.0
        %v4358 = vadd.f32 %v3312, 1.0
        %v4359 = vadd.f32 %v3352, 1.0
        %v4360 = vadd.f32 %v3392, 1.0
        %v4361 = vadd.f32 %v3432, 1.0
        %v4362 = vadd.f32 %v3472, 1.0
        %v4363 = vadd.f32 %v3512, 1.0
        %v4364 = vadd.f32 %v3552, 1.0
        %v4365 = vadd.f32 %v3592, 1.0
        %v4366 = vadd.f32 %v3632, 1.0
        %v4367 = vadd.f32 %v3672, 1.0
        %v4368 = vadd.f32 %v3712, 1.0
        %v4369 = vadd.f32 %v3752, 1.0
        %v4370 = vadd.f32 %v3792, 1.0
        %v4371 = vadd.f32 %v3832, 1.0
        %v4372 = vadd.f32 %v3872, 1.0
        %v4373 = vadd.f32 %v3912, 1.0
        %v4374 = vadd.f32 %v3952, 1.0
        %v4375 = vadd.f32 %v3992, 1.0
        %v4376 = vadd.f32 %v4032, 1.0
        %v4377 = vadd.f32 %v4072, 1.0
        %v4378 = vadd.f32 %v4112, 1.0
        %v4379 = vadd.f32 %v4152, 1.0
        %v4380 = vadd.f32 %v4192, 1.0
        %v4381 = vadd.f32 %v4232, 1.0
        %v4382 = vadd.f32 %v4272, 1.0
        %v4383 = vadd.f32 %v4312, 1.0
        %v4384 = vadd.f32 %v4352, 1.0
        %v4385 = vmul.f32 %v3009, %v4353
        %v4386 = vmul.f32 %v3010, %v4354
        %v4387 = vmul.f32 %v3011, %v4355
        %v4388 = vmul.f32 %v3012, %v4356
        %v4389 = vmul.f32 %v3013, %v4357
        %v4390 = vmul.f32 %v3014, %v4358
        %v4391 = vmul.f32 %v3015, %v4359
        %v4392 = vmul.f32 %v3016, %v4360
        %v4393 = vmul.f32 %v3017, %v4361
        %v4394 = vmul.f32 %v3018, %v4362
        %v4395 = vmul.f32 %v3019, %v4363
        %v4396 = vmul.f32 %v3020, %v4364
        %v4397 = vmul.f32 %v3021, %v4365
        %v4398 = vmul.f32 %v3022, %v4366
        %v4399 = vmul.f32 %v3023, %v4367
        %v4400 = vmul.f32 %v3024, %v4368
        %v4401 = vmul.f32 %v3025, %v4369
        %v4402 = vmul.f32 %v3026, %v4370
        %v4403 = vmul.f32 %v3027, %v4371
        %v4404 = vmul.f32 %v3028, %v4372
        %v4405 = vmul.f32 %v3029, %v4373
        %v4406 = vmul.f32 %v3030, %v4374
        %v4407 = vmul.f32 %v3031, %v4375
        %v4408 = vmul.f32 %v3032, %v4376
        %v4409 = vmul.f32 %v3033, %v4377
        %v4410 = vmul.f32 %v3034, %v4378
        %v4411 = vmul.f32 %v3035, %v4379
        %v4412 = vmul.f32 %v3036, %v4380
        %v4413 = vmul.f32 %v3037, %v4381
        %v4414 = vmul.f32 %v3038, %v4382
        %v4415 = vmul.f32 %v3039, %v4383
        %v4416 = vmul.f32 %v3040, %v4384
        %v4417 = vadd.f32 %v4385, %v4386
        %v4418 = vadd.f32 %v4417, %v4387
        %v4419 = vadd.f32 %v4418, %v4388
        %v4420 = vadd.f32 %v4419, %v4389
        %v4421 = vadd.f32 %v4420, %v4390
        %v4422 = vadd.f32 %v4421, %v4391
        %v4423 = vadd.f32 %v4422, %v4392
        %v4424 = vadd.f32 %v4423, %v4393
        %v4425 = vadd.f32 %v4424, %v4394
        %v4426 = vadd.f32 %v4425, %v4395
        %v4427 = vadd.f32 %v4426, %v4396
        %v4428 = vadd.f32 %v4427, %v4397
        %v4429 = vadd.f32 %v4428, %v4398
        %v4430 = vadd.f32 %v4429, %v4399
        %v4431 = vadd.f32 %v4430, %v4400
        %v4432 = vadd.f32 %v4431, %v4401
        %v4433 = vadd.f32 %v4432, %v4402
        %v4434 = vadd.f32 %v4433, %v4403
        %v4435 = vadd.f32 %v4434, %v4404
        %v4436 = vadd.f32 %v4435, %v4405
        %v4437 = vadd.f32 %v4436, %v4406
        %v4438 = vadd.f32 %v4437, %v4407
        %v4439 = vadd.f32 %v4438, %v4408
        %v4440 = vadd.f32 %v4439, %v4409
        %v4441 = vadd.f32 %v4440, %v4410
        %v4442 = vadd.f32 %v4441, %v4411
        %v4443 = vadd.f32 %v4442, %v4412
        %v4444 = vadd.f32 %v4443, %v4413
        %v4445 = vadd.f32 %v4444, %v4414
        %v4446 = vadd.f32 %v4445, %v4415
        %v4447 = vadd.f32 %v4446, %v4416
        %v4448 = vrot.slane %v4447, 4
        %v4449 = vadd.f32 %v4447, %v4448
        %v4450 = vrot.slane %v4449, 2
        %v4451 = vadd.f32 %v4449, %v4450
        %v4452 = vrot.slane %v4451, 1
        %v4453 = vadd.f32 %v4451, %v4452
        %v4454 = vmul.f32 %v4453, 0.00390625
        %v4455 = vld [vmem:[#allocation9] sm:$0xff]
        %v4456 = vld [vmem:[#allocation9 + $0x8] sm:$0xff]
        %v4457 = vld [vmem:[#allocation9 + $0x10] sm:$0xff]
        %v4458 = vld [vmem:[#allocation9 + $0x18] sm:$0xff]
        %v4459 = vld [vmem:[#allocation9 + $0x20] sm:$0xff]
        %v4460 = vld [vmem:[#allocation9 + $0x28] sm:$0xff]
        %v4461 = vld [vmem:[#allocation9 + $0x30] sm:$0xff]
        %v4462 = vld [vmem:[#allocation9 + $0x38] sm:$0xff]
        %v4463 = vld [vmem:[#allocation9 + $0x40] sm:$0xff]
        %v4464 = vld [vmem:[#allocation9 + $0x48] sm:$0xff]
        %v4465 = vld [vmem:[#allocation9 + $0x50] sm:$0xff]
        %v4466 = vld [vmem:[#allocation9 + $0x58] sm:$0xff]
        %v4467 = vld [vmem:[#allocation9 + $0x60] sm:$0xff]
        %v4468 = vld [vmem:[#allocation9 + $0x68] sm:$0xff]
        %v4469 = vld [vmem:[#allocation9 + $0x70] sm:$0xff]
        %v4470 = vld [vmem:[#allocation9 + $0x78] sm:$0xff]
        %4471 = vmatpush.msra.mxu0 %v4470
        %4472 = vmatpush.msra.mxu0 %v4469
        %4473 = vmatpush.msra.mxu0 %v4468
        %4474 = vmatpush.msra.mxu0 %v4467
        %4475 = vmatpush.msra.mxu0 %v4466
        %4476 = vmatpush.msra.mxu0 %v4465
        %4477 = vmatpush.msra.mxu0 %v4464
        %4478 = vmatpush.msra.mxu0 %v4463
        %4479 = vmatpush.msra.mxu0 %v4462
        %4480 = vmatpush.msra.mxu0 %v4461
        %4481 = vmatpush.msra.mxu0 %v4460
        %4482 = vmatpush.msra.mxu0 %v4459
        %4483 = vmatpush.msra.mxu0 %v4458
        %4484 = vmatpush.msra.mxu0 %v4457
        %4485 = vmatpush.msra.mxu0 %v4456
        %4486 = vmatpush.msra.mxu0 %v4455
        %4487 = vmatmul.f32.gmra.mxu0 %v4454
        %v4488 = vpop.f32.mrf.mxu0
        %v4489 = vadd.f32 0.0, %v4488
        %4490 = vdwg.mxu0
        %v4491 = vmul.f32 %v4489, 0.5
        %v4492 = vmul.f32 %v4489, 0.70710677
        %v4493 = vmul.f32 %v4492, %v4492
        %v4494 = vmin.f32 16.0, %v4493
        %v4495 = vmul.f32 %v4494, 2.1237322e-06
        %v4496 = vadd.f32 %v4495, 0.00028619796
        %v4497 = vmul.f32 %v4494, %v4496
        %v4498 = vadd.f32 %v4497, 0.0036580483
        %v4499 = vmul.f32 %v4494, %v4498
        %v4500 = vadd.f32 %v4499, 0.05243302
        %v4501 = vmul.f32 %v4494, %v4500
        %v4502 = vadd.f32 %v4501, 0.18741608
        %v4503 = vmul.f32 %v4494, %v4502
        %v4504 = vadd.f32 %v4503, 1.1283791
        %v4505 = vmul.f32 %v4492, %v4504
        %v4506 = vmul.f32 %v4494, 3.8918573e-05
        %v4507 = vadd.f32 %v4506, 0.001143296
        %v4508 = vmul.f32 %v4494, %v4507
        %v4509 = vadd.f32 %v4508, 0.014752088
        %v4510 = vmul.f32 %v4494, %v4509
        %v4511 = vadd.f32 %v4510, 0.112945676
        %v4512 = vmul.f32 %v4494, %v4511
        %v4513 = vadd.f32 %v4512, 0.4994258
        %v4514 = vmul.f32 %v4494, %v4513
        %v4515 = vadd.f32 %v4514, 1.0
        %v4516 = vrcp.pop %v4515
        %v4517 = vmul.f32 %v4515, %v4516
        %v4518 = vsub.f32 1.0, %v4517
        %v4519 = vmul.f32 %v4516, %v4518
        %v4520 = vadd.f32 %v4516, %v4519
        %vm4521 = vweird.f32 %v4515
        %vm4522 = vweird.f32 %v4516
        %vm4523 = vmor %vm4521, %vm4522
        %v4524 = vsel %vm4523, %v4516, %v4520
        %v4525 = vand.u32 2147483647, %v4515
        %vm4526 = vcmp.eq.f32.partialorder %v4525, 8.507059e+37
        %v4527 = vand.u32 %v4515, 2147483648
        %v4528 = vor.u32 1.1754944e-38, %v4527
        %v4529 = vsel %vm4526, %v4528, %v4524
        %v4530 = vmul.f32 %v4505, %v4529
        %v4531 = vmin.f32 %v4530, 1.0
        %v4532 = vmax.f32 %v4531, -1.0
        %v4533 = vadd.f32 %v4532, 1.0
        %v4534 = vmul.f32 %v4491, %v4533
        %v4535 = vld [vmem:[#allocation11] sm:$0xff]
        %v4536 = vld [vmem:[#allocation11 + $0x8] sm:$0xff]
        %v4537 = vld [vmem:[#allocation11 + $0x10] sm:$0xff]
        %v4538 = vld [vmem:[#allocation11 + $0x18] sm:$0xff]
        %v4539 = vld [vmem:[#allocation11 + $0x20] sm:$0xff]
        %v4540 = vld [vmem:[#allocation11 + $0x28] sm:$0xff]
        %v4541 = vld [vmem:[#allocation11 + $0x30] sm:$0xff]
        %v4542 = vld [vmem:[#allocation11 + $0x38] sm:$0xff]
        %v4543 = vld [vmem:[#allocation11 + $0x40] sm:$0xff]
        %v4544 = vld [vmem:[#allocation11 + $0x48] sm:$0xff]
        %v4545 = vld [vmem:[#allocation11 + $0x50] sm:$0xff]
        %v4546 = vld [vmem:[#allocation11 + $0x58] sm:$0xff]
        %v4547 = vld [vmem:[#allocation11 + $0x60] sm:$0xff]
        %v4548 = vld [vmem:[#allocation11 + $0x68] sm:$0xff]
        %v4549 = vld [vmem:[#allocation11 + $0x70] sm:$0xff]
        %v4550 = vld [vmem:[#allocation11 + $0x78] sm:$0xff]
        %4551 = vmatpush.msra.mxu0 %v4550
        %4552 = vmatpush.msra.mxu0 %v4549
        %4553 = vmatpush.msra.mxu0 %v4548
        %4554 = vmatpush.msra.mxu0 %v4547
        %4555 = vmatpush.msra.mxu0 %v4546
        %4556 = vmatpush.msra.mxu0 %v4545
        %4557 = vmatpush.msra.mxu0 %v4544
        %4558 = vmatpush.msra.mxu0 %v4543
        %4559 = vmatpush.msra.mxu0 %v4542
        %4560 = vmatpush.msra.mxu0 %v4541
        %4561 = vmatpush.msra.mxu0 %v4540
        %4562 = vmatpush.msra.mxu0 %v4539
        %4563 = vmatpush.msra.mxu0 %v4538
        %4564 = vmatpush.msra.mxu0 %v4537
        %4565 = vmatpush.msra.mxu0 %v4536
        %4566 = vmatpush.msra.mxu0 %v4535
        %4567 = vmatmul.f32.gmra.mxu0 %v4534
        %v4568 = vpop.f32.mrf.mxu0
        %v4569 = vadd.f32 0.0, %v4568
        %4570 = vdwg.mxu0
        %v4571 = vxor.u32 %v4569, 2147483648
        %v4572 = vmul.f32 %v4571, 1.442695
        %v4573 = vpow.pop %v4572
        %v4574 = vadd.f32 %v4573, 1.0
        %v4575 = vrcp.pop %v4574
        %v4576 = vmul.f32 %v4574, %v4575
        %v4577 = vsub.f32 1.0, %v4576
        %v4578 = vmul.f32 %v4575, %v4577
        %v4579 = vadd.f32 %v4575, %v4578
        %vm4580 = vweird.f32 %v4574
        %vm4581 = vweird.f32 %v4575
        %vm4582 = vmor %vm4580, %vm4581
        %v4583 = vsel %vm4582, %v4575, %v4579
        %v4584 = vand.u32 2147483647, %v4574
        %vm4585 = vcmp.eq.f32.partialorder %v4584, 8.507059e+37
        %v4586 = vand.u32 %v4574, 2147483648
        %v4587 = vor.u32 1.1754944e-38, %v4586
        %v4588 = vsel %vm4585, %v4587, %v4583
        %v4589 = vmul.f32 1.0, %v4588
        %v4590 = vperm.slane %v4589, 0
        %v4591 = vmul.f32 %v4385, %v4590
        %v4592 = vmul.f32 %v4386, %v4590
        %v4593 = vmul.f32 %v4387, %v4590
        %v4594 = vmul.f32 %v4388, %v4590
        %v4595 = vmul.f32 %v4389, %v4590
        %v4596 = vmul.f32 %v4390, %v4590
        %v4597 = vmul.f32 %v4391, %v4590
        %v4598 = vmul.f32 %v4392, %v4590
        %v4599 = vmul.f32 %v4393, %v4590
        %v4600 = vmul.f32 %v4394, %v4590
        %v4601 = vmul.f32 %v4395, %v4590
        %v4602 = vmul.f32 %v4396, %v4590
        %v4603 = vmul.f32 %v4397, %v4590
        %v4604 = vmul.f32 %v4398, %v4590
        %v4605 = vmul.f32 %v4399, %v4590
        %v4606 = vmul.f32 %v4400, %v4590
        %v4607 = vmul.f32 %v4401, %v4590
        %v4608 = vmul.f32 %v4402, %v4590
        %v4609 = vmul.f32 %v4403, %v4590
        %v4610 = vmul.f32 %v4404, %v4590
        %v4611 = vmul.f32 %v4405, %v4590
        %v4612 = vmul.f32 %v4406, %v4590
        %v4613 = vmul.f32 %v4407, %v4590
        %v4614 = vmul.f32 %v4408, %v4590
        %v4615 = vmul.f32 %v4409, %v4590
        %v4616 = vmul.f32 %v4410, %v4590
        %v4617 = vmul.f32 %v4411, %v4590
        %v4618 = vmul.f32 %v4412, %v4590
        %v4619 = vmul.f32 %v4413, %v4590
        %v4620 = vmul.f32 %v4414, %v4590
        %v4621 = vmul.f32 %v4415, %v4590
        %v4622 = vmul.f32 %v4416, %v4590
        %v4623 = vld [vmem:[#allocation12] sm:$0xff]
        %v4624 = vld [vmem:[#allocation12 + $0x8] sm:$0xff]
        %v4625 = vld [vmem:[#allocation12 + $0x10] sm:$0xff]
        %v4626 = vld [vmem:[#allocation12 + $0x18] sm:$0xff]
        %v4627 = vld [vmem:[#allocation12 + $0x20] sm:$0xff]
        %v4628 = vld [vmem:[#allocation12 + $0x28] sm:$0xff]
        %v4629 = vld [vmem:[#allocation12 + $0x30] sm:$0xff]
        %v4630 = vld [vmem:[#allocation12 + $0x38] sm:$0xff]
        %v4631 = vld [vmem:[#allocation12 + $0x40] sm:$0xff]
        %v4632 = vld [vmem:[#allocation12 + $0x48] sm:$0xff]
        %v4633 = vld [vmem:[#allocation12 + $0x50] sm:$0xff]
        %v4634 = vld [vmem:[#allocation12 + $0x58] sm:$0xff]
        %v4635 = vld [vmem:[#allocation12 + $0x60] sm:$0xff]
        %v4636 = vld [vmem:[#allocation12 + $0x68] sm:$0xff]
        %v4637 = vld [vmem:[#allocation12 + $0x70] sm:$0xff]
        %v4638 = vld [vmem:[#allocation12 + $0x78] sm:$0xff]
        %v4639 = vld [vmem:[%s8] sm:$0x1]
        %v4641 = vperm.slane %v4639, 0
        %4643 = vmatpush.msra.mxu0 %v4638
        %4644 = vmatpush.msra.mxu0 %v4637
        %4645 = vmatpush.msra.mxu0 %v4636
        %4646 = vmatpush.msra.mxu0 %v4635
        %4647 = vmatpush.msra.mxu0 %v4634
        %4648 = vmatpush.msra.mxu0 %v4633
        %4649 = vmatpush.msra.mxu0 %v4632
        %4650 = vmatpush.msra.mxu0 %v4631
        %4651 = vmatpush.msra.mxu0 %v4630
        %4652 = vmatpush.msra.mxu0 %v4629
        %4653 = vmatpush.msra.mxu0 %v4628
        %4654 = vmatpush.msra.mxu0 %v4627
        %4655 = vmatpush.msra.mxu0 %v4626
        %4656 = vmatpush.msra.mxu0 %v4625
        %4657 = vmatpush.msra.mxu0 %v4624
        %4658 = vmatpush.msra.mxu0 %v4623
        %4659 = vmatmul.f32.gmra.mxu0 %v4591
        %v4660 = vpop.f32.mrf.mxu0
        %v4661 = vadd.f32 %v4641, %v4660
        %4662 = vmatmul.f32.gmra.mxu0 %v4592
        %v4663 = vpop.f32.mrf.mxu0
        %v4664 = vadd.f32 %v4641, %v4663
        %4665 = vmatmul.f32.gmra.mxu0 %v4593
        %v4666 = vpop.f32.mrf.mxu0
        %v4667 = vadd.f32 %v4641, %v4666
        %4668 = vmatmul.f32.gmra.mxu0 %v4594
        %v4669 = vpop.f32.mrf.mxu0
        %v4670 = vadd.f32 %v4641, %v4669
        %4671 = vmatmul.f32.gmra.mxu0 %v4595
        %v4672 = vpop.f32.mrf.mxu0
        %v4673 = vadd.f32 %v4641, %v4672
        %4674 = vmatmul.f32.gmra.mxu0 %v4596
        %v4675 = vpop.f32.mrf.mxu0
        %v4676 = vadd.f32 %v4641, %v4675
        %4677 = vmatmul.f32.gmra.mxu0 %v4597
        %v4678 = vpop.f32.mrf.mxu0
        %v4679 = vadd.f32 %v4641, %v4678
        %4680 = vmatmul.f32.gmra.mxu0 %v4598
        %v4681 = vpop.f32.mrf.mxu0
        %v4682 = vadd.f32 %v4641, %v4681
        %4683 = vmatmul.f32.gmra.mxu0 %v4599
        %v4684 = vpop.f32.mrf.mxu0
        %v4685 = vadd.f32 %v4641, %v4684
        %4686 = vmatmul.f32.gmra.mxu0 %v4600
        %v4687 = vpop.f32.mrf.mxu0
        %v4688 = vadd.f32 %v4641, %v4687
        %4689 = vmatmul.f32.gmra.mxu0 %v4601
        %v4690 = vpop.f32.mrf.mxu0
        %v4691 = vadd.f32 %v4641, %v4690
        %4692 = vmatmul.f32.gmra.mxu0 %v4602
        %v4693 = vpop.f32.mrf.mxu0
        %v4694 = vadd.f32 %v4641, %v4693
        %4695 = vmatmul.f32.gmra.mxu0 %v4603
        %v4696 = vpop.f32.mrf.mxu0
        %v4697 = vadd.f32 %v4641, %v4696
        %4698 = vmatmul.f32.gmra.mxu0 %v4604
        %v4699 = vpop.f32.mrf.mxu0
        %v4700 = vadd.f32 %v4641, %v4699
        %4701 = vmatmul.f32.gmra.mxu0 %v4605
        %v4702 = vpop.f32.mrf.mxu0
        %v4703 = vadd.f32 %v4641, %v4702
        %4704 = vmatmul.f32.gmra.mxu0 %v4606
        %v4705 = vpop.f32.mrf.mxu0
        %v4706 = vadd.f32 %v4641, %v4705
        %4707 = vmatmul.f32.gmra.mxu0 %v4607
        %v4708 = vpop.f32.mrf.mxu0
        %v4709 = vadd.f32 %v4641, %v4708
        %4710 = vmatmul.f32.gmra.mxu0 %v4608
        %v4711 = vpop.f32.mrf.mxu0
        %v4712 = vadd.f32 %v4641, %v4711
        %4713 = vmatmul.f32.gmra.mxu0 %v4609
        %v4714 = vpop.f32.mrf.mxu0
        %v4715 = vadd.f32 %v4641, %v4714
        %4716 = vmatmul.f32.gmra.mxu0 %v4610
        %v4717 = vpop.f32.mrf.mxu0
        %v4718 = vadd.f32 %v4641, %v4717
        %4719 = vmatmul.f32.gmra.mxu0 %v4611
        %v4720 = vpop.f32.mrf.mxu0
        %v4721 = vadd.f32 %v4641, %v4720
        %4722 = vmatmul.f32.gmra.mxu0 %v4612
        %v4723 = vpop.f32.mrf.mxu0
        %v4724 = vadd.f32 %v4641, %v4723
        %4725 = vmatmul.f32.gmra.mxu0 %v4613
        %v4726 = vpop.f32.mrf.mxu0
        %v4727 = vadd.f32 %v4641, %v4726
        %4728 = vmatmul.f32.gmra.mxu0 %v4614
        %v4729 = vpop.f32.mrf.mxu0
        %v4730 = vadd.f32 %v4641, %v4729
        %4731 = vmatmul.f32.gmra.mxu0 %v4615
        %v4732 = vpop.f32.mrf.mxu0
        %v4733 = vadd.f32 %v4641, %v4732
        %4734 = vmatmul.f32.gmra.mxu0 %v4616
        %v4735 = vpop.f32.mrf.mxu0
        %v4736 = vadd.f32 %v4641, %v4735
        %4737 = vmatmul.f32.gmra.mxu0 %v4617
        %v4738 = vpop.f32.mrf.mxu0
        %v4739 = vadd.f32 %v4641, %v4738
        %4740 = vmatmul.f32.gmra.mxu0 %v4618
        %v4741 = vpop.f32.mrf.mxu0
        %v4742 = vadd.f32 %v4641, %v4741
        %4743 = vmatmul.f32.gmra.mxu0 %v4619
        %v4744 = vpop.f32.mrf.mxu0
        %v4745 = vadd.f32 %v4641, %v4744
        %4746 = vmatmul.f32.gmra.mxu0 %v4620
        %v4747 = vpop.f32.mrf.mxu0
        %v4748 = vadd.f32 %v4641, %v4747
        %4749 = vmatmul.f32.gmra.mxu0 %v4621
        %v4750 = vpop.f32.mrf.mxu0
        %v4751 = vadd.f32 %v4641, %v4750
        %4752 = vmatmul.f32.gmra.mxu0 %v4622
        %v4753 = vpop.f32.mrf.mxu0
        %v4754 = vadd.f32 %v4641, %v4753
        %4755 = vdwg.mxu0
        %v4756 = vadd.f32 %v436, %v4661
        %v4757 = vadd.f32 %v437, %v4664
        %v4758 = vadd.f32 %v438, %v4667
        %v4759 = vadd.f32 %v439, %v4670
        %v4760 = vadd.f32 %v440, %v4673
        %v4761 = vadd.f32 %v441, %v4676
        %v4762 = vadd.f32 %v442, %v4679
        %v4763 = vadd.f32 %v443, %v4682
        %v4764 = vadd.f32 %v444, %v4685
        %v4765 = vadd.f32 %v445, %v4688
        %v4766 = vadd.f32 %v446, %v4691
        %v4767 = vadd.f32 %v447, %v4694
        %v4768 = vadd.f32 %v448, %v4697
        %v4769 = vadd.f32 %v449, %v4700
        %v4770 = vadd.f32 %v450, %v4703
        %v4771 = vadd.f32 %v451, %v4706
        %v4772 = vadd.f32 %v452, %v4709
        %v4773 = vadd.f32 %v453, %v4712
        %v4774 = vadd.f32 %v454, %v4715
        %v4775 = vadd.f32 %v455, %v4718
        %v4776 = vadd.f32 %v456, %v4721
        %v4777 = vadd.f32 %v457, %v4724
        %v4778 = vadd.f32 %v458, %v4727
        %v4779 = vadd.f32 %v459, %v4730
        %v4780 = vadd.f32 %v460, %v4733
        %v4781 = vadd.f32 %v461, %v4736
        %v4782 = vadd.f32 %v462, %v4739
        %v4783 = vadd.f32 %v463, %v4742
        %v4784 = vadd.f32 %v464, %v4745
        %v4785 = vadd.f32 %v465, %v4748
        %v4786 = vadd.f32 %v466, %v4751
        %v4787 = vadd.f32 %v467, %v4754
        %4788 = vst [vmem:[%s435] sm:$0xff] %v4756
        %4789 = vst [vmem:[%s435 + $0x8] sm:$0xff] %v4757
        %4790 = vst [vmem:[%s435 + $0x10] sm:$0xff] %v4758
        %4791 = vst [vmem:[%s435 + $0x18] sm:$0xff] %v4759
        %4792 = vst [vmem:[%s435 + $0x20] sm:$0xff] %v4760
        %4793 = vst [vmem:[%s435 + $0x28] sm:$0xff] %v4761
        %4794 = vst [vmem:[%s435 + $0x30] sm:$0xff] %v4762
        %4795 = vst [vmem:[%s435 + $0x38] sm:$0xff] %v4763
        %4796 = vst [vmem:[%s435 + $0x40] sm:$0xff] %v4764
        %4797 = vst [vmem:[%s435 + $0x48] sm:$0xff] %v4765
        %4798 = vst [vmem:[%s435 + $0x50] sm:$0xff] %v4766
        %4799 = vst [vmem:[%s435 + $0x58] sm:$0xff] %v4767
        %4800 = vst [vmem:[%s435 + $0x60] sm:$0xff] %v4768
        %4801 = vst [vmem:[%s435 + $0x68] sm:$0xff] %v4769
        %4802 = vst [vmem:[%s435 + $0x70] sm:$0xff] %v4770
        %4803 = vst [vmem:[%s435 + $0x78] sm:$0xff] %v4771
        %4804 = vst [vmem:[%s435 + $0x80] sm:$0xff] %v4772
        %4805 = vst [vmem:[%s435 + $0x88] sm:$0xff] %v4773
        %4806 = vst [vmem:[%s435 + $0x90] sm:$0xff] %v4774
        %4807 = vst [vmem:[%s435 + $0x98] sm:$0xff] %v4775
        %4808 = vst [vmem:[%s435 + $0xa0] sm:$0xff] %v4776
        %4809 = vst [vmem:[%s435 + $0xa8] sm:$0xff] %v4777
        %4810 = vst [vmem:[%s435 + $0xb0] sm:$0xff] %v4778
        %4811 = vst [vmem:[%s435 + $0xb8] sm:$0xff] %v4779
        %4812 = vst [vmem:[%s435 + $0xc0] sm:$0xff] %v4780
        %4813 = vst [vmem:[%s435 + $0xc8] sm:$0xff] %v4781
        %4814 = vst [vmem:[%s435 + $0xd0] sm:$0xff] %v4782
        %4815 = vst [vmem:[%s435 + $0xd8] sm:$0xff] %v4783
        %4816 = vst [vmem:[%s435 + $0xe0] sm:$0xff] %v4784
        %4817 = vst [vmem:[%s435 + $0xe8] sm:$0xff] %v4785
        %4818 = vst [vmem:[%s435 + $0xf0] sm:$0xff] %v4786
        %4819 = vst [vmem:[%s435 + $0xf8] sm:$0xff] %v4787
        %s4820 = sand.u32 %s231, 1
        %s4821 = scalar_lea.sflag [#allocation5], %s4820
        %s4822 = sand.u32 %s231, 1
        %s4823 = smul.addr %s4822, 256
        %s4824 = scalar_lea.vmem [#allocation14], %s4823
        // Predicated region
        $region81: #{tpu_custom_call.1} parent=55 // pred_check
          %p4825 = pneg %p241
        $region82: #{tpu_custom_call.1} parent=55 // pred_check_branch
          %4827 = sbr.rel (%p4825) target = $region84
        $region83: #{tpu_custom_call.1} parent=55 // pred_region
          %4829 = vsyncadd %s4821, 0
          %s4830 = smul.addr %s29, 32
          %s4831 = smul.addr %s4830, 8
          %s4832 = scalar_lea.hbm %s9, %s4831
          %s4833 = sshll.u32 %s4824, 4
          %s4834 = int_to_ptr.vmem [resolvable:$true] %s4833
          %s4835 = sshll.u32 %s4832, 4
          %s4836 = int_to_ptr.hbm [resolvable:$true] %s4835
          %4841 = dma.vmem_to_hbm [thread:$0]  %s4834, 4096, %s4836, %s4821, 128, 128, 8
        $region84: #{tpu_custom_call.1} parent=55 // pred_fallthru
          _
      $region56: #{tpu_custom_call.1} parent=5 // pred_fallthru
        _
      %p4842 = scmp.le.s32.totalorder 2, %s24
      // Predicated region
      $region85: #{tpu_custom_call.1} parent=5 // pred_check
        %p4843 = pneg %p4842
      $region86: #{tpu_custom_call.1} parent=5 // pred_check_branch
        %4845 = sbr.rel (%p4843) target = $region88
      $region87: #{tpu_custom_call.1} parent=5 // pred_region
        %s4846 = ssub.s32 %s24, 2
        // Predicated region
        $region89: #{tpu_custom_call.1} parent=87 // pred_check
          %p4847 = pneg %p247
        $region90: #{tpu_custom_call.1} parent=87 // pred_check_branch
          %4849 = sbr.rel (%p4847) target = $region92
        $region91: #{tpu_custom_call.1} parent=87 // pred_region
          %s4850 = sand.u32 %s232, 1
          %s4851 = scalar_lea.sflag [#allocation5], %s4850
          %s4852 = sand.u32 %s232, 1
          %s4853 = smul.addr %s4852, 256
          %s4854 = scalar_lea.vmem [#allocation14], %s4853
          %4856 = dma.done %s4851, 4096
        $region92: #{tpu_custom_call.1} parent=87 // pred_fallthru
          _
      $region88: #{tpu_custom_call.1} parent=5 // pred_fallthru
        _
    $region6: #{tpu_custom_call.1} parent=1 // loop_footer
      %s28 = sadd.s32 1, %s24
    $region7: #{tpu_custom_call.1} parent=1 // loop_footer_branch
      %23 = sbr.rel target = $region3
    $region8: #{tpu_custom_call.1} parent=1 // loop_exit
      _
    %4857 = vsyncpa [#allocation4], 1
    %s4858 = scalar_lea.sflag [#allocation4], 1
    %4859 = vsyncpa %s4858, 1
    %4860 = vsyncpa [#allocation7], 1
    %4861 = vsyncpa [#allocation10], 1
    %4862 = vsyncpa [#allocation13], 1
    %4863 = vsyncpa [#allocation5], 1
    %s4864 = scalar_lea.sflag [#allocation5], 1
    %4865 = vsyncpa %s4864, 1

</llo_original>
